<compile_context>
chip_gen: v7x
topology: tpu7x:2x2x1
jax: 0.10.0
libtpu: 0.0.40
codegen_flags: <defaults>
</compile_context>

<pallas_src>
import numpy as np
import jax
import jax.numpy as jnp
from jax import lax
from jax.experimental import pallas as pl
from jax.experimental.pallas import tpu as pltpu  # noqa: F401  (TPU backend)

# ----------------------------- config (small) -------------------------------
ROWS, COLS = 8, 8
FILTERS = 8            # config.filters
BLOCKS = 2             # config.blocks
KERNELS = 4            # config.kernels
PREVIEWS = 2           # PREVIEWS
NUM_MINOS = 7          # len(MINOS)
O_SIDE_NEURONS = 16    # config.o_side_neurons
VALUE_HEAD_NEURONS = 16
POLICY_SIZE = 16
USE_TANH = True
DROPOUT = 0.1          # unused at eval time
BATCH = 2

HEAD_INPUTS = (ROWS * COLS * KERNELS + O_SIDE_NEURONS
               + 2 * ((2 + PREVIEWS) * NUM_MINOS) + 2 * 3 + 1)


# ----------------------------- Pallas kernel ---------------------------------
def _alpha_same_kernel(grids_ref, g12_ref, t_c1_ref, t_rb_ref, t_k1_ref,
                       vec_ref, w_comb_ref, w_g12_ref, w_os_ref, hv_ref,
                       val_ref, pol_ref):
    """Whole AlphaSame forward (eval mode) for both players in one body.

    grids_ref : (2B, 64)   a-grids stacked over o-grids, lane = h*8 + w
    g12_ref   : (B, 64)    [a_pieces|a_b2b|a_combo|a_garbage|
                            o_pieces|o_b2b|o_combo|o_garbage|color|pad0]
    t_c1_ref  : (64, 512)  conv1 (5x5, Cin=1) Toeplitz matrix
    t_rb_ref  : (2048,512) 4 residual 3x3-conv Toeplitz matrices stacked on rows
    t_k1_ref  : (512, 256) kernel1 (1x1) block-diagonal matrix
    vec_ref   : (12, 512)  tiled BatchNorm scale/shift rows (see prepare_params)
    w_comb_ref: (256, 48)  [policy+value-layer1 rows | o-side dense rows]
    w_g12_ref : (64, 32)   head weights for the packed g1|g2 aux features
    w_os_ref  : (16, 32)   head weights for the o-side dense output
    hv_ref    : (8, 32)    packed head vectors (biases, BN scale/shift, v2)
    """
    f32 = jnp.float32
    B = g12_ref.shape[0]
    NF = ROWS * COLS * FILTERS          # 512
    NK = ROWS * COLS * KERNELS          # 256

    # conv1 (5x5, Cin=1, 'same'): (2B, 64) @ (64, 512); lanes = (h*8+w)*F + ci
    x = jnp.dot(grids_ref[...], t_c1_ref[...], preferred_element_type=f32)

    # residual blocks: BN->ReLU->conv3x3, BN->Dropout(id)->ReLU->conv3x3, +res
    for i in range(BLOCKS):
        res = x
        h = jnp.maximum(x * vec_ref[4 * i + 0:4 * i + 1, :]
                        + vec_ref[4 * i + 1:4 * i + 2, :], 0.0)
        h = jnp.dot(h, t_rb_ref[(2 * i) * NF:(2 * i + 1) * NF, :],
                    preferred_element_type=f32)
        h = jnp.maximum(h * vec_ref[4 * i + 2:4 * i + 3, :]
                        + vec_ref[4 * i + 3:4 * i + 4, :], 0.0)
        h = jnp.dot(h, t_rb_ref[(2 * i + 1) * NF:(2 * i + 2) * NF, :],
                    preferred_element_type=f32)
        x = h + res

    # batchnorm1 -> ReLU -> 1x1 conv -> batchnorm2 -> ReLU
    r = 4 * BLOCKS
    x = jnp.maximum(x * vec_ref[r:r + 1, :] + vec_ref[r + 1:r + 2, :], 0.0)
    y = jnp.dot(x, t_k1_ref[...], preferred_element_type=f32)        # (2B, 256)
    y = jnp.maximum(y * vec_ref[r + 2:r + 3, 0:NK]
                    + vec_ref[r + 3:r + 4, 0:NK], 0.0)

    # heads: one combined (2B,256)@(256,48) matmul gives both the a_flat head
    # contribution (rows 0:B, cols 0:32) and the o-side dense pre-activation
    # (rows B:2B, cols 32:48).
    z = jnp.dot(y, w_comb_ref[...], preferred_element_type=f32)      # (2B, 48)
    a_part = z[0:B, 0:32]
    o_pre = z[B:2 * B, 32:48]
    # osidedense: Linear(+bias, folded) -> BN1d -> ReLU
    o_side = jnp.maximum(o_pre * hv_ref[0:1, 0:O_SIDE_NEURONS]
                         + hv_ref[1:2, 0:O_SIDE_NEURONS], 0.0)       # (B, 16)

    h = (a_part
         + jnp.dot(g12_ref[...], w_g12_ref[...], preferred_element_type=f32)
         + jnp.dot(o_side, w_os_ref[...], preferred_element_type=f32)
         + hv_ref[2:3, :])                                           # (B, 32)

    # policy head: Linear -> Sigmoid
    pol_ref[...] = jax.nn.sigmoid(h[:, 0:POLICY_SIZE])

    # value head: Linear -> BN1d -> ReLU -> Linear -> Dropout(id) -> Tanh/Sig
    v = h[:, POLICY_SIZE:POLICY_SIZE + VALUE_HEAD_NEURONS]
    v = jnp.maximum(v * hv_ref[3:4, 0:VALUE_HEAD_NEURONS]
                    + hv_ref[4:5, 0:VALUE_HEAD_NEURONS], 0.0)
    v = jnp.sum(v * hv_ref[5:6, 0:VALUE_HEAD_NEURONS],
                axis=1, keepdims=True) + hv_ref[6:7, 0:1]
    val_ref[...] = jnp.tanh(v) if USE_TANH else jax.nn.sigmoid(v)


# ------------------------------ wrappers -------------------------------------
def alpha_same_call(pp, grids, g12):
    B = g12.shape[0]
    return pl.pallas_call(
        _alpha_same_kernel,
        out_shape=(jax.ShapeDtypeStruct((B, 1), jnp.float32),
                   jax.ShapeDtypeStruct((B, POLICY_SIZE), jnp.float32)),
    )(grids, g12, pp["t_conv1"], pp["t_rb"], pp["t_k1"], pp["vec"],
      pp["w_comb"], pp["w_g12"], pp["w_os"], pp["hv"])


def alpha_same_forward(pp, a_grid, a_pieces, a_b2b, a_combo, a_garbage,
                       o_grid, o_pieces, o_b2b, o_combo, o_garbage, color):
    B = a_grid.shape[0]
    f32 = jnp.float32
    # Shared-weight towers run as ONE batched pass: stack a on top of o.
    grids = jnp.concatenate([a_grid.reshape(B, ROWS * COLS),
                             o_grid.reshape(B, ROWS * COLS)],
                            axis=0).astype(f32)                      # (2B, 64)
    # Auxiliary feature groups packed into one lane-dense (B, 64) input.
    g12 = jnp.concatenate(
        [a_pieces.reshape(B, -1).astype(f32),
         a_b2b[:, None], a_combo[:, None], a_garbage[:, None],
         o_pieces.reshape(B, -1).astype(f32),
         o_b2b[:, None], o_combo[:, None], o_garbage[:, None],
         color[:, None], jnp.zeros((B, 1), f32)], axis=1).astype(f32)
    value_output, policy_output = alpha_same_call(pp, grids, g12)
    return value_output, policy_output


# ------------------------------- parameters ----------------------------------
def _bn_params(key, c):
    k1, k2, k3, k4 = jax.random.split(key, 4)
    gamma = 1.0 + 0.1 * jax.random.normal(k1, (c,), jnp.float32)
    beta = 0.1 * jax.random.normal(k2, (c,), jnp.float32)
    mean = 0.1 * jax.random.normal(k3, (c,), jnp.float32)
    var = 1.0 + 0.1 * jax.random.uniform(k4, (c,), jnp.float32)
    scale = gamma / jnp.sqrt(var + 1e-5)
    shift = beta - mean * scale
    return scale, shift


def _w(key, shape, fan_in):
    return jax.random.normal(key, shape, jnp.float32) / jnp.sqrt(float(fan_in))


def init_params(key):
    """Parameters in PyTorch-equivalent layout (conv weights stored HWIO)."""
    keys = iter(jax.random.split(key, 64))
    p = {}
    p["conv1_w"] = _w(next(keys), (5, 5, 1, FILTERS), 5 * 5 * 1)
    blocks = []
    for _ in range(BLOCKS):
        blk = {}
        blk["bn1_scale"], blk["bn1_shift"] = _bn_params(next(keys), FILTERS)
        blk["conv1_w"] = _w(next(keys), (3, 3, FILTERS, FILTERS), 9 * FILTERS)
        blk["bn2_scale"], blk["bn2_shift"] = _bn_params(next(keys), FILTERS)
        blk["conv2_w"] = _w(next(keys), (3, 3, FILTERS, FILTERS), 9 * FILTERS)
        blocks.append(blk)
    p["res_blocks"] = blocks
    p["bnA_scale"], p["bnA_shift"] = _bn_params(next(keys), FILTERS)
    p["kernel1_w"] = _w(next(keys), (1, 1, FILTERS, KERNELS), FILTERS)
    p["bnB_scale"], p["bnB_shift"] = _bn_params(next(keys), KERNELS)

    flat = ROWS * COLS * KERNELS
    p["os_w"] = _w(next(keys), (flat, O_SIDE_NEURONS), flat)
    p["os_b"] = 0.1 * jax.random.normal(next(keys), (O_SIDE_NEURONS,), jnp.float32)
    p["os_bn_scale"], p["os_bn_shift"] = _bn_params(next(keys), O_SIDE_NEURONS)

    p["p_w"] = _w(next(keys), (HEAD_INPUTS, POLICY_SIZE), HEAD_INPUTS)
    p["p_b"] = 0.1 * jax.random.normal(next(keys), (POLICY_SIZE,), jnp.float32)

    p["v1_w"] = _w(next(keys), (HEAD_INPUTS, VALUE_HEAD_NEURONS), HEAD_INPUTS)
    p["v1_b"] = 0.1 * jax.random.normal(next(keys), (VALUE_HEAD_NEURONS,), jnp.float32)
    p["v1_bn_scale"], p["v1_bn_shift"] = _bn_params(next(keys), VALUE_HEAD_NEURONS)
    p["v2_w"] = _w(next(keys), (VALUE_HEAD_NEURONS, 1), VALUE_HEAD_NEURONS)
    p["v2_b"] = 0.1 * jax.random.normal(next(keys), (1,), jnp.float32)
    return p


def _conv_toeplitz(w_hwio):
    """Dense Toeplitz matrix for a 'same' stride-1 conv on an 8x8 grid.

    Input layout:  lane = (hi*COLS + wi)*Cin + ci
    Output layout: lane = (ho*COLS + wo)*Cout + co
    """
    w = np.asarray(w_hwio, np.float32)
    k, _, cin, cout = w.shape
    pad = k // 2
    T = np.zeros((ROWS * COLS * cin, ROWS * COLS * cout), np.float32)
    for ho in range(ROWS):
        for wo in range(COLS):
            o = (ho * COLS + wo) * cout
            for kh in range(k):
                hi = ho + kh - pad
                if not (0 <= hi < ROWS):
                    continue
                for kw in range(k):
                    wi = wo + kw - pad
                    if not (0 <= wi < COLS):
                        continue
                    i = (hi * COLS + wi) * cin
                    T[i:i + cin, o:o + cout] = w[kh, kw]
    return T


def prepare_params(p):
    """One-time repack: lower every conv to a Toeplitz matmul, fold BN into
    tiled scale/shift rows, permute head/o-side weight rows from the PyTorch
    NCHW-flatten order to the kernel's NHWC-flatten order, and pack all tiny
    vectors into two lane-dense blocks."""
    HW = ROWS * COLS
    pp = {}

    # --- conv Toeplitz matrices ---------------------------------------------
    pp["t_conv1"] = jnp.asarray(_conv_toeplitz(p["conv1_w"]))         # (64, 512)
    t_rb_list = []
    for b in p["res_blocks"]:
        t_rb_list.append(_conv_toeplitz(b["conv1_w"]))
        t_rb_list.append(_conv_toeplitz(b["conv2_w"]))
    pp["t_rb"] = jnp.asarray(np.concatenate(t_rb_list, axis=0))       # (2048, 512)
    pp["t_k1"] = jnp.asarray(_conv_toeplitz(p["kernel1_w"]))          # (512, 256)

    # --- tiled BatchNorm scale/shift rows ------------------------------------
    def _tile(v):
        return np.tile(np.asarray(v, np.float32), HW)
    vec = np.zeros((4 * BLOCKS + 4, HW * FILTERS), np.float32)
    for i, b in enumerate(p["res_blocks"]):
        vec[4 * i + 0] = _tile(b["bn1_scale"])
        vec[4 * i + 1] = _tile(b["bn1_shift"])
        vec[4 * i + 2] = _tile(b["bn2_scale"])
        vec[4 * i + 3] = _tile(b["bn2_shift"])
    vec[4 * BLOCKS + 0] = _tile(p["bnA_scale"])
    vec[4 * BLOCKS + 1] = _tile(p["bnA_shift"])
    vec[4 * BLOCKS + 2, :HW * KERNELS] = _tile(p["bnB_scale"])
    vec[4 * BLOCKS + 3, :HW * KERNELS] = _tile(p["bnB_shift"])
    pp["vec"] = jnp.asarray(vec)                                      # (12, 512)

    # --- head weights ----------------------------------------------------------
    # Row permutation: kernel NHWC flat index j = hw*K + c  <-  PyTorch c*HW + hw
    n_flat = HW * KERNELS
    idx = np.arange(n_flat)
    perm = (idx % KERNELS) * HW + idx // KERNELS
    wc = np.concatenate([np.asarray(p["p_w"], np.float32),
                         np.asarray(p["v1_w"], np.float32)], axis=1)  # (335, 32)
    g1_hi = n_flat + (2 + PREVIEWS) * NUM_MINOS + 3                   # 287
    os_hi = g1_hi + O_SIDE_NEURONS                                    # 303
    w_aflat = wc[:n_flat][perm]                                       # (256, 32)
    os_in = np.asarray(p["os_w"], np.float32)[perm]                   # (256, 16)
    pp["w_comb"] = jnp.asarray(np.concatenate([w_aflat, os_in], axis=1))  # (256,48)
    pp["w_g12"] = jnp.asarray(np.concatenate(
        [wc[n_flat:g1_hi], wc[os_hi:], np.zeros((1, 32), np.float32)],
        axis=0))                                                      # (64, 32)
    pp["w_os"] = jnp.asarray(wc[g1_hi:os_hi])                         # (16, 32)

    # --- packed head vectors --------------------------------------------------
    hv = np.zeros((8, 32), np.float32)
    os_b = np.asarray(p["os_b"], np.float32)
    os_s = np.asarray(p["os_bn_scale"], np.float32)
    os_t = np.asarray(p["os_bn_shift"], np.float32)
    hv[0, :O_SIDE_NEURONS] = os_s
    hv[1, :O_SIDE_NEURONS] = os_b * os_s + os_t     # Linear bias folded into BN
    hv[2, :] = np.concatenate([np.asarray(p["p_b"], np.float32),
                               np.asarray(p["v1_b"], np.float32)])
    hv[3, :VALUE_HEAD_NEURONS] = np.asarray(p["v1_bn_scale"], np.float32)
    hv[4, :VALUE_HEAD_NEURONS] = np.asarray(p["v1_bn_shift"], np.float32)
    hv[5, :VALUE_HEAD_NEURONS] = np.asarray(p["v2_w"], np.float32).reshape(-1)
    hv[6, 0] = np.asarray(p["v2_b"], np.float32).reshape(-1)[0]
    pp["hv"] = jnp.asarray(hv)
    return pp


# ----------------------- pure-JAX (XLA) reference ----------------------------
def _reference_forward(p, a_grid, a_pieces, a_b2b, a_combo, a_garbage,
                       o_grid, o_pieces, o_b2b, o_combo, o_garbage, color):
    """Faithful replica of the PyTorch module (eval mode) using XLA convs."""
    f32 = jnp.float32
    hi = lax.Precision.HIGHEST

    def conv(x, w):
        return lax.conv_general_dilated(
            x, w, window_strides=(1, 1), padding="SAME",
            dimension_numbers=("NCHW", "HWIO", "NCHW"), precision=hi)

    def bn(x, s, t):
        return x * s[None, :, None, None] + t[None, :, None, None]

    def tower(g):
        x = conv(g.astype(f32), p["conv1_w"])
        for b in p["res_blocks"]:
            res = x
            h = conv(jax.nn.relu(bn(x, b["bn1_scale"], b["bn1_shift"])), b["conv1_w"])
            h = conv(jax.nn.relu(bn(h, b["bn2_scale"], b["bn2_shift"])), b["conv2_w"])
            x = h + res
        x = jax.nn.relu(bn(x, p["bnA_scale"], p["bnA_shift"]))
        x = conv(x, p["kernel1_w"])
        x = jax.nn.relu(bn(x, p["bnB_scale"], p["bnB_shift"]))
        return x.reshape(x.shape[0], -1)                 # NCHW flatten (c*HW+hw)

    B = a_grid.shape[0]
    a_flat = tower(a_grid)
    o_flat = tower(o_grid)
    o_side = jnp.dot(o_flat, p["os_w"], precision=hi) + p["os_b"]
    o_side = jax.nn.relu(o_side * p["os_bn_scale"] + p["os_bn_shift"])
    feats = jnp.concatenate(
        [a_flat, a_pieces.reshape(B, -1).astype(f32), a_b2b[:, None],
         a_combo[:, None], a_garbage[:, None], o_side,
         o_pieces.reshape(B, -1).astype(f32), o_b2b[:, None], o_combo[:, None],
         o_garbage[:, None], color[:, None]], axis=1)
    policy = jax.nn.sigmoid(jnp.dot(feats, p["p_w"], precision=hi) + p["p_b"])
    v = jnp.dot(feats, p["v1_w"], precision=hi) + p["v1_b"]
    v = jax.nn.relu(v * p["v1_bn_scale"] + p["v1_bn_shift"])
    v = jnp.dot(v, p["v2_w"], precision=hi) + p["v2_b"]
    value = jnp.tanh(v) if USE_TANH else jax.nn.sigmoid(v)
    return value, policy


# ---------------------------------- main --------------------------------------
if __name__ == "__main__":
    key = jax.random.PRNGKey(0)
    kp, *kin = jax.random.split(key, 13)
    params = init_params(kp)
    pp = prepare_params(params)

    a_grid = (jax.random.uniform(kin[0], (BATCH, 1, ROWS, COLS)) > 0.5).astype(jnp.float32)
    o_grid = (jax.random.uniform(kin[1], (BATCH, 1, ROWS, COLS)) > 0.5).astype(jnp.float32)
    a_pieces = jax.random.normal(kin[2], (BATCH, 2 + PREVIEWS, NUM_MINOS), jnp.float32)
    o_pieces = jax.random.normal(kin[3], (BATCH, 2 + PREVIEWS, NUM_MINOS), jnp.float32)
    a_b2b = jax.random.normal(kin[4], (BATCH,), jnp.float32)
    a_combo = jax.random.normal(kin[5], (BATCH,), jnp.float32)
    a_garbage = jax.random.normal(kin[6], (BATCH,), jnp.float32)
    o_b2b = jax.random.normal(kin[7], (BATCH,), jnp.float32)
    o_combo = jax.random.normal(kin[8], (BATCH,), jnp.float32)
    o_garbage = jax.random.normal(kin[9], (BATCH,), jnp.float32)
    color = jax.random.normal(kin[10], (BATCH,), jnp.float32)

    fwd = jax.jit(alpha_same_forward)
    value_out, policy_out = fwd(
        pp, a_grid, a_pieces, a_b2b, a_combo, a_garbage,
        o_grid, o_pieces, o_b2b, o_combo, o_garbage, color)
    jax.block_until_ready((value_out, policy_out))

    assert value_out.shape == (BATCH, 1)
    assert policy_out.shape == (BATCH, POLICY_SIZE)
    assert bool(jnp.all(jnp.isfinite(value_out)))
    assert bool(jnp.all(jnp.isfinite(policy_out)))
    assert bool(jnp.all(jnp.abs(value_out) <= 1.0))
    assert bool(jnp.all((policy_out >= 0.0) & (policy_out <= 1.0)))

    # Correctness check vs a pure-JAX replica of the PyTorch module.
    val_ref, pol_ref = _reference_forward(
        params, a_grid, a_pieces, a_b2b, a_combo, a_garbage,
        o_grid, o_pieces, o_b2b, o_combo, o_garbage, color)
    np.testing.assert_allclose(np.asarray(value_out), np.asarray(val_ref),
                               rtol=5e-2, atol=5e-2)
    np.testing.assert_allclose(np.asarray(policy_out), np.asarray(pol_ref),
                               rtol=5e-2, atol=5e-2)
    print("KERNEL_OK")
</pallas_src>

<mosaic_0001>
module attributes {stable_mosaic.version = 11 : i64} {
  func.func @_alpha_same_kernel(%arg0: memref<4x64xf32, #tpu.memory_space<vmem>>, %arg1: memref<2x64xf32, #tpu.memory_space<vmem>>, %arg2: memref<64x512xf32, #tpu.memory_space<vmem>>, %arg3: memref<2048x512xf32, #tpu.memory_space<vmem>>, %arg4: memref<512x256xf32, #tpu.memory_space<vmem>>, %arg5: memref<12x512xf32, #tpu.memory_space<vmem>>, %arg6: memref<256x48xf32, #tpu.memory_space<vmem>>, %arg7: memref<64x32xf32, #tpu.memory_space<vmem>>, %arg8: memref<16x32xf32, #tpu.memory_space<vmem>>, %arg9: memref<8x32xf32, #tpu.memory_space<vmem>>, %arg10: memref<2x1xf32, #tpu.memory_space<vmem>>, %arg11: memref<2x16xf32, #tpu.memory_space<vmem>>) attributes {dimension_semantics = [], scalar_prefetch = 0 : i64, scratch_operands = 0 : i64, tpu.core_type = #tpu.core_type<tc>} {
    %c0 = arith.constant 0 : index
    %c0_0 = arith.constant 0 : index
    %0 = vector.load %arg0[%c0, %c0_0] : memref<4x64xf32, #tpu.memory_space<vmem>>, vector<4x64xf32>
    %c0_1 = arith.constant 0 : index
    %c0_2 = arith.constant 0 : index
    %1 = vector.load %arg2[%c0_1, %c0_2] : memref<64x512xf32, #tpu.memory_space<vmem>>, vector<64x512xf32>
    %cst = arith.constant dense<0.000000e+00> : vector<4x512xf32>
    %2 = tpu.matmul %0, %1, %cst {dimension_numbers = #tpu.dot_dimension_numbers<[1], [0], [0], [1], [0, 0, 1, 1], [], []>} : vector<4x64xf32>, vector<64x512xf32>, vector<4x512xf32> -> vector<4x512xf32>
    %c0_3 = arith.constant 0 : index
    %c0_4 = arith.constant 0 : index
    %3 = vector.load %arg5[%c0_3, %c0_4] : memref<12x512xf32, #tpu.memory_space<vmem>>, vector<1x512xf32>
    %4 = vector.broadcast %3 : vector<1x512xf32> to vector<4x512xf32>
    %5 = arith.mulf %2, %4 : vector<4x512xf32>
    %c1 = arith.constant 1 : index
    %c0_5 = arith.constant 0 : index
    %6 = vector.load %arg5[%c1, %c0_5] : memref<12x512xf32, #tpu.memory_space<vmem>>, vector<1x512xf32>
    %7 = vector.broadcast %6 : vector<1x512xf32> to vector<4x512xf32>
    %8 = arith.addf %5, %7 : vector<4x512xf32>
    %cst_6 = arith.constant 0.000000e+00 : f32
    %9 = vector.broadcast %cst_6 : f32 to vector<4x512xf32>
    %10 = arith.maximumf %8, %9 : vector<4x512xf32>
    %c0_7 = arith.constant 0 : index
    %c0_8 = arith.constant 0 : index
    %11 = vector.load %arg3[%c0_7, %c0_8] : memref<2048x512xf32, #tpu.memory_space<vmem>>, vector<512x512xf32>
    %cst_9 = arith.constant dense<0.000000e+00> : vector<4x512xf32>
    %12 = tpu.matmul %10, %11, %cst_9 {dimension_numbers = #tpu.dot_dimension_numbers<[1], [0], [0], [1], [0, 0, 1, 1], [], []>} : vector<4x512xf32>, vector<512x512xf32>, vector<4x512xf32> -> vector<4x512xf32>
    %c2 = arith.constant 2 : index
    %c0_10 = arith.constant 0 : index
    %13 = vector.load %arg5[%c2, %c0_10] : memref<12x512xf32, #tpu.memory_space<vmem>>, vector<1x512xf32>
    %14 = vector.broadcast %13 : vector<1x512xf32> to vector<4x512xf32>
    %15 = arith.mulf %12, %14 : vector<4x512xf32>
    %c3 = arith.constant 3 : index
    %c0_11 = arith.constant 0 : index
    %16 = vector.load %arg5[%c3, %c0_11] : memref<12x512xf32, #tpu.memory_space<vmem>>, vector<1x512xf32>
    %17 = vector.broadcast %16 : vector<1x512xf32> to vector<4x512xf32>
    %18 = arith.addf %15, %17 : vector<4x512xf32>
    %cst_12 = arith.constant 0.000000e+00 : f32
    %19 = vector.broadcast %cst_12 : f32 to vector<4x512xf32>
    %20 = arith.maximumf %18, %19 : vector<4x512xf32>
    %c512 = arith.constant 512 : index
    %c0_13 = arith.constant 0 : index
    %21 = vector.load %arg3[%c512, %c0_13] : memref<2048x512xf32, #tpu.memory_space<vmem>>, vector<512x512xf32>
    %cst_14 = arith.constant dense<0.000000e+00> : vector<4x512xf32>
    %22 = tpu.matmul %20, %21, %cst_14 {dimension_numbers = #tpu.dot_dimension_numbers<[1], [0], [0], [1], [0, 0, 1, 1], [], []>} : vector<4x512xf32>, vector<512x512xf32>, vector<4x512xf32> -> vector<4x512xf32>
    %23 = arith.addf %22, %2 : vector<4x512xf32>
    %c4 = arith.constant 4 : index
    %c0_15 = arith.constant 0 : index
    %24 = vector.load %arg5[%c4, %c0_15] : memref<12x512xf32, #tpu.memory_space<vmem>>, vector<1x512xf32>
    %25 = vector.broadcast %24 : vector<1x512xf32> to vector<4x512xf32>
    %26 = arith.mulf %23, %25 : vector<4x512xf32>
    %c5 = arith.constant 5 : index
    %c0_16 = arith.constant 0 : index
    %27 = vector.load %arg5[%c5, %c0_16] : memref<12x512xf32, #tpu.memory_space<vmem>>, vector<1x512xf32>
    %28 = vector.broadcast %27 : vector<1x512xf32> to vector<4x512xf32>
    %29 = arith.addf %26, %28 : vector<4x512xf32>
    %cst_17 = arith.constant 0.000000e+00 : f32
    %30 = vector.broadcast %cst_17 : f32 to vector<4x512xf32>
    %31 = arith.maximumf %29, %30 : vector<4x512xf32>
    %c1024 = arith.constant 1024 : index
    %c0_18 = arith.constant 0 : index
    %32 = vector.load %arg3[%c1024, %c0_18] : memref<2048x512xf32, #tpu.memory_space<vmem>>, vector<512x512xf32>
    %cst_19 = arith.constant dense<0.000000e+00> : vector<4x512xf32>
    %33 = tpu.matmul %31, %32, %cst_19 {dimension_numbers = #tpu.dot_dimension_numbers<[1], [0], [0], [1], [0, 0, 1, 1], [], []>} : vector<4x512xf32>, vector<512x512xf32>, vector<4x512xf32> -> vector<4x512xf32>
    %c6 = arith.constant 6 : index
    %c0_20 = arith.constant 0 : index
    %34 = vector.load %arg5[%c6, %c0_20] : memref<12x512xf32, #tpu.memory_space<vmem>>, vector<1x512xf32>
    %35 = vector.broadcast %34 : vector<1x512xf32> to vector<4x512xf32>
    %36 = arith.mulf %33, %35 : vector<4x512xf32>
    %c7 = arith.constant 7 : index
    %c0_21 = arith.constant 0 : index
    %37 = vector.load %arg5[%c7, %c0_21] : memref<12x512xf32, #tpu.memory_space<vmem>>, vector<1x512xf32>
    %38 = vector.broadcast %37 : vector<1x512xf32> to vector<4x512xf32>
    %39 = arith.addf %36, %38 : vector<4x512xf32>
    %cst_22 = arith.constant 0.000000e+00 : f32
    %40 = vector.broadcast %cst_22 : f32 to vector<4x512xf32>
    %41 = arith.maximumf %39, %40 : vector<4x512xf32>
    %c1536 = arith.constant 1536 : index
    %c0_23 = arith.constant 0 : index
    %42 = vector.load %arg3[%c1536, %c0_23] : memref<2048x512xf32, #tpu.memory_space<vmem>>, vector<512x512xf32>
    %cst_24 = arith.constant dense<0.000000e+00> : vector<4x512xf32>
    %43 = tpu.matmul %41, %42, %cst_24 {dimension_numbers = #tpu.dot_dimension_numbers<[1], [0], [0], [1], [0, 0, 1, 1], [], []>} : vector<4x512xf32>, vector<512x512xf32>, vector<4x512xf32> -> vector<4x512xf32>
    %44 = arith.addf %43, %23 : vector<4x512xf32>
    %c8 = arith.constant 8 : index
    %c0_25 = arith.constant 0 : index
    %45 = vector.load %arg5[%c8, %c0_25] : memref<12x512xf32, #tpu.memory_space<vmem>>, vector<1x512xf32>
    %46 = vector.broadcast %45 : vector<1x512xf32> to vector<4x512xf32>
    %47 = arith.mulf %44, %46 : vector<4x512xf32>
    %c9 = arith.constant 9 : index
    %c0_26 = arith.constant 0 : index
    %48 = vector.load %arg5[%c9, %c0_26] : memref<12x512xf32, #tpu.memory_space<vmem>>, vector<1x512xf32>
    %49 = vector.broadcast %48 : vector<1x512xf32> to vector<4x512xf32>
    %50 = arith.addf %47, %49 : vector<4x512xf32>
    %cst_27 = arith.constant 0.000000e+00 : f32
    %51 = vector.broadcast %cst_27 : f32 to vector<4x512xf32>
    %52 = arith.maximumf %50, %51 : vector<4x512xf32>
    %c0_28 = arith.constant 0 : index
    %c0_29 = arith.constant 0 : index
    %53 = vector.load %arg4[%c0_28, %c0_29] : memref<512x256xf32, #tpu.memory_space<vmem>>, vector<512x256xf32>
    %cst_30 = arith.constant dense<0.000000e+00> : vector<4x256xf32>
    %54 = tpu.matmul %52, %53, %cst_30 {dimension_numbers = #tpu.dot_dimension_numbers<[1], [0], [0], [1], [0, 0, 1, 1], [], []>} : vector<4x512xf32>, vector<512x256xf32>, vector<4x256xf32> -> vector<4x256xf32>
    %c10 = arith.constant 10 : index
    %c0_31 = arith.constant 0 : index
    %55 = vector.load %arg5[%c10, %c0_31] : memref<12x512xf32, #tpu.memory_space<vmem>>, vector<1x256xf32>
    %56 = vector.broadcast %55 : vector<1x256xf32> to vector<4x256xf32>
    %57 = arith.mulf %54, %56 : vector<4x256xf32>
    %c11 = arith.constant 11 : index
    %c0_32 = arith.constant 0 : index
    %58 = vector.load %arg5[%c11, %c0_32] : memref<12x512xf32, #tpu.memory_space<vmem>>, vector<1x256xf32>
    %59 = vector.broadcast %58 : vector<1x256xf32> to vector<4x256xf32>
    %60 = arith.addf %57, %59 : vector<4x256xf32>
    %cst_33 = arith.constant 0.000000e+00 : f32
    %61 = vector.broadcast %cst_33 : f32 to vector<4x256xf32>
    %62 = arith.maximumf %60, %61 : vector<4x256xf32>
    %c0_34 = arith.constant 0 : index
    %c0_35 = arith.constant 0 : index
    %63 = vector.load %arg6[%c0_34, %c0_35] : memref<256x48xf32, #tpu.memory_space<vmem>>, vector<256x48xf32>
    %cst_36 = arith.constant dense<0.000000e+00> : vector<4x48xf32>
    %64 = tpu.matmul %62, %63, %cst_36 {dimension_numbers = #tpu.dot_dimension_numbers<[1], [0], [0], [1], [0, 0, 1, 1], [], []>} : vector<4x256xf32>, vector<256x48xf32>, vector<4x48xf32> -> vector<4x48xf32>
    %65 = vector.extract_strided_slice %64 {offsets = [0, 0], sizes = [2, 32], strides = [1, 1]} : vector<4x48xf32> to vector<2x32xf32>
    %66 = vector.extract_strided_slice %64 {offsets = [2, 32], sizes = [2, 16], strides = [1, 1]} : vector<4x48xf32> to vector<2x16xf32>
    %c0_37 = arith.constant 0 : index
    %c0_38 = arith.constant 0 : index
    %67 = vector.load %arg9[%c0_37, %c0_38] : memref<8x32xf32, #tpu.memory_space<vmem>>, vector<1x16xf32>
    %68 = vector.broadcast %67 : vector<1x16xf32> to vector<2x16xf32>
    %69 = arith.mulf %66, %68 : vector<2x16xf32>
    %c1_39 = arith.constant 1 : index
    %c0_40 = arith.constant 0 : index
    %70 = vector.load %arg9[%c1_39, %c0_40] : memref<8x32xf32, #tpu.memory_space<vmem>>, vector<1x16xf32>
    %71 = vector.broadcast %70 : vector<1x16xf32> to vector<2x16xf32>
    %72 = arith.addf %69, %71 : vector<2x16xf32>
    %cst_41 = arith.constant 0.000000e+00 : f32
    %73 = vector.broadcast %cst_41 : f32 to vector<2x16xf32>
    %74 = arith.maximumf %72, %73 : vector<2x16xf32>
    %c0_42 = arith.constant 0 : index
    %c0_43 = arith.constant 0 : index
    %75 = vector.load %arg1[%c0_42, %c0_43] : memref<2x64xf32, #tpu.memory_space<vmem>>, vector<2x64xf32>
    %c0_44 = arith.constant 0 : index
    %c0_45 = arith.constant 0 : index
    %76 = vector.load %arg7[%c0_44, %c0_45] : memref<64x32xf32, #tpu.memory_space<vmem>>, vector<64x32xf32>
    %cst_46 = arith.constant dense<0.000000e+00> : vector<2x32xf32>
    %77 = tpu.matmul %75, %76, %cst_46 {dimension_numbers = #tpu.dot_dimension_numbers<[1], [0], [0], [1], [0, 0, 1, 1], [], []>} : vector<2x64xf32>, vector<64x32xf32>, vector<2x32xf32> -> vector<2x32xf32>
    %78 = arith.addf %65, %77 : vector<2x32xf32>
    %c0_47 = arith.constant 0 : index
    %c0_48 = arith.constant 0 : index
    %79 = vector.load %arg8[%c0_47, %c0_48] : memref<16x32xf32, #tpu.memory_space<vmem>>, vector<16x32xf32>
    %cst_49 = arith.constant dense<0.000000e+00> : vector<2x32xf32>
    %80 = tpu.matmul %74, %79, %cst_49 {dimension_numbers = #tpu.dot_dimension_numbers<[1], [0], [0], [1], [0, 0, 1, 1], [], []>} : vector<2x16xf32>, vector<16x32xf32>, vector<2x32xf32> -> vector<2x32xf32>
    %81 = arith.addf %78, %80 : vector<2x32xf32>
    %c2_50 = arith.constant 2 : index
    %c0_51 = arith.constant 0 : index
    %82 = vector.load %arg9[%c2_50, %c0_51] : memref<8x32xf32, #tpu.memory_space<vmem>>, vector<1x32xf32>
    %83 = vector.broadcast %82 : vector<1x32xf32> to vector<2x32xf32>
    %84 = arith.addf %81, %83 : vector<2x32xf32>
    %85 = vector.extract_strided_slice %84 {offsets = [0, 0], sizes = [2, 16], strides = [1, 1]} : vector<2x32xf32> to vector<2x16xf32>
    %86 = arith.negf %85 : vector<2x16xf32>
    %87 = math.exp %86 : vector<2x16xf32>
    %cst_52 = arith.constant 1.000000e+00 : f32
    %88 = vector.broadcast %cst_52 : f32 to vector<2x16xf32>
    %89 = arith.addf %88, %87 : vector<2x16xf32>
    %90 = arith.divf %88, %89 : vector<2x16xf32>
    %c0_53 = arith.constant 0 : index
    %c0_54 = arith.constant 0 : index
    %91 = vector.load %arg11[%c0_53, %c0_54] : memref<2x16xf32, #tpu.memory_space<vmem>>, vector<2x16xf32>
    tpu.vector_store %arg11[%c0_53, %c0_54], %90 {strides = array<i32>} : memref<2x16xf32, #tpu.memory_space<vmem>>, vector<2x16xf32>,
    %92 = vector.extract_strided_slice %84 {offsets = [0, 16], sizes = [2, 16], strides = [1, 1]} : vector<2x32xf32> to vector<2x16xf32>
    %c3_55 = arith.constant 3 : index
    %c0_56 = arith.constant 0 : index
    %93 = vector.load %arg9[%c3_55, %c0_56] : memref<8x32xf32, #tpu.memory_space<vmem>>, vector<1x16xf32>
    %94 = vector.broadcast %93 : vector<1x16xf32> to vector<2x16xf32>
    %95 = arith.mulf %92, %94 : vector<2x16xf32>
    %c4_57 = arith.constant 4 : index
    %c0_58 = arith.constant 0 : index
    %96 = vector.load %arg9[%c4_57, %c0_58] : memref<8x32xf32, #tpu.memory_space<vmem>>, vector<1x16xf32>
    %97 = vector.broadcast %96 : vector<1x16xf32> to vector<2x16xf32>
    %98 = arith.addf %95, %97 : vector<2x16xf32>
    %cst_59 = arith.constant 0.000000e+00 : f32
    %99 = vector.broadcast %cst_59 : f32 to vector<2x16xf32>
    %100 = arith.maximumf %98, %99 : vector<2x16xf32>
    %c5_60 = arith.constant 5 : index
    %c0_61 = arith.constant 0 : index
    %101 = vector.load %arg9[%c5_60, %c0_61] : memref<8x32xf32, #tpu.memory_space<vmem>>, vector<1x16xf32>
    %102 = vector.broadcast %101 : vector<1x16xf32> to vector<2x16xf32>
    %103 = arith.mulf %100, %102 : vector<2x16xf32>
    %cst_62 = arith.constant dense<0.000000e+00> : vector<2xf32>
    %104 = vector.multi_reduction <add>, %103, %cst_62 [1] : vector<2x16xf32> to vector<2xf32>
    %105 = vector.shape_cast %104 : vector<2xf32> to vector<2x1xf32>
    %c6_63 = arith.constant 6 : index
    %c0_64 = arith.constant 0 : index
    %106 = vector.load %arg9[%c6_63, %c0_64] : memref<8x32xf32, #tpu.memory_space<vmem>>, vector<1x1xf32>
    %107 = vector.broadcast %106 : vector<1x1xf32> to vector<2x1xf32>
    %108 = arith.addf %105, %107 : vector<2x1xf32>
    %109 = math.tanh %108 : vector<2x1xf32>
    %c0_65 = arith.constant 0 : index
    %c0_66 = arith.constant 0 : index
    %110 = vector.load %arg10[%c0_65, %c0_66] : memref<2x1xf32, #tpu.memory_space<vmem>>, vector<2x1xf32>
    tpu.vector_store %arg10[%c0_65, %c0_66], %109 {strides = array<i32>} : memref<2x1xf32, #tpu.memory_space<vmem>>, vector<2x1xf32>,
    return
  }
}

</mosaic_0001>

<llo_original>
// kernel: alpha_same_forward.1
$region0: #{alpha_same_forward.1}
  #allocation0 [shape = 'u32[]', space=smem, size = 0x4, offset = 0x4, fixed_abs, tag = 'smem constant byte address 0x4 - core index']
  #allocation1 [shape = 'u32[144,128]{1,0:T(1,128)}', space=vmem, size = 0x12000, scoped, tag = 'internal scratch']
  %s0 = inlined_call_operand.vmem [shape: f32[4,64], index: 0, kind: input, shape index: {}]
  %s1 = inlined_call_operand.vmem [shape: f32[2,64], index: 1, kind: input, shape index: {}]
  %s2 = inlined_call_operand.hbm [shape: f32[64,512], index: 2, kind: input, shape index: {}]
  %s3 = inlined_call_operand.hbm [shape: f32[2048,512], index: 3, kind: input, shape index: {}]
  %s4 = inlined_call_operand.hbm [shape: f32[512,256], index: 4, kind: input, shape index: {}]
  %s5 = inlined_call_operand.hbm [shape: f32[12,512], index: 5, kind: input, shape index: {}]
  %s6 = inlined_call_operand.vmem [shape: f32[256,48], index: 6, kind: input, shape index: {}]
  %s7 = inlined_call_operand.vmem [shape: f32[64,32], index: 7, kind: input, shape index: {}]
  %s8 = inlined_call_operand.hbm [shape: f32[16,32], index: 8, kind: input, shape index: {}]
  %s9 = inlined_call_operand.hbm [shape: f32[8,32], index: 9, kind: input, shape index: {}]
  %s10 = inlined_call_operand.vmem [shape: f32[2,1], index: 10, kind: output, shape index: {0}]
  %s11 = inlined_call_operand.hbm [shape: f32[2,16], index: 11, kind: output, shape index: {1}]
  %12 = xla_tuple %s10, %s11
  %s13 = sld [smem:[#allocation0]]
  $region82: #{alpha_same_forward.1} parent=0
    _
  %s15 = ssub.s32 1, %s13
  %s16 = scalar_select 0, %s15, %s13
  $region1: #{alpha_same_forward.1} parent=0
    #allocation2 [shape = 'u8[131072]{0}', space=vmem, size = 0x20000, scoped, tag = 'input window, operand 2, single buffered']
    #allocation3 [shape = 's32[1]{0}', space=sflag, size = 0x4, scoped, tag = 'scoped memory for alpha_same_forward.1']
    #allocation4 [shape = 's32[1]{0}', space=sflag, size = 0x4, scoped, tag = 'scoped memory for alpha_same_forward.1']
    #allocation5 [shape = 'u8[4194304]{0}', space=vmem, size = 0x400000, scoped, tag = 'input window, operand 3, single buffered']
    #allocation6 [shape = 's32[1]{0}', space=sflag, size = 0x4, scoped, tag = 'scoped memory for alpha_same_forward.1']
    #allocation7 [shape = 'u8[524288]{0}', space=vmem, size = 0x80000, scoped, tag = 'input window, operand 4, single buffered']
    #allocation8 [shape = 'u8[32768]{0}', space=vmem, size = 0x8000, scoped, tag = 'input window, operand 5, single buffered']
    #allocation9 [shape = 's32[1]{0}', space=sflag, size = 0x4, scoped, tag = 'scoped memory for alpha_same_forward.1']
    #allocation10 [shape = 'u8[8192]{0}', space=vmem, size = 0x2000, scoped, tag = 'input window, operand 8, single buffered']
    #allocation11 [shape = 'u8[4096]{0}', space=vmem, size = 0x1000, scoped, tag = 'input window, operand 9, single buffered']
    #allocation12 [shape = 's32[1]{0}', space=sflag, size = 0x4, scoped, tag = 'scoped memory for alpha_same_forward.1']
    #allocation13 [shape = 'u8[1024]{0}', space=vmem, size = 0x400, scoped, tag = 'output window, operand 1, single buffered']
    %17 = vsyncpa [#allocation3], 0
    %18 = vsyncpa [#allocation6], 0
    %19 = vsyncpa [#allocation9], 0
    %20 = vsyncpa [#allocation12], 0
    %21 = vsyncpa [#allocation4], 0
    // Predicated region
    $region2: #{alpha_same_forward.1} parent=1 // pred_check
      _
    $region3: #{alpha_same_forward.1} parent=1 // pred_check_branch
      %23 = sbr.rel (0) target = $region5
    $region4: #{alpha_same_forward.1} parent=1 // pred_region
      _
    $region5: #{alpha_same_forward.1} parent=1 // pred_fallthru
      _
    // Predicated region
    $region6: #{alpha_same_forward.1} parent=1 // pred_check
      _
    $region7: #{alpha_same_forward.1} parent=1 // pred_check_branch
      %25 = sbr.rel (0) target = $region9
    $region8: #{alpha_same_forward.1} parent=1 // pred_region
      _
    $region9: #{alpha_same_forward.1} parent=1 // pred_fallthru
      _
    // Predicated region
    $region10: #{alpha_same_forward.1} parent=1 // pred_check
      _
    $region11: #{alpha_same_forward.1} parent=1 // pred_check_branch
      %27 = sbr.rel (0) target = $region13
    $region12: #{alpha_same_forward.1} parent=1 // pred_region
      %s29 = ssub.s32 4096, 4096
      %30 = vsyncadd [#allocation3], %s29
      %s31 = sshll.u32 [#allocation2], 4
      %s32 = int_to_ptr.vmem [resolvable:$true] %s31
      %37 = dma.hbm_to_vmem [thread:$0]  %s2, 4096, %s32, [#allocation3], 512, 512, 32
    $region13: #{alpha_same_forward.1} parent=1 // pred_fallthru
      _
    // Predicated region
    $region14: #{alpha_same_forward.1} parent=1 // pred_check
      _
    $region15: #{alpha_same_forward.1} parent=1 // pred_check_branch
      %39 = sbr.rel (0) target = $region17
    $region16: #{alpha_same_forward.1} parent=1 // pred_region
      %s41 = ssub.s32 131072, 131072
      %42 = vsyncadd [#allocation6], %s41
      %s43 = sshll.u32 [#allocation5], 4
      %s44 = int_to_ptr.vmem [resolvable:$true] %s43
      %49 = dma.hbm_to_vmem [thread:$0]  %s3, 131072, %s44, [#allocation6], 512, 512, 32
    $region17: #{alpha_same_forward.1} parent=1 // pred_fallthru
      _
    // Predicated region
    $region18: #{alpha_same_forward.1} parent=1 // pred_check
      _
    $region19: #{alpha_same_forward.1} parent=1 // pred_check_branch
      %51 = sbr.rel (0) target = $region21
    $region20: #{alpha_same_forward.1} parent=1 // pred_region
      %s53 = ssub.s32 16384, 16384
      %54 = vsyncadd [#allocation6], %s53
      %s55 = sshll.u32 [#allocation7], 4
      %s56 = int_to_ptr.vmem [resolvable:$true] %s55
      %61 = dma.hbm_to_vmem [thread:$0]  %s4, 16384, %s56, [#allocation6], 256, 256, 16
    $region21: #{alpha_same_forward.1} parent=1 // pred_fallthru
      _
    // Predicated region
    $region22: #{alpha_same_forward.1} parent=1 // pred_check
      _
    $region23: #{alpha_same_forward.1} parent=1 // pred_check_branch
      %63 = sbr.rel (0) target = $region25
    $region24: #{alpha_same_forward.1} parent=1 // pred_region
      %s65 = ssub.s32 1024, 1024
      %66 = vsyncadd [#allocation9], %s65
      %s67 = sshll.u32 [#allocation8], 4
      %s68 = int_to_ptr.vmem [resolvable:$true] %s67
      %73 = dma.hbm_to_vmem [thread:$0]  %s5, 1024, %s68, [#allocation9], 512, 512, 32
    $region25: #{alpha_same_forward.1} parent=1 // pred_fallthru
      _
    // Predicated region
    $region26: #{alpha_same_forward.1} parent=1 // pred_check
      _
    $region27: #{alpha_same_forward.1} parent=1 // pred_check_branch
      %75 = sbr.rel (0) target = $region29
    $region28: #{alpha_same_forward.1} parent=1 // pred_region
      _
    $region29: #{alpha_same_forward.1} parent=1 // pred_fallthru
      _
    // Predicated region
    $region30: #{alpha_same_forward.1} parent=1 // pred_check
      _
    $region31: #{alpha_same_forward.1} parent=1 // pred_check_branch
      %77 = sbr.rel (0) target = $region33
    $region32: #{alpha_same_forward.1} parent=1 // pred_region
      _
    $region33: #{alpha_same_forward.1} parent=1 // pred_fallthru
      _
    // Predicated region
    $region34: #{alpha_same_forward.1} parent=1 // pred_check
      _
    $region35: #{alpha_same_forward.1} parent=1 // pred_check_branch
      %79 = sbr.rel (0) target = $region37
    $region36: #{alpha_same_forward.1} parent=1 // pred_region
      %s81 = ssub.s32 256, 256
      %82 = vsyncadd [#allocation9], %s81
      %s83 = sshll.u32 [#allocation10], 4
      %s84 = int_to_ptr.vmem [resolvable:$true] %s83
      %89 = dma.hbm_to_vmem [thread:$0]  %s8, 256, %s84, [#allocation9], 128, 128, 8
    $region37: #{alpha_same_forward.1} parent=1 // pred_fallthru
      _
    // Predicated region
    $region38: #{alpha_same_forward.1} parent=1 // pred_check
      _
    $region39: #{alpha_same_forward.1} parent=1 // pred_check_branch
      %91 = sbr.rel (0) target = $region41
    $region40: #{alpha_same_forward.1} parent=1 // pred_region
      %s93 = ssub.s32 128, 128
      %94 = vsyncadd [#allocation12], %s93
      %s96 = sshll.u32 [#allocation11], 4
      %s97 = int_to_ptr.vmem [resolvable:$true] %s96
      %99 = dma.hbm_to_vmem [thread:$0]  %s9, 128, %s97, [#allocation12]
    $region41: #{alpha_same_forward.1} parent=1 // pred_fallthru
      _
    // Predicated region
    $region42: #{alpha_same_forward.1} parent=1 // pred_check
      _
    $region43: #{alpha_same_forward.1} parent=1 // pred_check_branch
      %101 = sbr.rel (0) target = $region45
    $region44: #{alpha_same_forward.1} parent=1 // pred_region
      %102 = dma.done [#allocation3], 4096
    $region45: #{alpha_same_forward.1} parent=1 // pred_fallthru
      _
    // Predicated region
    $region46: #{alpha_same_forward.1} parent=1 // pred_check
      _
    $region47: #{alpha_same_forward.1} parent=1 // pred_check_branch
      %104 = sbr.rel (0) target = $region49
    $region48: #{alpha_same_forward.1} parent=1 // pred_region
      %105 = dma.done [#allocation6], 131072
    $region49: #{alpha_same_forward.1} parent=1 // pred_fallthru
      _
    // Predicated region
    $region50: #{alpha_same_forward.1} parent=1 // pred_check
      _
    $region51: #{alpha_same_forward.1} parent=1 // pred_check_branch
      %107 = sbr.rel (0) target = $region53
    $region52: #{alpha_same_forward.1} parent=1 // pred_region
      %108 = dma.done [#allocation6], 16384
    $region53: #{alpha_same_forward.1} parent=1 // pred_fallthru
      _
    // Predicated region
    $region54: #{alpha_same_forward.1} parent=1 // pred_check
      _
    $region55: #{alpha_same_forward.1} parent=1 // pred_check_branch
      %110 = sbr.rel (0) target = $region57
    $region56: #{alpha_same_forward.1} parent=1 // pred_region
      %111 = dma.done [#allocation9], 1024
    $region57: #{alpha_same_forward.1} parent=1 // pred_fallthru
      _
    // Predicated region
    $region58: #{alpha_same_forward.1} parent=1 // pred_check
      _
    $region59: #{alpha_same_forward.1} parent=1 // pred_check_branch
      %113 = sbr.rel (0) target = $region61
    $region60: #{alpha_same_forward.1} parent=1 // pred_region
      %114 = dma.done [#allocation9], 256
    $region61: #{alpha_same_forward.1} parent=1 // pred_fallthru
      _
    // Predicated region
    $region62: #{alpha_same_forward.1} parent=1 // pred_check
      _
    $region63: #{alpha_same_forward.1} parent=1 // pred_check_branch
      %116 = sbr.rel (0) target = $region65
    $region64: #{alpha_same_forward.1} parent=1 // pred_region
      %117 = dma.done [#allocation12], 128
    $region65: #{alpha_same_forward.1} parent=1 // pred_fallthru
      _
    %v118 = vld [vmem:[%s0] sm:$0xf]
    %v119 = vld [vmem:[#allocation2] sm:$0xff]
    %v120 = vld [vmem:[#allocation2 + $0x8] sm:$0xff]
    %v121 = vld [vmem:[#allocation2 + $0x10] sm:$0xff]
    %v122 = vld [vmem:[#allocation2 + $0x18] sm:$0xff]
    %v123 = vld [vmem:[#allocation2 + $0x20] sm:$0xff]
    %v124 = vld [vmem:[#allocation2 + $0x28] sm:$0xff]
    %v125 = vld [vmem:[#allocation2 + $0x30] sm:$0xff]
    %v126 = vld [vmem:[#allocation2 + $0x38] sm:$0xff]
    %v127 = vld [vmem:[#allocation2 + $0x40] sm:$0xff]
    %v128 = vld [vmem:[#allocation2 + $0x48] sm:$0xff]
    %v129 = vld [vmem:[#allocation2 + $0x50] sm:$0xff]
    %v130 = vld [vmem:[#allocation2 + $0x58] sm:$0xff]
    %v131 = vld [vmem:[#allocation2 + $0x60] sm:$0xff]
    %v132 = vld [vmem:[#allocation2 + $0x68] sm:$0xff]
    %v133 = vld [vmem:[#allocation2 + $0x70] sm:$0xff]
    %v134 = vld [vmem:[#allocation2 + $0x78] sm:$0xff]
    %v135 = vld [vmem:[#allocation2 + $0x80] sm:$0xff]
    %v136 = vld [vmem:[#allocation2 + $0x88] sm:$0xff]
    %v137 = vld [vmem:[#allocation2 + $0x90] sm:$0xff]
    %v138 = vld [vmem:[#allocation2 + $0x98] sm:$0xff]
    %v139 = vld [vmem:[#allocation2 + $0xa0] sm:$0xff]
    %v140 = vld [vmem:[#allocation2 + $0xa8] sm:$0xff]
    %v141 = vld [vmem:[#allocation2 + $0xb0] sm:$0xff]
    %v142 = vld [vmem:[#allocation2 + $0xb8] sm:$0xff]
    %v143 = vld [vmem:[#allocation2 + $0xc0] sm:$0xff]
    %v144 = vld [vmem:[#allocation2 + $0xc8] sm:$0xff]
    %v145 = vld [vmem:[#allocation2 + $0xd0] sm:$0xff]
    %v146 = vld [vmem:[#allocation2 + $0xd8] sm:$0xff]
    %v147 = vld [vmem:[#allocation2 + $0xe0] sm:$0xff]
    %v148 = vld [vmem:[#allocation2 + $0xe8] sm:$0xff]
    %v149 = vld [vmem:[#allocation2 + $0xf0] sm:$0xff]
    %v150 = vld [vmem:[#allocation2 + $0xf8] sm:$0xff]
    %vm151 = vcmask 523264
    %v153 = vsel %vm151, %v118, 0
    %155 = vmatprep.subr.mxu0 %v120
    %156 = vmatpush1.msra.mxu0 %v119
    %157 = vmatprep.subr.mxu0 %v124
    %158 = vmatpush1.msra.mxu0 %v123
    %159 = vmatprep.subr.mxu0 %v128
    %160 = vmatpush1.msra.mxu0 %v127
    %161 = vmatprep.subr.mxu0 %v132
    %162 = vmatpush1.msra.mxu0 %v131
    %163 = vmatprep.subr.mxu0 %v136
    %164 = vmatpush1.msra.mxu0 %v135
    %165 = vmatprep.subr.mxu0 %v140
    %166 = vmatpush1.msra.mxu0 %v139
    %167 = vmatprep.subr.mxu0 %v144
    %168 = vmatpush1.msra.mxu0 %v143
    %169 = vmatprep.subr.mxu0 %v148
    %170 = vmatpush1.msra.mxu0 %v147
    %171 = vmatprep.subr.mxu0 0.0
    %172 = vmatpush1.msra.mxu0 0.0
    %173 = vmatprep.subr.mxu0 0.0
    %174 = vmatpush1.msra.mxu0 0.0
    %175 = vmatprep.subr.mxu0 0.0
    %176 = vmatpush1.msra.mxu0 0.0
    %177 = vmatprep.subr.mxu0 0.0
    %178 = vmatpush1.msra.mxu0 0.0
    %179 = vmatprep.subr.mxu0 0.0
    %180 = vmatpush1.msra.mxu0 0.0
    %181 = vmatprep.subr.mxu0 0.0
    %182 = vmatpush1.msra.mxu0 0.0
    %183 = vmatprep.subr.mxu0 0.0
    %184 = vmatpush1.msra.mxu0 0.0
    %185 = vmatprep.subr.mxu0 0.0
    %186 = vmatpush1.msra.mxu0 0.0
    %187 = vmatprep.subr.mxu0 0.0
    %188 = vmatpush1.msra.mxu0 0.0
    %189 = vmatprep.subr.mxu0 0.0
    %190 = vmatpush1.msra.mxu0 0.0
    %191 = vmatprep.subr.mxu0 0.0
    %192 = vmatpush1.msra.mxu0 0.0
    %193 = vmatprep.subr.mxu0 0.0
    %194 = vmatpush1.msra.mxu0 0.0
    %195 = vmatprep.subr.mxu0 0.0
    %196 = vmatpush1.msra.mxu0 0.0
    %197 = vmatprep.subr.mxu0 0.0
    %198 = vmatpush1.msra.mxu0 0.0
    %199 = vmatprep.subr.mxu0 0.0
    %200 = vmatpush1.msra.mxu0 0.0
    %201 = vmatprep.subr.mxu0 0.0
    %202 = vmatpush1.msra.mxu0 0.0
    %203 = vmatprep.subr.mxu0 0.0
    %204 = vmatpush1.msra.mxu0 0.0
    %205 = vmatprep.subr.mxu0 0.0
    %206 = vmatpush1.msra.mxu0 0.0
    %207 = vmatprep.subr.mxu0 0.0
    %208 = vmatpush1.msra.mxu0 0.0
    %209 = vmatprep.subr.mxu0 0.0
    %210 = vmatpush1.msra.mxu0 0.0
    %211 = vmatprep.subr.mxu0 0.0
    %212 = vmatpush1.msra.mxu0 0.0
    %213 = vmatprep.subr.mxu0 0.0
    %214 = vmatpush1.msra.mxu0 0.0
    %215 = vmatprep.subr.mxu0 0.0
    %216 = vmatpush1.msra.mxu0 0.0
    %217 = vmatprep.subr.mxu0 0.0
    %218 = vmatpush1.msra.mxu0 0.0
    %219 = vmatprep.mubr.f32.mxu0 0.0
    %220 = vmatmul.mubr.f32.gmra.mrb[0].mxu0 %v153
    %v221 = vpop.f32.mrb[0].mxu0
    %v222 = vadd.f32 0.0, %v221
    %v223 = vpop.f32.mrb[0].mxu0
    %v224 = vadd.f32 0.0, %v223
    %225 = vdwg.mxu0
    %226 = vmatprep.subr.mxu0 %v122
    %227 = vmatpush1.msra.mxu0 %v121
    %228 = vmatprep.subr.mxu0 %v126
    %229 = vmatpush1.msra.mxu0 %v125
    %230 = vmatprep.subr.mxu0 %v130
    %231 = vmatpush1.msra.mxu0 %v129
    %232 = vmatprep.subr.mxu0 %v134
    %233 = vmatpush1.msra.mxu0 %v133
    %234 = vmatprep.subr.mxu0 %v138
    %235 = vmatpush1.msra.mxu0 %v137
    %236 = vmatprep.subr.mxu0 %v142
    %237 = vmatpush1.msra.mxu0 %v141
    %238 = vmatprep.subr.mxu0 %v146
    %239 = vmatpush1.msra.mxu0 %v145
    %240 = vmatprep.subr.mxu0 %v150
    %241 = vmatpush1.msra.mxu0 %v149
    %242 = vmatprep.subr.mxu0 0.0
    %243 = vmatpush1.msra.mxu0 0.0
    %244 = vmatprep.subr.mxu0 0.0
    %245 = vmatpush1.msra.mxu0 0.0
    %246 = vmatprep.subr.mxu0 0.0
    %247 = vmatpush1.msra.mxu0 0.0
    %248 = vmatprep.subr.mxu0 0.0
    %249 = vmatpush1.msra.mxu0 0.0
    %250 = vmatprep.subr.mxu0 0.0
    %251 = vmatpush1.msra.mxu0 0.0
    %252 = vmatprep.subr.mxu0 0.0
    %253 = vmatpush1.msra.mxu0 0.0
    %254 = vmatprep.subr.mxu0 0.0
    %255 = vmatpush1.msra.mxu0 0.0
    %256 = vmatprep.subr.mxu0 0.0
    %257 = vmatpush1.msra.mxu0 0.0
    %258 = vmatprep.subr.mxu0 0.0
    %259 = vmatpush1.msra.mxu0 0.0
    %260 = vmatprep.subr.mxu0 0.0
    %261 = vmatpush1.msra.mxu0 0.0
    %262 = vmatprep.subr.mxu0 0.0
    %263 = vmatpush1.msra.mxu0 0.0
    %264 = vmatprep.subr.mxu0 0.0
    %265 = vmatpush1.msra.mxu0 0.0
    %266 = vmatprep.subr.mxu0 0.0
    %267 = vmatpush1.msra.mxu0 0.0
    %268 = vmatprep.subr.mxu0 0.0
    %269 = vmatpush1.msra.mxu0 0.0
    %270 = vmatprep.subr.mxu0 0.0
    %271 = vmatpush1.msra.mxu0 0.0
    %272 = vmatprep.subr.mxu0 0.0
    %273 = vmatpush1.msra.mxu0 0.0
    %274 = vmatprep.subr.mxu0 0.0
    %275 = vmatpush1.msra.mxu0 0.0
    %276 = vmatprep.subr.mxu0 0.0
    %277 = vmatpush1.msra.mxu0 0.0
    %278 = vmatprep.subr.mxu0 0.0
    %279 = vmatpush1.msra.mxu0 0.0
    %280 = vmatprep.subr.mxu0 0.0
    %281 = vmatpush1.msra.mxu0 0.0
    %282 = vmatprep.subr.mxu0 0.0
    %283 = vmatpush1.msra.mxu0 0.0
    %284 = vmatprep.subr.mxu0 0.0
    %285 = vmatpush1.msra.mxu0 0.0
    %286 = vmatprep.subr.mxu0 0.0
    %287 = vmatpush1.msra.mxu0 0.0
    %288 = vmatprep.subr.mxu0 0.0
    %289 = vmatpush1.msra.mxu0 0.0
    %290 = vmatprep.mubr.f32.mxu0 0.0
    %291 = vmatmul.mubr.f32.gmra.mrb[0].mxu0 %v153
    %v292 = vpop.f32.mrb[0].mxu0
    %v293 = vadd.f32 0.0, %v292
    %v294 = vpop.f32.mrb[0].mxu0
    %v295 = vadd.f32 0.0, %v294
    %296 = vdwg.mxu0
    %v297 = vld [vmem:[#allocation8] ss:$8 sm:$0xf]
    %v299 = vlaneseq
    %v300 = vshrl.u32 %v299, 7
    %v301 = vsub.s32 0, %v300
    %v302 = vrot.slane %v297, %v301
    %v303 = vlaneseq
    %v304 = vshrl.u32 %v303, 7
    %v305 = vsub.s32 1, %v304
    %v306 = vrot.slane %v297, %v305
    %v307 = vlaneseq
    %v308 = vshrl.u32 %v307, 7
    %v309 = vsub.s32 2, %v308
    %v310 = vrot.slane %v297, %v309
    %v311 = vlaneseq
    %v312 = vshrl.u32 %v311, 7
    %v313 = vsub.s32 3, %v312
    %v314 = vrot.slane %v297, %v313
    %v319 = vmul.f32 %v222, %v302
    %v320 = vmul.f32 %v224, %v306
    %v321 = vmul.f32 %v293, %v310
    %v322 = vmul.f32 %v295, %v314
    %s323 = scalar_lea.vmem [#allocation8], 1
    %v324 = vld [vmem:[%s323] ss:$8 sm:$0xf]
    %v326 = vlaneseq
    %v327 = vshrl.u32 %v326, 7
    %v328 = vsub.s32 0, %v327
    %v329 = vrot.slane %v324, %v328
    %v330 = vlaneseq
    %v331 = vshrl.u32 %v330, 7
    %v332 = vsub.s32 1, %v331
    %v333 = vrot.slane %v324, %v332
    %v334 = vlaneseq
    %v335 = vshrl.u32 %v334, 7
    %v336 = vsub.s32 2, %v335
    %v337 = vrot.slane %v324, %v336
    %v338 = vlaneseq
    %v339 = vshrl.u32 %v338, 7
    %v340 = vsub.s32 3, %v339
    %v341 = vrot.slane %v324, %v340
    %v346 = vadd.f32 %v319, %v329
    %v347 = vadd.f32 %v320, %v333
    %v348 = vadd.f32 %v321, %v337
    %v349 = vadd.f32 %v322, %v341
    %v350 = vmax.f32 %v346, 0.0
    %v351 = vmax.f32 %v347, 0.0
    %v352 = vmax.f32 %v348, 0.0
    %v353 = vmax.f32 %v349, 0.0
    %v354 = vld [vmem:[#allocation5] sm:$0xff]
    %v355 = vld [vmem:[#allocation5 + $0x8] sm:$0xff]
    %v356 = vld [vmem:[#allocation5 + $0x10] sm:$0xff]
    %v357 = vld [vmem:[#allocation5 + $0x18] sm:$0xff]
    %v358 = vld [vmem:[#allocation5 + $0x20] sm:$0xff]
    %v359 = vld [vmem:[#allocation5 + $0x28] sm:$0xff]
    %v360 = vld [vmem:[#allocation5 + $0x30] sm:$0xff]
    %v361 = vld [vmem:[#allocation5 + $0x38] sm:$0xff]
    %v362 = vld [vmem:[#allocation5 + $0x40] sm:$0xff]
    %v363 = vld [vmem:[#allocation5 + $0x48] sm:$0xff]
    %v364 = vld [vmem:[#allocation5 + $0x50] sm:$0xff]
    %v365 = vld [vmem:[#allocation5 + $0x58] sm:$0xff]
    %v366 = vld [vmem:[#allocation5 + $0x60] sm:$0xff]
    %v367 = vld [vmem:[#allocation5 + $0x68] sm:$0xff]
    %v368 = vld [vmem:[#allocation5 + $0x70] sm:$0xff]
    %v369 = vld [vmem:[#allocation5 + $0x78] sm:$0xff]
    %v370 = vld [vmem:[#allocation5 + $0x80] sm:$0xff]
    %v371 = vld [vmem:[#allocation5 + $0x88] sm:$0xff]
    %v372 = vld [vmem:[#allocation5 + $0x90] sm:$0xff]
    %v373 = vld [vmem:[#allocation5 + $0x98] sm:$0xff]
    %v374 = vld [vmem:[#allocation5 + $0xa0] sm:$0xff]
    %v375 = vld [vmem:[#allocation5 + $0xa8] sm:$0xff]
    %v376 = vld [vmem:[#allocation5 + $0xb0] sm:$0xff]
    %v377 = vld [vmem:[#allocation5 + $0xb8] sm:$0xff]
    %v378 = vld [vmem:[#allocation5 + $0xc0] sm:$0xff]
    %v379 = vld [vmem:[#allocation5 + $0xc8] sm:$0xff]
    %v380 = vld [vmem:[#allocation5 + $0xd0] sm:$0xff]
    %v381 = vld [vmem:[#allocation5 + $0xd8] sm:$0xff]
    %v382 = vld [vmem:[#allocation5 + $0xe0] sm:$0xff]
    %v383 = vld [vmem:[#allocation5 + $0xe8] sm:$0xff]
    %v384 = vld [vmem:[#allocation5 + $0xf0] sm:$0xff]
    %v385 = vld [vmem:[#allocation5 + $0xf8] sm:$0xff]
    %v386 = vld [vmem:[#allocation5 + $0x100] sm:$0xff]
    %v387 = vld [vmem:[#allocation5 + $0x108] sm:$0xff]
    %v388 = vld [vmem:[#allocation5 + $0x110] sm:$0xff]
    %v389 = vld [vmem:[#allocation5 + $0x118] sm:$0xff]
    %v390 = vld [vmem:[#allocation5 + $0x120] sm:$0xff]
    %v391 = vld [vmem:[#allocation5 + $0x128] sm:$0xff]
    %v392 = vld [vmem:[#allocation5 + $0x130] sm:$0xff]
    %v393 = vld [vmem:[#allocation5 + $0x138] sm:$0xff]
    %v394 = vld [vmem:[#allocation5 + $0x140] sm:$0xff]
    %v395 = vld [vmem:[#allocation5 + $0x148] sm:$0xff]
    %v396 = vld [vmem:[#allocation5 + $0x150] sm:$0xff]
    %v397 = vld [vmem:[#allocation5 + $0x158] sm:$0xff]
    %v398 = vld [vmem:[#allocation5 + $0x160] sm:$0xff]
    %v399 = vld [vmem:[#allocation5 + $0x168] sm:$0xff]
    %v400 = vld [vmem:[#allocation5 + $0x170] sm:$0xff]
    %v401 = vld [vmem:[#allocation5 + $0x178] sm:$0xff]
    %v402 = vld [vmem:[#allocation5 + $0x180] sm:$0xff]
    %v403 = vld [vmem:[#allocation5 + $0x188] sm:$0xff]
    %v404 = vld [vmem:[#allocation5 + $0x190] sm:$0xff]
    %v405 = vld [vmem:[#allocation5 + $0x198] sm:$0xff]
    %v406 = vld [vmem:[#allocation5 + $0x1a0] sm:$0xff]
    %v407 = vld [vmem:[#allocation5 + $0x1a8] sm:$0xff]
    %v408 = vld [vmem:[#allocation5 + $0x1b0] sm:$0xff]
    %v409 = vld [vmem:[#allocation5 + $0x1b8] sm:$0xff]
    %v410 = vld [vmem:[#allocation5 + $0x1c0] sm:$0xff]
    %v411 = vld [vmem:[#allocation5 + $0x1c8] sm:$0xff]
    %v412 = vld [vmem:[#allocation5 + $0x1d0] sm:$0xff]
    %v413 = vld [vmem:[#allocation5 + $0x1d8] sm:$0xff]
    %v414 = vld [vmem:[#allocation5 + $0x1e0] sm:$0xff]
    %v415 = vld [vmem:[#allocation5 + $0x1e8] sm:$0xff]
    %v416 = vld [vmem:[#allocation5 + $0x1f0] sm:$0xff]
    %v417 = vld [vmem:[#allocation5 + $0x1f8] sm:$0xff]
    %v418 = vld [vmem:[#allocation5 + $0x200] sm:$0xff]
    %v419 = vld [vmem:[#allocation5 + $0x208] sm:$0xff]
    %v420 = vld [vmem:[#allocation5 + $0x210] sm:$0xff]
    %v421 = vld [vmem:[#allocation5 + $0x218] sm:$0xff]
    %v422 = vld [vmem:[#allocation5 + $0x220] sm:$0xff]
    %v423 = vld [vmem:[#allocation5 + $0x228] sm:$0xff]
    %v424 = vld [vmem:[#allocation5 + $0x230] sm:$0xff]
    %v425 = vld [vmem:[#allocation5 + $0x238] sm:$0xff]
    %v426 = vld [vmem:[#allocation5 + $0x240] sm:$0xff]
    %v427 = vld [vmem:[#allocation5 + $0x248] sm:$0xff]
    %v428 = vld [vmem:[#allocation5 + $0x250] sm:$0xff]
    %v429 = vld [vmem:[#allocation5 + $0x258] sm:$0xff]
    %v430 = vld [vmem:[#allocation5 + $0x260] sm:$0xff]
    %v431 = vld [vmem:[#allocation5 + $0x268] sm:$0xff]
    %v432 = vld [vmem:[#allocation5 + $0x270] sm:$0xff]
    %v433 = vld [vmem:[#allocation5 + $0x278] sm:$0xff]
    %v434 = vld [vmem:[#allocation5 + $0x280] sm:$0xff]
    %v435 = vld [vmem:[#allocation5 + $0x288] sm:$0xff]
    %v436 = vld [vmem:[#allocation5 + $0x290] sm:$0xff]
    %v437 = vld [vmem:[#allocation5 + $0x298] sm:$0xff]
    %v438 = vld [vmem:[#allocation5 + $0x2a0] sm:$0xff]
    %v439 = vld [vmem:[#allocation5 + $0x2a8] sm:$0xff]
    %v440 = vld [vmem:[#allocation5 + $0x2b0] sm:$0xff]
    %v441 = vld [vmem:[#allocation5 + $0x2b8] sm:$0xff]
    %v442 = vld [vmem:[#allocation5 + $0x2c0] sm:$0xff]
    %v443 = vld [vmem:[#allocation5 + $0x2c8] sm:$0xff]
    %v444 = vld [vmem:[#allocation5 + $0x2d0] sm:$0xff]
    %v445 = vld [vmem:[#allocation5 + $0x2d8] sm:$0xff]
    %v446 = vld [vmem:[#allocation5 + $0x2e0] sm:$0xff]
    %v447 = vld [vmem:[#allocation5 + $0x2e8] sm:$0xff]
    %v448 = vld [vmem:[#allocation5 + $0x2f0] sm:$0xff]
    %v449 = vld [vmem:[#allocation5 + $0x2f8] sm:$0xff]
    %v450 = vld [vmem:[#allocation5 + $0x300] sm:$0xff]
    %v451 = vld [vmem:[#allocation5 + $0x308] sm:$0xff]
    %v452 = vld [vmem:[#allocation5 + $0x310] sm:$0xff]
    %v453 = vld [vmem:[#allocation5 + $0x318] sm:$0xff]
    %v454 = vld [vmem:[#allocation5 + $0x320] sm:$0xff]
    %v455 = vld [vmem:[#allocation5 + $0x328] sm:$0xff]
    %v456 = vld [vmem:[#allocation5 + $0x330] sm:$0xff]
    %v457 = vld [vmem:[#allocation5 + $0x338] sm:$0xff]
    %v458 = vld [vmem:[#allocation5 + $0x340] sm:$0xff]
    %v459 = vld [vmem:[#allocation5 + $0x348] sm:$0xff]
    %v460 = vld [vmem:[#allocation5 + $0x350] sm:$0xff]
    %v461 = vld [vmem:[#allocation5 + $0x358] sm:$0xff]
    %v462 = vld [vmem:[#allocation5 + $0x360] sm:$0xff]
    %v463 = vld [vmem:[#allocation5 + $0x368] sm:$0xff]
    %v464 = vld [vmem:[#allocation5 + $0x370] sm:$0xff]
    %v465 = vld [vmem:[#allocation5 + $0x378] sm:$0xff]
    %v466 = vld [vmem:[#allocation5 + $0x380] sm:$0xff]
    %v467 = vld [vmem:[#allocation5 + $0x388] sm:$0xff]
    %v468 = vld [vmem:[#allocation5 + $0x390] sm:$0xff]
    %v469 = vld [vmem:[#allocation5 + $0x398] sm:$0xff]
    %v470 = vld [vmem:[#allocation5 + $0x3a0] sm:$0xff]
    %v471 = vld [vmem:[#allocation5 + $0x3a8] sm:$0xff]
    %v472 = vld [vmem:[#allocation5 + $0x3b0] sm:$0xff]
    %v473 = vld [vmem:[#allocation5 + $0x3b8] sm:$0xff]
    %v474 = vld [vmem:[#allocation5 + $0x3c0] sm:$0xff]
    %v475 = vld [vmem:[#allocation5 + $0x3c8] sm:$0xff]
    %v476 = vld [vmem:[#allocation5 + $0x3d0] sm:$0xff]
    %v477 = vld [vmem:[#allocation5 + $0x3d8] sm:$0xff]
    %v478 = vld [vmem:[#allocation5 + $0x3e0] sm:$0xff]
    %v479 = vld [vmem:[#allocation5 + $0x3e8] sm:$0xff]
    %v480 = vld [vmem:[#allocation5 + $0x3f0] sm:$0xff]
    %v481 = vld [vmem:[#allocation5 + $0x3f8] sm:$0xff]
    %v482 = vld [vmem:[#allocation5 + $0x400] sm:$0xff]
    %v483 = vld [vmem:[#allocation5 + $0x408] sm:$0xff]
    %v484 = vld [vmem:[#allocation5 + $0x410] sm:$0xff]
    %v485 = vld [vmem:[#allocation5 + $0x418] sm:$0xff]
    %v486 = vld [vmem:[#allocation5 + $0x420] sm:$0xff]
    %v487 = vld [vmem:[#allocation5 + $0x428] sm:$0xff]
    %v488 = vld [vmem:[#allocation5 + $0x430] sm:$0xff]
    %v489 = vld [vmem:[#allocation5 + $0x438] sm:$0xff]
    %v490 = vld [vmem:[#allocation5 + $0x440] sm:$0xff]
    %v491 = vld [vmem:[#allocation5 + $0x448] sm:$0xff]
    %v492 = vld [vmem:[#allocation5 + $0x450] sm:$0xff]
    %v493 = vld [vmem:[#allocation5 + $0x458] sm:$0xff]
    %v494 = vld [vmem:[#allocation5 + $0x460] sm:$0xff]
    %v495 = vld [vmem:[#allocation5 + $0x468] sm:$0xff]
    %v496 = vld [vmem:[#allocation5 + $0x470] sm:$0xff]
    %v497 = vld [vmem:[#allocation5 + $0x478] sm:$0xff]
    %v498 = vld [vmem:[#allocation5 + $0x480] sm:$0xff]
    %v499 = vld [vmem:[#allocation5 + $0x488] sm:$0xff]
    %v500 = vld [vmem:[#allocation5 + $0x490] sm:$0xff]
    %v501 = vld [vmem:[#allocation5 + $0x498] sm:$0xff]
    %v502 = vld [vmem:[#allocation5 + $0x4a0] sm:$0xff]
    %v503 = vld [vmem:[#allocation5 + $0x4a8] sm:$0xff]
    %v504 = vld [vmem:[#allocation5 + $0x4b0] sm:$0xff]
    %v505 = vld [vmem:[#allocation5 + $0x4b8] sm:$0xff]
    %v506 = vld [vmem:[#allocation5 + $0x4c0] sm:$0xff]
    %v507 = vld [vmem:[#allocation5 + $0x4c8] sm:$0xff]
    %v508 = vld [vmem:[#allocation5 + $0x4d0] sm:$0xff]
    %v509 = vld [vmem:[#allocation5 + $0x4d8] sm:$0xff]
    %v510 = vld [vmem:[#allocation5 + $0x4e0] sm:$0xff]
    %v511 = vld [vmem:[#allocation5 + $0x4e8] sm:$0xff]
    %v512 = vld [vmem:[#allocation5 + $0x4f0] sm:$0xff]
    %v513 = vld [vmem:[#allocation5 + $0x4f8] sm:$0xff]
    %v514 = vld [vmem:[#allocation5 + $0x500] sm:$0xff]
    %v515 = vld [vmem:[#allocation5 + $0x508] sm:$0xff]
    %v516 = vld [vmem:[#allocation5 + $0x510] sm:$0xff]
    %v517 = vld [vmem:[#allocation5 + $0x518] sm:$0xff]
    %v518 = vld [vmem:[#allocation5 + $0x520] sm:$0xff]
    %v519 = vld [vmem:[#allocation5 + $0x528] sm:$0xff]
    %v520 = vld [vmem:[#allocation5 + $0x530] sm:$0xff]
    %v521 = vld [vmem:[#allocation5 + $0x538] sm:$0xff]
    %v522 = vld [vmem:[#allocation5 + $0x540] sm:$0xff]
    %v523 = vld [vmem:[#allocation5 + $0x548] sm:$0xff]
    %v524 = vld [vmem:[#allocation5 + $0x550] sm:$0xff]
    %v525 = vld [vmem:[#allocation5 + $0x558] sm:$0xff]
    %v526 = vld [vmem:[#allocation5 + $0x560] sm:$0xff]
    %v527 = vld [vmem:[#allocation5 + $0x568] sm:$0xff]
    %v528 = vld [vmem:[#allocation5 + $0x570] sm:$0xff]
    %v529 = vld [vmem:[#allocation5 + $0x578] sm:$0xff]
    %v530 = vld [vmem:[#allocation5 + $0x580] sm:$0xff]
    %v531 = vld [vmem:[#allocation5 + $0x588] sm:$0xff]
    %v532 = vld [vmem:[#allocation5 + $0x590] sm:$0xff]
    %v533 = vld [vmem:[#allocation5 + $0x598] sm:$0xff]
    %v534 = vld [vmem:[#allocation5 + $0x5a0] sm:$0xff]
    %v535 = vld [vmem:[#allocation5 + $0x5a8] sm:$0xff]
    %v536 = vld [vmem:[#allocation5 + $0x5b0] sm:$0xff]
    %v537 = vld [vmem:[#allocation5 + $0x5b8] sm:$0xff]
    %v538 = vld [vmem:[#allocation5 + $0x5c0] sm:$0xff]
    %v539 = vld [vmem:[#allocation5 + $0x5c8] sm:$0xff]
    %v540 = vld [vmem:[#allocation5 + $0x5d0] sm:$0xff]
    %v541 = vld [vmem:[#allocation5 + $0x5d8] sm:$0xff]
    %v542 = vld [vmem:[#allocation5 + $0x5e0] sm:$0xff]
    %v543 = vld [vmem:[#allocation5 + $0x5e8] sm:$0xff]
    %v544 = vld [vmem:[#allocation5 + $0x5f0] sm:$0xff]
    %v545 = vld [vmem:[#allocation5 + $0x5f8] sm:$0xff]
    %v546 = vld [vmem:[#allocation5 + $0x600] sm:$0xff]
    %v547 = vld [vmem:[#allocation5 + $0x608] sm:$0xff]
    %v548 = vld [vmem:[#allocation5 + $0x610] sm:$0xff]
    %v549 = vld [vmem:[#allocation5 + $0x618] sm:$0xff]
    %v550 = vld [vmem:[#allocation5 + $0x620] sm:$0xff]
    %v551 = vld [vmem:[#allocation5 + $0x628] sm:$0xff]
    %v552 = vld [vmem:[#allocation5 + $0x630] sm:$0xff]
    %v553 = vld [vmem:[#allocation5 + $0x638] sm:$0xff]
    %v554 = vld [vmem:[#allocation5 + $0x640] sm:$0xff]
    %v555 = vld [vmem:[#allocation5 + $0x648] sm:$0xff]
    %v556 = vld [vmem:[#allocation5 + $0x650] sm:$0xff]
    %v557 = vld [vmem:[#allocation5 + $0x658] sm:$0xff]
    %v558 = vld [vmem:[#allocation5 + $0x660] sm:$0xff]
    %v559 = vld [vmem:[#allocation5 + $0x668] sm:$0xff]
    %v560 = vld [vmem:[#allocation5 + $0x670] sm:$0xff]
    %v561 = vld [vmem:[#allocation5 + $0x678] sm:$0xff]
    %v562 = vld [vmem:[#allocation5 + $0x680] sm:$0xff]
    %v563 = vld [vmem:[#allocation5 + $0x688] sm:$0xff]
    %v564 = vld [vmem:[#allocation5 + $0x690] sm:$0xff]
    %v565 = vld [vmem:[#allocation5 + $0x698] sm:$0xff]
    %v566 = vld [vmem:[#allocation5 + $0x6a0] sm:$0xff]
    %v567 = vld [vmem:[#allocation5 + $0x6a8] sm:$0xff]
    %v568 = vld [vmem:[#allocation5 + $0x6b0] sm:$0xff]
    %v569 = vld [vmem:[#allocation5 + $0x6b8] sm:$0xff]
    %v570 = vld [vmem:[#allocation5 + $0x6c0] sm:$0xff]
    %v571 = vld [vmem:[#allocation5 + $0x6c8] sm:$0xff]
    %v572 = vld [vmem:[#allocation5 + $0x6d0] sm:$0xff]
    %v573 = vld [vmem:[#allocation5 + $0x6d8] sm:$0xff]
    %v574 = vld [vmem:[#allocation5 + $0x6e0] sm:$0xff]
    %v575 = vld [vmem:[#allocation5 + $0x6e8] sm:$0xff]
    %v576 = vld [vmem:[#allocation5 + $0x6f0] sm:$0xff]
    %v577 = vld [vmem:[#allocation5 + $0x6f8] sm:$0xff]
    %v578 = vld [vmem:[#allocation5 + $0x700] sm:$0xff]
    %v579 = vld [vmem:[#allocation5 + $0x708] sm:$0xff]
    %v580 = vld [vmem:[#allocation5 + $0x710] sm:$0xff]
    %v581 = vld [vmem:[#allocation5 + $0x718] sm:$0xff]
    %v582 = vld [vmem:[#allocation5 + $0x720] sm:$0xff]
    %v583 = vld [vmem:[#allocation5 + $0x728] sm:$0xff]
    %v584 = vld [vmem:[#allocation5 + $0x730] sm:$0xff]
    %v585 = vld [vmem:[#allocation5 + $0x738] sm:$0xff]
    %v586 = vld [vmem:[#allocation5 + $0x740] sm:$0xff]
    %v587 = vld [vmem:[#allocation5 + $0x748] sm:$0xff]
    %v588 = vld [vmem:[#allocation5 + $0x750] sm:$0xff]
    %v589 = vld [vmem:[#allocation5 + $0x758] sm:$0xff]
    %v590 = vld [vmem:[#allocation5 + $0x760] sm:$0xff]
    %v591 = vld [vmem:[#allocation5 + $0x768] sm:$0xff]
    %v592 = vld [vmem:[#allocation5 + $0x770] sm:$0xff]
    %v593 = vld [vmem:[#allocation5 + $0x778] sm:$0xff]
    %v594 = vld [vmem:[#allocation5 + $0x780] sm:$0xff]
    %v595 = vld [vmem:[#allocation5 + $0x788] sm:$0xff]
    %v596 = vld [vmem:[#allocation5 + $0x790] sm:$0xff]
    %v597 = vld [vmem:[#allocation5 + $0x798] sm:$0xff]
    %v598 = vld [vmem:[#allocation5 + $0x7a0] sm:$0xff]
    %v599 = vld [vmem:[#allocation5 + $0x7a8] sm:$0xff]
    %v600 = vld [vmem:[#allocation5 + $0x7b0] sm:$0xff]
    %v601 = vld [vmem:[#allocation5 + $0x7b8] sm:$0xff]
    %v602 = vld [vmem:[#allocation5 + $0x7c0] sm:$0xff]
    %v603 = vld [vmem:[#allocation5 + $0x7c8] sm:$0xff]
    %v604 = vld [vmem:[#allocation5 + $0x7d0] sm:$0xff]
    %v605 = vld [vmem:[#allocation5 + $0x7d8] sm:$0xff]
    %v606 = vld [vmem:[#allocation5 + $0x7e0] sm:$0xff]
    %v607 = vld [vmem:[#allocation5 + $0x7e8] sm:$0xff]
    %v608 = vld [vmem:[#allocation5 + $0x7f0] sm:$0xff]
    %v609 = vld [vmem:[#allocation5 + $0x7f8] sm:$0xff]
    %610 = vmatprep.subr.mxu0 %v355
    %611 = vmatpush1.msra.mxu0 %v354
    %612 = vmatprep.subr.mxu0 %v359
    %613 = vmatpush1.msra.mxu0 %v358
    %614 = vmatprep.subr.mxu0 %v363
    %615 = vmatpush1.msra.mxu0 %v362
    %616 = vmatprep.subr.mxu0 %v367
    %617 = vmatpush1.msra.mxu0 %v366
    %618 = vmatprep.subr.mxu0 %v371
    %619 = vmatpush1.msra.mxu0 %v370
    %620 = vmatprep.subr.mxu0 %v375
    %621 = vmatpush1.msra.mxu0 %v374
    %622 = vmatprep.subr.mxu0 %v379
    %623 = vmatpush1.msra.mxu0 %v378
    %624 = vmatprep.subr.mxu0 %v383
    %625 = vmatpush1.msra.mxu0 %v382
    %626 = vmatprep.subr.mxu0 %v387
    %627 = vmatpush1.msra.mxu0 %v386
    %628 = vmatprep.subr.mxu0 %v391
    %629 = vmatpush1.msra.mxu0 %v390
    %630 = vmatprep.subr.mxu0 %v395
    %631 = vmatpush1.msra.mxu0 %v394
    %632 = vmatprep.subr.mxu0 %v399
    %633 = vmatpush1.msra.mxu0 %v398
    %634 = vmatprep.subr.mxu0 %v403
    %635 = vmatpush1.msra.mxu0 %v402
    %636 = vmatprep.subr.mxu0 %v407
    %637 = vmatpush1.msra.mxu0 %v406
    %638 = vmatprep.subr.mxu0 %v411
    %639 = vmatpush1.msra.mxu0 %v410
    %640 = vmatprep.subr.mxu0 %v415
    %641 = vmatpush1.msra.mxu0 %v414
    %642 = vmatprep.subr.mxu0 %v419
    %643 = vmatpush1.msra.mxu0 %v418
    %644 = vmatprep.subr.mxu0 %v423
    %645 = vmatpush1.msra.mxu0 %v422
    %646 = vmatprep.subr.mxu0 %v427
    %647 = vmatpush1.msra.mxu0 %v426
    %648 = vmatprep.subr.mxu0 %v431
    %649 = vmatpush1.msra.mxu0 %v430
    %650 = vmatprep.subr.mxu0 %v435
    %651 = vmatpush1.msra.mxu0 %v434
    %652 = vmatprep.subr.mxu0 %v439
    %653 = vmatpush1.msra.mxu0 %v438
    %654 = vmatprep.subr.mxu0 %v443
    %655 = vmatpush1.msra.mxu0 %v442
    %656 = vmatprep.subr.mxu0 %v447
    %657 = vmatpush1.msra.mxu0 %v446
    %658 = vmatprep.subr.mxu0 %v451
    %659 = vmatpush1.msra.mxu0 %v450
    %660 = vmatprep.subr.mxu0 %v455
    %661 = vmatpush1.msra.mxu0 %v454
    %662 = vmatprep.subr.mxu0 %v459
    %663 = vmatpush1.msra.mxu0 %v458
    %664 = vmatprep.subr.mxu0 %v463
    %665 = vmatpush1.msra.mxu0 %v462
    %666 = vmatprep.subr.mxu0 %v467
    %667 = vmatpush1.msra.mxu0 %v466
    %668 = vmatprep.subr.mxu0 %v471
    %669 = vmatpush1.msra.mxu0 %v470
    %670 = vmatprep.subr.mxu0 %v475
    %671 = vmatpush1.msra.mxu0 %v474
    %672 = vmatprep.subr.mxu0 %v479
    %673 = vmatpush1.msra.mxu0 %v478
    %674 = vmatprep.mubr.f32.mxu0 %v351
    %675 = vmatmul.mubr.f32.gmra.mrb[0].mxu0 %v350
    %v676 = vpop.f32.mrb[0].mxu0
    %v677 = vadd.f32 0.0, %v676
    %v678 = vpop.f32.mrb[0].mxu0
    %v679 = vadd.f32 0.0, %v678
    %680 = vdwg.mxu0
    %681 = vmatprep.subr.mxu0 %v483
    %682 = vmatpush1.msra.mxu0 %v482
    %683 = vmatprep.subr.mxu0 %v487
    %684 = vmatpush1.msra.mxu0 %v486
    %685 = vmatprep.subr.mxu0 %v491
    %686 = vmatpush1.msra.mxu0 %v490
    %687 = vmatprep.subr.mxu0 %v495
    %688 = vmatpush1.msra.mxu0 %v494
    %689 = vmatprep.subr.mxu0 %v499
    %690 = vmatpush1.msra.mxu0 %v498
    %691 = vmatprep.subr.mxu0 %v503
    %692 = vmatpush1.msra.mxu0 %v502
    %693 = vmatprep.subr.mxu0 %v507
    %694 = vmatpush1.msra.mxu0 %v506
    %695 = vmatprep.subr.mxu0 %v511
    %696 = vmatpush1.msra.mxu0 %v510
    %697 = vmatprep.subr.mxu0 %v515
    %698 = vmatpush1.msra.mxu0 %v514
    %699 = vmatprep.subr.mxu0 %v519
    %700 = vmatpush1.msra.mxu0 %v518
    %701 = vmatprep.subr.mxu0 %v523
    %702 = vmatpush1.msra.mxu0 %v522
    %703 = vmatprep.subr.mxu0 %v527
    %704 = vmatpush1.msra.mxu0 %v526
    %705 = vmatprep.subr.mxu0 %v531
    %706 = vmatpush1.msra.mxu0 %v530
    %707 = vmatprep.subr.mxu0 %v535
    %708 = vmatpush1.msra.mxu0 %v534
    %709 = vmatprep.subr.mxu0 %v539
    %710 = vmatpush1.msra.mxu0 %v538
    %711 = vmatprep.subr.mxu0 %v543
    %712 = vmatpush1.msra.mxu0 %v542
    %713 = vmatprep.subr.mxu0 %v547
    %714 = vmatpush1.msra.mxu0 %v546
    %715 = vmatprep.subr.mxu0 %v551
    %716 = vmatpush1.msra.mxu0 %v550
    %717 = vmatprep.subr.mxu0 %v555
    %718 = vmatpush1.msra.mxu0 %v554
    %719 = vmatprep.subr.mxu0 %v559
    %720 = vmatpush1.msra.mxu0 %v558
    %721 = vmatprep.subr.mxu0 %v563
    %722 = vmatpush1.msra.mxu0 %v562
    %723 = vmatprep.subr.mxu0 %v567
    %724 = vmatpush1.msra.mxu0 %v566
    %725 = vmatprep.subr.mxu0 %v571
    %726 = vmatpush1.msra.mxu0 %v570
    %727 = vmatprep.subr.mxu0 %v575
    %728 = vmatpush1.msra.mxu0 %v574
    %729 = vmatprep.subr.mxu0 %v579
    %730 = vmatpush1.msra.mxu0 %v578
    %731 = vmatprep.subr.mxu0 %v583
    %732 = vmatpush1.msra.mxu0 %v582
    %733 = vmatprep.subr.mxu0 %v587
    %734 = vmatpush1.msra.mxu0 %v586
    %735 = vmatprep.subr.mxu0 %v591
    %736 = vmatpush1.msra.mxu0 %v590
    %737 = vmatprep.subr.mxu0 %v595
    %738 = vmatpush1.msra.mxu0 %v594
    %739 = vmatprep.subr.mxu0 %v599
    %740 = vmatpush1.msra.mxu0 %v598
    %741 = vmatprep.subr.mxu0 %v603
    %742 = vmatpush1.msra.mxu0 %v602
    %743 = vmatprep.subr.mxu0 %v607
    %744 = vmatpush1.msra.mxu0 %v606
    %745 = vmatprep.mubr.f32.mxu0 %v353
    %746 = vmatmul.mubr.f32.gmra.mrb[0].mxu0 %v352
    %v747 = vpop.f32.mrb[0].mxu0
    %v748 = vadd.f32 %v677, %v747
    %v749 = vpop.f32.mrb[0].mxu0
    %v750 = vadd.f32 %v679, %v749
    %751 = vdwg.mxu0
    %752 = vmatprep.subr.mxu0 %v357
    %753 = vmatpush1.msra.mxu0 %v356
    %754 = vmatprep.subr.mxu0 %v361
    %755 = vmatpush1.msra.mxu0 %v360
    %756 = vmatprep.subr.mxu0 %v365
    %757 = vmatpush1.msra.mxu0 %v364
    %758 = vmatprep.subr.mxu0 %v369
    %759 = vmatpush1.msra.mxu0 %v368
    %760 = vmatprep.subr.mxu0 %v373
    %761 = vmatpush1.msra.mxu0 %v372
    %762 = vmatprep.subr.mxu0 %v377
    %763 = vmatpush1.msra.mxu0 %v376
    %764 = vmatprep.subr.mxu0 %v381
    %765 = vmatpush1.msra.mxu0 %v380
    %766 = vmatprep.subr.mxu0 %v385
    %767 = vmatpush1.msra.mxu0 %v384
    %768 = vmatprep.subr.mxu0 %v389
    %769 = vmatpush1.msra.mxu0 %v388
    %770 = vmatprep.subr.mxu0 %v393
    %771 = vmatpush1.msra.mxu0 %v392
    %772 = vmatprep.subr.mxu0 %v397
    %773 = vmatpush1.msra.mxu0 %v396
    %774 = vmatprep.subr.mxu0 %v401
    %775 = vmatpush1.msra.mxu0 %v400
    %776 = vmatprep.subr.mxu0 %v405
    %777 = vmatpush1.msra.mxu0 %v404
    %778 = vmatprep.subr.mxu0 %v409
    %779 = vmatpush1.msra.mxu0 %v408
    %780 = vmatprep.subr.mxu0 %v413
    %781 = vmatpush1.msra.mxu0 %v412
    %782 = vmatprep.subr.mxu0 %v417
    %783 = vmatpush1.msra.mxu0 %v416
    %784 = vmatprep.subr.mxu0 %v421
    %785 = vmatpush1.msra.mxu0 %v420
    %786 = vmatprep.subr.mxu0 %v425
    %787 = vmatpush1.msra.mxu0 %v424
    %788 = vmatprep.subr.mxu0 %v429
    %789 = vmatpush1.msra.mxu0 %v428
    %790 = vmatprep.subr.mxu0 %v433
    %791 = vmatpush1.msra.mxu0 %v432
    %792 = vmatprep.subr.mxu0 %v437
    %793 = vmatpush1.msra.mxu0 %v436
    %794 = vmatprep.subr.mxu0 %v441
    %795 = vmatpush1.msra.mxu0 %v440
    %796 = vmatprep.subr.mxu0 %v445
    %797 = vmatpush1.msra.mxu0 %v444
    %798 = vmatprep.subr.mxu0 %v449
    %799 = vmatpush1.msra.mxu0 %v448
    %800 = vmatprep.subr.mxu0 %v453
    %801 = vmatpush1.msra.mxu0 %v452
    %802 = vmatprep.subr.mxu0 %v457
    %803 = vmatpush1.msra.mxu0 %v456
    %804 = vmatprep.subr.mxu0 %v461
    %805 = vmatpush1.msra.mxu0 %v460
    %806 = vmatprep.subr.mxu0 %v465
    %807 = vmatpush1.msra.mxu0 %v464
    %808 = vmatprep.subr.mxu0 %v469
    %809 = vmatpush1.msra.mxu0 %v468
    %810 = vmatprep.subr.mxu0 %v473
    %811 = vmatpush1.msra.mxu0 %v472
    %812 = vmatprep.subr.mxu0 %v477
    %813 = vmatpush1.msra.mxu0 %v476
    %814 = vmatprep.subr.mxu0 %v481
    %815 = vmatpush1.msra.mxu0 %v480
    %816 = vmatprep.mubr.f32.mxu0 %v351
    %817 = vmatmul.mubr.f32.gmra.mrb[0].mxu0 %v350
    %v818 = vpop.f32.mrb[0].mxu0
    %v819 = vadd.f32 0.0, %v818
    %v820 = vpop.f32.mrb[0].mxu0
    %v821 = vadd.f32 0.0, %v820
    %822 = vdwg.mxu0
    %823 = vmatprep.subr.mxu0 %v485
    %824 = vmatpush1.msra.mxu0 %v484
    %825 = vmatprep.subr.mxu0 %v489
    %826 = vmatpush1.msra.mxu0 %v488
    %827 = vmatprep.subr.mxu0 %v493
    %828 = vmatpush1.msra.mxu0 %v492
    %829 = vmatprep.subr.mxu0 %v497
    %830 = vmatpush1.msra.mxu0 %v496
    %831 = vmatprep.subr.mxu0 %v501
    %832 = vmatpush1.msra.mxu0 %v500
    %833 = vmatprep.subr.mxu0 %v505
    %834 = vmatpush1.msra.mxu0 %v504
    %835 = vmatprep.subr.mxu0 %v509
    %836 = vmatpush1.msra.mxu0 %v508
    %837 = vmatprep.subr.mxu0 %v513
    %838 = vmatpush1.msra.mxu0 %v512
    %839 = vmatprep.subr.mxu0 %v517
    %840 = vmatpush1.msra.mxu0 %v516
    %841 = vmatprep.subr.mxu0 %v521
    %842 = vmatpush1.msra.mxu0 %v520
    %843 = vmatprep.subr.mxu0 %v525
    %844 = vmatpush1.msra.mxu0 %v524
    %845 = vmatprep.subr.mxu0 %v529
    %846 = vmatpush1.msra.mxu0 %v528
    %847 = vmatprep.subr.mxu0 %v533
    %848 = vmatpush1.msra.mxu0 %v532
    %849 = vmatprep.subr.mxu0 %v537
    %850 = vmatpush1.msra.mxu0 %v536
    %851 = vmatprep.subr.mxu0 %v541
    %852 = vmatpush1.msra.mxu0 %v540
    %853 = vmatprep.subr.mxu0 %v545
    %854 = vmatpush1.msra.mxu0 %v544
    %855 = vmatprep.subr.mxu0 %v549
    %856 = vmatpush1.msra.mxu0 %v548
    %857 = vmatprep.subr.mxu0 %v553
    %858 = vmatpush1.msra.mxu0 %v552
    %859 = vmatprep.subr.mxu0 %v557
    %860 = vmatpush1.msra.mxu0 %v556
    %861 = vmatprep.subr.mxu0 %v561
    %862 = vmatpush1.msra.mxu0 %v560
    %863 = vmatprep.subr.mxu0 %v565
    %864 = vmatpush1.msra.mxu0 %v564
    %865 = vmatprep.subr.mxu0 %v569
    %866 = vmatpush1.msra.mxu0 %v568
    %867 = vmatprep.subr.mxu0 %v573
    %868 = vmatpush1.msra.mxu0 %v572
    %869 = vmatprep.subr.mxu0 %v577
    %870 = vmatpush1.msra.mxu0 %v576
    %871 = vmatprep.subr.mxu0 %v581
    %872 = vmatpush1.msra.mxu0 %v580
    %873 = vmatprep.subr.mxu0 %v585
    %874 = vmatpush1.msra.mxu0 %v584
    %875 = vmatprep.subr.mxu0 %v589
    %876 = vmatpush1.msra.mxu0 %v588
    %877 = vmatprep.subr.mxu0 %v593
    %878 = vmatpush1.msra.mxu0 %v592
    %879 = vmatprep.subr.mxu0 %v597
    %880 = vmatpush1.msra.mxu0 %v596
    %881 = vmatprep.subr.mxu0 %v601
    %882 = vmatpush1.msra.mxu0 %v600
    %883 = vmatprep.subr.mxu0 %v605
    %884 = vmatpush1.msra.mxu0 %v604
    %885 = vmatprep.subr.mxu0 %v609
    %886 = vmatpush1.msra.mxu0 %v608
    %887 = vmatprep.mubr.f32.mxu0 %v353
    %888 = vmatmul.mubr.f32.gmra.mrb[0].mxu0 %v352
    %v889 = vpop.f32.mrb[0].mxu0
    %v890 = vadd.f32 %v819, %v889
    %v891 = vpop.f32.mrb[0].mxu0
    %v892 = vadd.f32 %v821, %v891
    %893 = vdwg.mxu0
    %s894 = scalar_lea.vmem [#allocation8], 2
    %v895 = vld [vmem:[%s894] ss:$8 sm:$0xf]
    %v897 = vlaneseq
    %v898 = vshrl.u32 %v897, 7
    %v899 = vsub.s32 0, %v898
    %v900 = vrot.slane %v895, %v899
    %v901 = vlaneseq
    %v902 = vshrl.u32 %v901, 7
    %v903 = vsub.s32 1, %v902
    %v904 = vrot.slane %v895, %v903
    %v905 = vlaneseq
    %v906 = vshrl.u32 %v905, 7
    %v907 = vsub.s32 2, %v906
    %v908 = vrot.slane %v895, %v907
    %v909 = vlaneseq
    %v910 = vshrl.u32 %v909, 7
    %v911 = vsub.s32 3, %v910
    %v912 = vrot.slane %v895, %v911
    %v917 = vmul.f32 %v748, %v900
    %v918 = vmul.f32 %v750, %v904
    %v919 = vmul.f32 %v890, %v908
    %v920 = vmul.f32 %v892, %v912
    %s921 = scalar_lea.vmem [#allocation8], 3
    %v922 = vld [vmem:[%s921] ss:$8 sm:$0xf]
    %v924 = vlaneseq
    %v925 = vshrl.u32 %v924, 7
    %v926 = vsub.s32 0, %v925
    %v927 = vrot.slane %v922, %v926
    %v928 = vlaneseq
    %v929 = vshrl.u32 %v928, 7
    %v930 = vsub.s32 1, %v929
    %v931 = vrot.slane %v922, %v930
    %v932 = vlaneseq
    %v933 = vshrl.u32 %v932, 7
    %v934 = vsub.s32 2, %v933
    %v935 = vrot.slane %v922, %v934
    %v936 = vlaneseq
    %v937 = vshrl.u32 %v936, 7
    %v938 = vsub.s32 3, %v937
    %v939 = vrot.slane %v922, %v938
    %v944 = vadd.f32 %v917, %v927
    %v945 = vadd.f32 %v918, %v931
    %v946 = vadd.f32 %v919, %v935
    %v947 = vadd.f32 %v920, %v939
    %v948 = vmax.f32 %v944, 0.0
    %v949 = vmax.f32 %v945, 0.0
    %v950 = vmax.f32 %v946, 0.0
    %v951 = vmax.f32 %v947, 0.0
    %v952 = vld [vmem:[#allocation5 + $0x800] sm:$0xff]
    %v953 = vld [vmem:[#allocation5 + $0x808] sm:$0xff]
    %v954 = vld [vmem:[#allocation5 + $0x810] sm:$0xff]
    %v955 = vld [vmem:[#allocation5 + $0x818] sm:$0xff]
    %v956 = vld [vmem:[#allocation5 + $0x820] sm:$0xff]
    %v957 = vld [vmem:[#allocation5 + $0x828] sm:$0xff]
    %v958 = vld [vmem:[#allocation5 + $0x830] sm:$0xff]
    %v959 = vld [vmem:[#allocation5 + $0x838] sm:$0xff]
    %v960 = vld [vmem:[#allocation5 + $0x840] sm:$0xff]
    %v961 = vld [vmem:[#allocation5 + $0x848] sm:$0xff]
    %v962 = vld [vmem:[#allocation5 + $0x850] sm:$0xff]
    %v963 = vld [vmem:[#allocation5 + $0x858] sm:$0xff]
    %v964 = vld [vmem:[#allocation5 + $0x860] sm:$0xff]
    %v965 = vld [vmem:[#allocation5 + $0x868] sm:$0xff]
    %v966 = vld [vmem:[#allocation5 + $0x870] sm:$0xff]
    %v967 = vld [vmem:[#allocation5 + $0x878] sm:$0xff]
    %v968 = vld [vmem:[#allocation5 + $0x880] sm:$0xff]
    %v969 = vld [vmem:[#allocation5 + $0x888] sm:$0xff]
    %v970 = vld [vmem:[#allocation5 + $0x890] sm:$0xff]
    %v971 = vld [vmem:[#allocation5 + $0x898] sm:$0xff]
    %v972 = vld [vmem:[#allocation5 + $0x8a0] sm:$0xff]
    %v973 = vld [vmem:[#allocation5 + $0x8a8] sm:$0xff]
    %v974 = vld [vmem:[#allocation5 + $0x8b0] sm:$0xff]
    %v975 = vld [vmem:[#allocation5 + $0x8b8] sm:$0xff]
    %v976 = vld [vmem:[#allocation5 + $0x8c0] sm:$0xff]
    %v977 = vld [vmem:[#allocation5 + $0x8c8] sm:$0xff]
    %v978 = vld [vmem:[#allocation5 + $0x8d0] sm:$0xff]
    %v979 = vld [vmem:[#allocation5 + $0x8d8] sm:$0xff]
    %v980 = vld [vmem:[#allocation5 + $0x8e0] sm:$0xff]
    %v981 = vld [vmem:[#allocation5 + $0x8e8] sm:$0xff]
    %v982 = vld [vmem:[#allocation5 + $0x8f0] sm:$0xff]
    %v983 = vld [vmem:[#allocation5 + $0x8f8] sm:$0xff]
    %v984 = vld [vmem:[#allocation5 + $0x900] sm:$0xff]
    %v985 = vld [vmem:[#allocation5 + $0x908] sm:$0xff]
    %v986 = vld [vmem:[#allocation5 + $0x910] sm:$0xff]
    %v987 = vld [vmem:[#allocation5 + $0x918] sm:$0xff]
    %v988 = vld [vmem:[#allocation5 + $0x920] sm:$0xff]
    %v989 = vld [vmem:[#allocation5 + $0x928] sm:$0xff]
    %v990 = vld [vmem:[#allocation5 + $0x930] sm:$0xff]
    %v991 = vld [vmem:[#allocation5 + $0x938] sm:$0xff]
    %v992 = vld [vmem:[#allocation5 + $0x940] sm:$0xff]
    %v993 = vld [vmem:[#allocation5 + $0x948] sm:$0xff]
    %v994 = vld [vmem:[#allocation5 + $0x950] sm:$0xff]
    %v995 = vld [vmem:[#allocation5 + $0x958] sm:$0xff]
    %v996 = vld [vmem:[#allocation5 + $0x960] sm:$0xff]
    %v997 = vld [vmem:[#allocation5 + $0x968] sm:$0xff]
    %v998 = vld [vmem:[#allocation5 + $0x970] sm:$0xff]
    %v999 = vld [vmem:[#allocation5 + $0x978] sm:$0xff]
    %v1000 = vld [vmem:[#allocation5 + $0x980] sm:$0xff]
    %v1001 = vld [vmem:[#allocation5 + $0x988] sm:$0xff]
    %v1002 = vld [vmem:[#allocation5 + $0x990] sm:$0xff]
    %v1003 = vld [vmem:[#allocation5 + $0x998] sm:$0xff]
    %v1004 = vld [vmem:[#allocation5 + $0x9a0] sm:$0xff]
    %v1005 = vld [vmem:[#allocation5 + $0x9a8] sm:$0xff]
    %v1006 = vld [vmem:[#allocation5 + $0x9b0] sm:$0xff]
    %v1007 = vld [vmem:[#allocation5 + $0x9b8] sm:$0xff]
    %v1008 = vld [vmem:[#allocation5 + $0x9c0] sm:$0xff]
    %v1009 = vld [vmem:[#allocation5 + $0x9c8] sm:$0xff]
    %v1010 = vld [vmem:[#allocation5 + $0x9d0] sm:$0xff]
    %v1011 = vld [vmem:[#allocation5 + $0x9d8] sm:$0xff]
    %v1012 = vld [vmem:[#allocation5 + $0x9e0] sm:$0xff]
    %v1013 = vld [vmem:[#allocation5 + $0x9e8] sm:$0xff]
    %v1014 = vld [vmem:[#allocation5 + $0x9f0] sm:$0xff]
    %v1015 = vld [vmem:[#allocation5 + $0x9f8] sm:$0xff]
    %v1016 = vld [vmem:[#allocation5 + $0xa00] sm:$0xff]
    %v1017 = vld [vmem:[#allocation5 + $0xa08] sm:$0xff]
    %v1018 = vld [vmem:[#allocation5 + $0xa10] sm:$0xff]
    %v1019 = vld [vmem:[#allocation5 + $0xa18] sm:$0xff]
    %v1020 = vld [vmem:[#allocation5 + $0xa20] sm:$0xff]
    %v1021 = vld [vmem:[#allocation5 + $0xa28] sm:$0xff]
    %v1022 = vld [vmem:[#allocation5 + $0xa30] sm:$0xff]
    %v1023 = vld [vmem:[#allocation5 + $0xa38] sm:$0xff]
    %v1024 = vld [vmem:[#allocation5 + $0xa40] sm:$0xff]
    %v1025 = vld [vmem:[#allocation5 + $0xa48] sm:$0xff]
    %v1026 = vld [vmem:[#allocation5 + $0xa50] sm:$0xff]
    %v1027 = vld [vmem:[#allocation5 + $0xa58] sm:$0xff]
    %v1028 = vld [vmem:[#allocation5 + $0xa60] sm:$0xff]
    %v1029 = vld [vmem:[#allocation5 + $0xa68] sm:$0xff]
    %v1030 = vld [vmem:[#allocation5 + $0xa70] sm:$0xff]
    %v1031 = vld [vmem:[#allocation5 + $0xa78] sm:$0xff]
    %v1032 = vld [vmem:[#allocation5 + $0xa80] sm:$0xff]
    %v1033 = vld [vmem:[#allocation5 + $0xa88] sm:$0xff]
    %v1034 = vld [vmem:[#allocation5 + $0xa90] sm:$0xff]
    %v1035 = vld [vmem:[#allocation5 + $0xa98] sm:$0xff]
    %v1036 = vld [vmem:[#allocation5 + $0xaa0] sm:$0xff]
    %v1037 = vld [vmem:[#allocation5 + $0xaa8] sm:$0xff]
    %v1038 = vld [vmem:[#allocation5 + $0xab0] sm:$0xff]
    %v1039 = vld [vmem:[#allocation5 + $0xab8] sm:$0xff]
    %v1040 = vld [vmem:[#allocation5 + $0xac0] sm:$0xff]
    %v1041 = vld [vmem:[#allocation5 + $0xac8] sm:$0xff]
    %v1042 = vld [vmem:[#allocation5 + $0xad0] sm:$0xff]
    %v1043 = vld [vmem:[#allocation5 + $0xad8] sm:$0xff]
    %v1044 = vld [vmem:[#allocation5 + $0xae0] sm:$0xff]
    %v1045 = vld [vmem:[#allocation5 + $0xae8] sm:$0xff]
    %v1046 = vld [vmem:[#allocation5 + $0xaf0] sm:$0xff]
    %v1047 = vld [vmem:[#allocation5 + $0xaf8] sm:$0xff]
    %v1048 = vld [vmem:[#allocation5 + $0xb00] sm:$0xff]
    %v1049 = vld [vmem:[#allocation5 + $0xb08] sm:$0xff]
    %v1050 = vld [vmem:[#allocation5 + $0xb10] sm:$0xff]
    %v1051 = vld [vmem:[#allocation5 + $0xb18] sm:$0xff]
    %v1052 = vld [vmem:[#allocation5 + $0xb20] sm:$0xff]
    %v1053 = vld [vmem:[#allocation5 + $0xb28] sm:$0xff]
    %v1054 = vld [vmem:[#allocation5 + $0xb30] sm:$0xff]
    %v1055 = vld [vmem:[#allocation5 + $0xb38] sm:$0xff]
    %v1056 = vld [vmem:[#allocation5 + $0xb40] sm:$0xff]
    %v1057 = vld [vmem:[#allocation5 + $0xb48] sm:$0xff]
    %v1058 = vld [vmem:[#allocation5 + $0xb50] sm:$0xff]
    %v1059 = vld [vmem:[#allocation5 + $0xb58] sm:$0xff]
    %v1060 = vld [vmem:[#allocation5 + $0xb60] sm:$0xff]
    %v1061 = vld [vmem:[#allocation5 + $0xb68] sm:$0xff]
    %v1062 = vld [vmem:[#allocation5 + $0xb70] sm:$0xff]
    %v1063 = vld [vmem:[#allocation5 + $0xb78] sm:$0xff]
    %v1064 = vld [vmem:[#allocation5 + $0xb80] sm:$0xff]
    %v1065 = vld [vmem:[#allocation5 + $0xb88] sm:$0xff]
    %v1066 = vld [vmem:[#allocation5 + $0xb90] sm:$0xff]
    %v1067 = vld [vmem:[#allocation5 + $0xb98] sm:$0xff]
    %v1068 = vld [vmem:[#allocation5 + $0xba0] sm:$0xff]
    %v1069 = vld [vmem:[#allocation5 + $0xba8] sm:$0xff]
    %v1070 = vld [vmem:[#allocation5 + $0xbb0] sm:$0xff]
    %v1071 = vld [vmem:[#allocation5 + $0xbb8] sm:$0xff]
    %v1072 = vld [vmem:[#allocation5 + $0xbc0] sm:$0xff]
    %v1073 = vld [vmem:[#allocation5 + $0xbc8] sm:$0xff]
    %v1074 = vld [vmem:[#allocation5 + $0xbd0] sm:$0xff]
    %v1075 = vld [vmem:[#allocation5 + $0xbd8] sm:$0xff]
    %v1076 = vld [vmem:[#allocation5 + $0xbe0] sm:$0xff]
    %v1077 = vld [vmem:[#allocation5 + $0xbe8] sm:$0xff]
    %v1078 = vld [vmem:[#allocation5 + $0xbf0] sm:$0xff]
    %v1079 = vld [vmem:[#allocation5 + $0xbf8] sm:$0xff]
    %v1080 = vld [vmem:[#allocation5 + $0xc00] sm:$0xff]
    %v1081 = vld [vmem:[#allocation5 + $0xc08] sm:$0xff]
    %v1082 = vld [vmem:[#allocation5 + $0xc10] sm:$0xff]
    %v1083 = vld [vmem:[#allocation5 + $0xc18] sm:$0xff]
    %v1084 = vld [vmem:[#allocation5 + $0xc20] sm:$0xff]
    %v1085 = vld [vmem:[#allocation5 + $0xc28] sm:$0xff]
    %v1086 = vld [vmem:[#allocation5 + $0xc30] sm:$0xff]
    %v1087 = vld [vmem:[#allocation5 + $0xc38] sm:$0xff]
    %v1088 = vld [vmem:[#allocation5 + $0xc40] sm:$0xff]
    %v1089 = vld [vmem:[#allocation5 + $0xc48] sm:$0xff]
    %v1090 = vld [vmem:[#allocation5 + $0xc50] sm:$0xff]
    %v1091 = vld [vmem:[#allocation5 + $0xc58] sm:$0xff]
    %v1092 = vld [vmem:[#allocation5 + $0xc60] sm:$0xff]
    %v1093 = vld [vmem:[#allocation5 + $0xc68] sm:$0xff]
    %v1094 = vld [vmem:[#allocation5 + $0xc70] sm:$0xff]
    %v1095 = vld [vmem:[#allocation5 + $0xc78] sm:$0xff]
    %v1096 = vld [vmem:[#allocation5 + $0xc80] sm:$0xff]
    %v1097 = vld [vmem:[#allocation5 + $0xc88] sm:$0xff]
    %v1098 = vld [vmem:[#allocation5 + $0xc90] sm:$0xff]
    %v1099 = vld [vmem:[#allocation5 + $0xc98] sm:$0xff]
    %v1100 = vld [vmem:[#allocation5 + $0xca0] sm:$0xff]
    %v1101 = vld [vmem:[#allocation5 + $0xca8] sm:$0xff]
    %v1102 = vld [vmem:[#allocation5 + $0xcb0] sm:$0xff]
    %v1103 = vld [vmem:[#allocation5 + $0xcb8] sm:$0xff]
    %v1104 = vld [vmem:[#allocation5 + $0xcc0] sm:$0xff]
    %v1105 = vld [vmem:[#allocation5 + $0xcc8] sm:$0xff]
    %v1106 = vld [vmem:[#allocation5 + $0xcd0] sm:$0xff]
    %v1107 = vld [vmem:[#allocation5 + $0xcd8] sm:$0xff]
    %v1108 = vld [vmem:[#allocation5 + $0xce0] sm:$0xff]
    %v1109 = vld [vmem:[#allocation5 + $0xce8] sm:$0xff]
    %v1110 = vld [vmem:[#allocation5 + $0xcf0] sm:$0xff]
    %v1111 = vld [vmem:[#allocation5 + $0xcf8] sm:$0xff]
    %v1112 = vld [vmem:[#allocation5 + $0xd00] sm:$0xff]
    %v1113 = vld [vmem:[#allocation5 + $0xd08] sm:$0xff]
    %v1114 = vld [vmem:[#allocation5 + $0xd10] sm:$0xff]
    %v1115 = vld [vmem:[#allocation5 + $0xd18] sm:$0xff]
    %v1116 = vld [vmem:[#allocation5 + $0xd20] sm:$0xff]
    %v1117 = vld [vmem:[#allocation5 + $0xd28] sm:$0xff]
    %v1118 = vld [vmem:[#allocation5 + $0xd30] sm:$0xff]
    %v1119 = vld [vmem:[#allocation5 + $0xd38] sm:$0xff]
    %v1120 = vld [vmem:[#allocation5 + $0xd40] sm:$0xff]
    %v1121 = vld [vmem:[#allocation5 + $0xd48] sm:$0xff]
    %v1122 = vld [vmem:[#allocation5 + $0xd50] sm:$0xff]
    %v1123 = vld [vmem:[#allocation5 + $0xd58] sm:$0xff]
    %v1124 = vld [vmem:[#allocation5 + $0xd60] sm:$0xff]
    %v1125 = vld [vmem:[#allocation5 + $0xd68] sm:$0xff]
    %v1126 = vld [vmem:[#allocation5 + $0xd70] sm:$0xff]
    %v1127 = vld [vmem:[#allocation5 + $0xd78] sm:$0xff]
    %v1128 = vld [vmem:[#allocation5 + $0xd80] sm:$0xff]
    %v1129 = vld [vmem:[#allocation5 + $0xd88] sm:$0xff]
    %v1130 = vld [vmem:[#allocation5 + $0xd90] sm:$0xff]
    %v1131 = vld [vmem:[#allocation5 + $0xd98] sm:$0xff]
    %v1132 = vld [vmem:[#allocation5 + $0xda0] sm:$0xff]
    %v1133 = vld [vmem:[#allocation5 + $0xda8] sm:$0xff]
    %v1134 = vld [vmem:[#allocation5 + $0xdb0] sm:$0xff]
    %v1135 = vld [vmem:[#allocation5 + $0xdb8] sm:$0xff]
    %v1136 = vld [vmem:[#allocation5 + $0xdc0] sm:$0xff]
    %v1137 = vld [vmem:[#allocation5 + $0xdc8] sm:$0xff]
    %v1138 = vld [vmem:[#allocation5 + $0xdd0] sm:$0xff]
    %v1139 = vld [vmem:[#allocation5 + $0xdd8] sm:$0xff]
    %v1140 = vld [vmem:[#allocation5 + $0xde0] sm:$0xff]
    %v1141 = vld [vmem:[#allocation5 + $0xde8] sm:$0xff]
    %v1142 = vld [vmem:[#allocation5 + $0xdf0] sm:$0xff]
    %v1143 = vld [vmem:[#allocation5 + $0xdf8] sm:$0xff]
    %v1144 = vld [vmem:[#allocation5 + $0xe00] sm:$0xff]
    %v1145 = vld [vmem:[#allocation5 + $0xe08] sm:$0xff]
    %v1146 = vld [vmem:[#allocation5 + $0xe10] sm:$0xff]
    %v1147 = vld [vmem:[#allocation5 + $0xe18] sm:$0xff]
    %v1148 = vld [vmem:[#allocation5 + $0xe20] sm:$0xff]
    %v1149 = vld [vmem:[#allocation5 + $0xe28] sm:$0xff]
    %v1150 = vld [vmem:[#allocation5 + $0xe30] sm:$0xff]
    %v1151 = vld [vmem:[#allocation5 + $0xe38] sm:$0xff]
    %v1152 = vld [vmem:[#allocation5 + $0xe40] sm:$0xff]
    %v1153 = vld [vmem:[#allocation5 + $0xe48] sm:$0xff]
    %v1154 = vld [vmem:[#allocation5 + $0xe50] sm:$0xff]
    %v1155 = vld [vmem:[#allocation5 + $0xe58] sm:$0xff]
    %v1156 = vld [vmem:[#allocation5 + $0xe60] sm:$0xff]
    %v1157 = vld [vmem:[#allocation5 + $0xe68] sm:$0xff]
    %v1158 = vld [vmem:[#allocation5 + $0xe70] sm:$0xff]
    %v1159 = vld [vmem:[#allocation5 + $0xe78] sm:$0xff]
    %v1160 = vld [vmem:[#allocation5 + $0xe80] sm:$0xff]
    %v1161 = vld [vmem:[#allocation5 + $0xe88] sm:$0xff]
    %v1162 = vld [vmem:[#allocation5 + $0xe90] sm:$0xff]
    %v1163 = vld [vmem:[#allocation5 + $0xe98] sm:$0xff]
    %v1164 = vld [vmem:[#allocation5 + $0xea0] sm:$0xff]
    %v1165 = vld [vmem:[#allocation5 + $0xea8] sm:$0xff]
    %v1166 = vld [vmem:[#allocation5 + $0xeb0] sm:$0xff]
    %v1167 = vld [vmem:[#allocation5 + $0xeb8] sm:$0xff]
    %v1168 = vld [vmem:[#allocation5 + $0xec0] sm:$0xff]
    %v1169 = vld [vmem:[#allocation5 + $0xec8] sm:$0xff]
    %v1170 = vld [vmem:[#allocation5 + $0xed0] sm:$0xff]
    %v1171 = vld [vmem:[#allocation5 + $0xed8] sm:$0xff]
    %v1172 = vld [vmem:[#allocation5 + $0xee0] sm:$0xff]
    %v1173 = vld [vmem:[#allocation5 + $0xee8] sm:$0xff]
    %v1174 = vld [vmem:[#allocation5 + $0xef0] sm:$0xff]
    %v1175 = vld [vmem:[#allocation5 + $0xef8] sm:$0xff]
    %v1176 = vld [vmem:[#allocation5 + $0xf00] sm:$0xff]
    %v1177 = vld [vmem:[#allocation5 + $0xf08] sm:$0xff]
    %v1178 = vld [vmem:[#allocation5 + $0xf10] sm:$0xff]
    %v1179 = vld [vmem:[#allocation5 + $0xf18] sm:$0xff]
    %v1180 = vld [vmem:[#allocation5 + $0xf20] sm:$0xff]
    %v1181 = vld [vmem:[#allocation5 + $0xf28] sm:$0xff]
    %v1182 = vld [vmem:[#allocation5 + $0xf30] sm:$0xff]
    %v1183 = vld [vmem:[#allocation5 + $0xf38] sm:$0xff]
    %v1184 = vld [vmem:[#allocation5 + $0xf40] sm:$0xff]
    %v1185 = vld [vmem:[#allocation5 + $0xf48] sm:$0xff]
    %v1186 = vld [vmem:[#allocation5 + $0xf50] sm:$0xff]
    %v1187 = vld [vmem:[#allocation5 + $0xf58] sm:$0xff]
    %v1188 = vld [vmem:[#allocation5 + $0xf60] sm:$0xff]
    %v1189 = vld [vmem:[#allocation5 + $0xf68] sm:$0xff]
    %v1190 = vld [vmem:[#allocation5 + $0xf70] sm:$0xff]
    %v1191 = vld [vmem:[#allocation5 + $0xf78] sm:$0xff]
    %v1192 = vld [vmem:[#allocation5 + $0xf80] sm:$0xff]
    %v1193 = vld [vmem:[#allocation5 + $0xf88] sm:$0xff]
    %v1194 = vld [vmem:[#allocation5 + $0xf90] sm:$0xff]
    %v1195 = vld [vmem:[#allocation5 + $0xf98] sm:$0xff]
    %v1196 = vld [vmem:[#allocation5 + $0xfa0] sm:$0xff]
    %v1197 = vld [vmem:[#allocation5 + $0xfa8] sm:$0xff]
    %v1198 = vld [vmem:[#allocation5 + $0xfb0] sm:$0xff]
    %v1199 = vld [vmem:[#allocation5 + $0xfb8] sm:$0xff]
    %v1200 = vld [vmem:[#allocation5 + $0xfc0] sm:$0xff]
    %v1201 = vld [vmem:[#allocation5 + $0xfc8] sm:$0xff]
    %v1202 = vld [vmem:[#allocation5 + $0xfd0] sm:$0xff]
    %v1203 = vld [vmem:[#allocation5 + $0xfd8] sm:$0xff]
    %v1204 = vld [vmem:[#allocation5 + $0xfe0] sm:$0xff]
    %v1205 = vld [vmem:[#allocation5 + $0xfe8] sm:$0xff]
    %v1206 = vld [vmem:[#allocation5 + $0xff0] sm:$0xff]
    %v1207 = vld [vmem:[#allocation5 + $0xff8] sm:$0xff]
    %1208 = vmatprep.subr.mxu0 %v953
    %1209 = vmatpush1.msra.mxu0 %v952
    %1210 = vmatprep.subr.mxu0 %v957
    %1211 = vmatpush1.msra.mxu0 %v956
    %1212 = vmatprep.subr.mxu0 %v961
    %1213 = vmatpush1.msra.mxu0 %v960
    %1214 = vmatprep.subr.mxu0 %v965
    %1215 = vmatpush1.msra.mxu0 %v964
    %1216 = vmatprep.subr.mxu0 %v969
    %1217 = vmatpush1.msra.mxu0 %v968
    %1218 = vmatprep.subr.mxu0 %v973
    %1219 = vmatpush1.msra.mxu0 %v972
    %1220 = vmatprep.subr.mxu0 %v977
    %1221 = vmatpush1.msra.mxu0 %v976
    %1222 = vmatprep.subr.mxu0 %v981
    %1223 = vmatpush1.msra.mxu0 %v980
    %1224 = vmatprep.subr.mxu0 %v985
    %1225 = vmatpush1.msra.mxu0 %v984
    %1226 = vmatprep.subr.mxu0 %v989
    %1227 = vmatpush1.msra.mxu0 %v988
    %1228 = vmatprep.subr.mxu0 %v993
    %1229 = vmatpush1.msra.mxu0 %v992
    %1230 = vmatprep.subr.mxu0 %v997
    %1231 = vmatpush1.msra.mxu0 %v996
    %1232 = vmatprep.subr.mxu0 %v1001
    %1233 = vmatpush1.msra.mxu0 %v1000
    %1234 = vmatprep.subr.mxu0 %v1005
    %1235 = vmatpush1.msra.mxu0 %v1004
    %1236 = vmatprep.subr.mxu0 %v1009
    %1237 = vmatpush1.msra.mxu0 %v1008
    %1238 = vmatprep.subr.mxu0 %v1013
    %1239 = vmatpush1.msra.mxu0 %v1012
    %1240 = vmatprep.subr.mxu0 %v1017
    %1241 = vmatpush1.msra.mxu0 %v1016
    %1242 = vmatprep.subr.mxu0 %v1021
    %1243 = vmatpush1.msra.mxu0 %v1020
    %1244 = vmatprep.subr.mxu0 %v1025
    %1245 = vmatpush1.msra.mxu0 %v1024
    %1246 = vmatprep.subr.mxu0 %v1029
    %1247 = vmatpush1.msra.mxu0 %v1028
    %1248 = vmatprep.subr.mxu0 %v1033
    %1249 = vmatpush1.msra.mxu0 %v1032
    %1250 = vmatprep.subr.mxu0 %v1037
    %1251 = vmatpush1.msra.mxu0 %v1036
    %1252 = vmatprep.subr.mxu0 %v1041
    %1253 = vmatpush1.msra.mxu0 %v1040
    %1254 = vmatprep.subr.mxu0 %v1045
    %1255 = vmatpush1.msra.mxu0 %v1044
    %1256 = vmatprep.subr.mxu0 %v1049
    %1257 = vmatpush1.msra.mxu0 %v1048
    %1258 = vmatprep.subr.mxu0 %v1053
    %1259 = vmatpush1.msra.mxu0 %v1052
    %1260 = vmatprep.subr.mxu0 %v1057
    %1261 = vmatpush1.msra.mxu0 %v1056
    %1262 = vmatprep.subr.mxu0 %v1061
    %1263 = vmatpush1.msra.mxu0 %v1060
    %1264 = vmatprep.subr.mxu0 %v1065
    %1265 = vmatpush1.msra.mxu0 %v1064
    %1266 = vmatprep.subr.mxu0 %v1069
    %1267 = vmatpush1.msra.mxu0 %v1068
    %1268 = vmatprep.subr.mxu0 %v1073
    %1269 = vmatpush1.msra.mxu0 %v1072
    %1270 = vmatprep.subr.mxu0 %v1077
    %1271 = vmatpush1.msra.mxu0 %v1076
    %1272 = vmatprep.mubr.f32.mxu0 %v949
    %1273 = vmatmul.mubr.f32.gmra.mrb[0].mxu0 %v948
    %v1274 = vpop.f32.mrb[0].mxu0
    %v1275 = vadd.f32 %v222, %v1274
    %v1276 = vpop.f32.mrb[0].mxu0
    %v1277 = vadd.f32 %v224, %v1276
    %1278 = vdwg.mxu0
    %1279 = vmatprep.subr.mxu0 %v1081
    %1280 = vmatpush1.msra.mxu0 %v1080
    %1281 = vmatprep.subr.mxu0 %v1085
    %1282 = vmatpush1.msra.mxu0 %v1084
    %1283 = vmatprep.subr.mxu0 %v1089
    %1284 = vmatpush1.msra.mxu0 %v1088
    %1285 = vmatprep.subr.mxu0 %v1093
    %1286 = vmatpush1.msra.mxu0 %v1092
    %1287 = vmatprep.subr.mxu0 %v1097
    %1288 = vmatpush1.msra.mxu0 %v1096
    %1289 = vmatprep.subr.mxu0 %v1101
    %1290 = vmatpush1.msra.mxu0 %v1100
    %1291 = vmatprep.subr.mxu0 %v1105
    %1292 = vmatpush1.msra.mxu0 %v1104
    %1293 = vmatprep.subr.mxu0 %v1109
    %1294 = vmatpush1.msra.mxu0 %v1108
    %1295 = vmatprep.subr.mxu0 %v1113
    %1296 = vmatpush1.msra.mxu0 %v1112
    %1297 = vmatprep.subr.mxu0 %v1117
    %1298 = vmatpush1.msra.mxu0 %v1116
    %1299 = vmatprep.subr.mxu0 %v1121
    %1300 = vmatpush1.msra.mxu0 %v1120
    %1301 = vmatprep.subr.mxu0 %v1125
    %1302 = vmatpush1.msra.mxu0 %v1124
    %1303 = vmatprep.subr.mxu0 %v1129
    %1304 = vmatpush1.msra.mxu0 %v1128
    %1305 = vmatprep.subr.mxu0 %v1133
    %1306 = vmatpush1.msra.mxu0 %v1132
    %1307 = vmatprep.subr.mxu0 %v1137
    %1308 = vmatpush1.msra.mxu0 %v1136
    %1309 = vmatprep.subr.mxu0 %v1141
    %1310 = vmatpush1.msra.mxu0 %v1140
    %1311 = vmatprep.subr.mxu0 %v1145
    %1312 = vmatpush1.msra.mxu0 %v1144
    %1313 = vmatprep.subr.mxu0 %v1149
    %1314 = vmatpush1.msra.mxu0 %v1148
    %1315 = vmatprep.subr.mxu0 %v1153
    %1316 = vmatpush1.msra.mxu0 %v1152
    %1317 = vmatprep.subr.mxu0 %v1157
    %1318 = vmatpush1.msra.mxu0 %v1156
    %1319 = vmatprep.subr.mxu0 %v1161
    %1320 = vmatpush1.msra.mxu0 %v1160
    %1321 = vmatprep.subr.mxu0 %v1165
    %1322 = vmatpush1.msra.mxu0 %v1164
    %1323 = vmatprep.subr.mxu0 %v1169
    %1324 = vmatpush1.msra.mxu0 %v1168
    %1325 = vmatprep.subr.mxu0 %v1173
    %1326 = vmatpush1.msra.mxu0 %v1172
    %1327 = vmatprep.subr.mxu0 %v1177
    %1328 = vmatpush1.msra.mxu0 %v1176
    %1329 = vmatprep.subr.mxu0 %v1181
    %1330 = vmatpush1.msra.mxu0 %v1180
    %1331 = vmatprep.subr.mxu0 %v1185
    %1332 = vmatpush1.msra.mxu0 %v1184
    %1333 = vmatprep.subr.mxu0 %v1189
    %1334 = vmatpush1.msra.mxu0 %v1188
    %1335 = vmatprep.subr.mxu0 %v1193
    %1336 = vmatpush1.msra.mxu0 %v1192
    %1337 = vmatprep.subr.mxu0 %v1197
    %1338 = vmatpush1.msra.mxu0 %v1196
    %1339 = vmatprep.subr.mxu0 %v1201
    %1340 = vmatpush1.msra.mxu0 %v1200
    %1341 = vmatprep.subr.mxu0 %v1205
    %1342 = vmatpush1.msra.mxu0 %v1204
    %1343 = vmatprep.mubr.f32.mxu0 %v951
    %1344 = vmatmul.mubr.f32.gmra.mrb[0].mxu0 %v950
    %v1345 = vpop.f32.mrb[0].mxu0
    %v1346 = vadd.f32 %v1275, %v1345
    %v1347 = vpop.f32.mrb[0].mxu0
    %v1348 = vadd.f32 %v1277, %v1347
    %1349 = vdwg.mxu0
    %1350 = vmatprep.subr.mxu0 %v955
    %1351 = vmatpush1.msra.mxu0 %v954
    %1352 = vmatprep.subr.mxu0 %v959
    %1353 = vmatpush1.msra.mxu0 %v958
    %1354 = vmatprep.subr.mxu0 %v963
    %1355 = vmatpush1.msra.mxu0 %v962
    %1356 = vmatprep.subr.mxu0 %v967
    %1357 = vmatpush1.msra.mxu0 %v966
    %1358 = vmatprep.subr.mxu0 %v971
    %1359 = vmatpush1.msra.mxu0 %v970
    %1360 = vmatprep.subr.mxu0 %v975
    %1361 = vmatpush1.msra.mxu0 %v974
    %1362 = vmatprep.subr.mxu0 %v979
    %1363 = vmatpush1.msra.mxu0 %v978
    %1364 = vmatprep.subr.mxu0 %v983
    %1365 = vmatpush1.msra.mxu0 %v982
    %1366 = vmatprep.subr.mxu0 %v987
    %1367 = vmatpush1.msra.mxu0 %v986
    %1368 = vmatprep.subr.mxu0 %v991
    %1369 = vmatpush1.msra.mxu0 %v990
    %1370 = vmatprep.subr.mxu0 %v995
    %1371 = vmatpush1.msra.mxu0 %v994
    %1372 = vmatprep.subr.mxu0 %v999
    %1373 = vmatpush1.msra.mxu0 %v998
    %1374 = vmatprep.subr.mxu0 %v1003
    %1375 = vmatpush1.msra.mxu0 %v1002
    %1376 = vmatprep.subr.mxu0 %v1007
    %1377 = vmatpush1.msra.mxu0 %v1006
    %1378 = vmatprep.subr.mxu0 %v1011
    %1379 = vmatpush1.msra.mxu0 %v1010
    %1380 = vmatprep.subr.mxu0 %v1015
    %1381 = vmatpush1.msra.mxu0 %v1014
    %1382 = vmatprep.subr.mxu0 %v1019
    %1383 = vmatpush1.msra.mxu0 %v1018
    %1384 = vmatprep.subr.mxu0 %v1023
    %1385 = vmatpush1.msra.mxu0 %v1022
    %1386 = vmatprep.subr.mxu0 %v1027
    %1387 = vmatpush1.msra.mxu0 %v1026
    %1388 = vmatprep.subr.mxu0 %v1031
    %1389 = vmatpush1.msra.mxu0 %v1030
    %1390 = vmatprep.subr.mxu0 %v1035
    %1391 = vmatpush1.msra.mxu0 %v1034
    %1392 = vmatprep.subr.mxu0 %v1039
    %1393 = vmatpush1.msra.mxu0 %v1038
    %1394 = vmatprep.subr.mxu0 %v1043
    %1395 = vmatpush1.msra.mxu0 %v1042
    %1396 = vmatprep.subr.mxu0 %v1047
    %1397 = vmatpush1.msra.mxu0 %v1046
    %1398 = vmatprep.subr.mxu0 %v1051
    %1399 = vmatpush1.msra.mxu0 %v1050
    %1400 = vmatprep.subr.mxu0 %v1055
    %1401 = vmatpush1.msra.mxu0 %v1054
    %1402 = vmatprep.subr.mxu0 %v1059
    %1403 = vmatpush1.msra.mxu0 %v1058
    %1404 = vmatprep.subr.mxu0 %v1063
    %1405 = vmatpush1.msra.mxu0 %v1062
    %1406 = vmatprep.subr.mxu0 %v1067
    %1407 = vmatpush1.msra.mxu0 %v1066
    %1408 = vmatprep.subr.mxu0 %v1071
    %1409 = vmatpush1.msra.mxu0 %v1070
    %1410 = vmatprep.subr.mxu0 %v1075
    %1411 = vmatpush1.msra.mxu0 %v1074
    %1412 = vmatprep.subr.mxu0 %v1079
    %1413 = vmatpush1.msra.mxu0 %v1078
    %1414 = vmatprep.mubr.f32.mxu0 %v949
    %1415 = vmatmul.mubr.f32.gmra.mrb[0].mxu0 %v948
    %v1416 = vpop.f32.mrb[0].mxu0
    %v1417 = vadd.f32 %v293, %v1416
    %v1418 = vpop.f32.mrb[0].mxu0
    %v1419 = vadd.f32 %v295, %v1418
    %1420 = vdwg.mxu0
    %1421 = vmatprep.subr.mxu0 %v1083
    %1422 = vmatpush1.msra.mxu0 %v1082
    %1423 = vmatprep.subr.mxu0 %v1087
    %1424 = vmatpush1.msra.mxu0 %v1086
    %1425 = vmatprep.subr.mxu0 %v1091
    %1426 = vmatpush1.msra.mxu0 %v1090
    %1427 = vmatprep.subr.mxu0 %v1095
    %1428 = vmatpush1.msra.mxu0 %v1094
    %1429 = vmatprep.subr.mxu0 %v1099
    %1430 = vmatpush1.msra.mxu0 %v1098
    %1431 = vmatprep.subr.mxu0 %v1103
    %1432 = vmatpush1.msra.mxu0 %v1102
    %1433 = vmatprep.subr.mxu0 %v1107
    %1434 = vmatpush1.msra.mxu0 %v1106
    %1435 = vmatprep.subr.mxu0 %v1111
    %1436 = vmatpush1.msra.mxu0 %v1110
    %1437 = vmatprep.subr.mxu0 %v1115
    %1438 = vmatpush1.msra.mxu0 %v1114
    %1439 = vmatprep.subr.mxu0 %v1119
    %1440 = vmatpush1.msra.mxu0 %v1118
    %1441 = vmatprep.subr.mxu0 %v1123
    %1442 = vmatpush1.msra.mxu0 %v1122
    %1443 = vmatprep.subr.mxu0 %v1127
    %1444 = vmatpush1.msra.mxu0 %v1126
    %1445 = vmatprep.subr.mxu0 %v1131
    %1446 = vmatpush1.msra.mxu0 %v1130
    %1447 = vmatprep.subr.mxu0 %v1135
    %1448 = vmatpush1.msra.mxu0 %v1134
    %1449 = vmatprep.subr.mxu0 %v1139
    %1450 = vmatpush1.msra.mxu0 %v1138
    %1451 = vmatprep.subr.mxu0 %v1143
    %1452 = vmatpush1.msra.mxu0 %v1142
    %1453 = vmatprep.subr.mxu0 %v1147
    %1454 = vmatpush1.msra.mxu0 %v1146
    %1455 = vmatprep.subr.mxu0 %v1151
    %1456 = vmatpush1.msra.mxu0 %v1150
    %1457 = vmatprep.subr.mxu0 %v1155
    %1458 = vmatpush1.msra.mxu0 %v1154
    %1459 = vmatprep.subr.mxu0 %v1159
    %1460 = vmatpush1.msra.mxu0 %v1158
    %1461 = vmatprep.subr.mxu0 %v1163
    %1462 = vmatpush1.msra.mxu0 %v1162
    %1463 = vmatprep.subr.mxu0 %v1167
    %1464 = vmatpush1.msra.mxu0 %v1166
    %1465 = vmatprep.subr.mxu0 %v1171
    %1466 = vmatpush1.msra.mxu0 %v1170
    %1467 = vmatprep.subr.mxu0 %v1175
    %1468 = vmatpush1.msra.mxu0 %v1174
    %1469 = vmatprep.subr.mxu0 %v1179
    %1470 = vmatpush1.msra.mxu0 %v1178
    %1471 = vmatprep.subr.mxu0 %v1183
    %1472 = vmatpush1.msra.mxu0 %v1182
    %1473 = vmatprep.subr.mxu0 %v1187
    %1474 = vmatpush1.msra.mxu0 %v1186
    %1475 = vmatprep.subr.mxu0 %v1191
    %1476 = vmatpush1.msra.mxu0 %v1190
    %1477 = vmatprep.subr.mxu0 %v1195
    %1478 = vmatpush1.msra.mxu0 %v1194
    %1479 = vmatprep.subr.mxu0 %v1199
    %1480 = vmatpush1.msra.mxu0 %v1198
    %1481 = vmatprep.subr.mxu0 %v1203
    %1482 = vmatpush1.msra.mxu0 %v1202
    %1483 = vmatprep.subr.mxu0 %v1207
    %1484 = vmatpush1.msra.mxu0 %v1206
    %1485 = vmatprep.mubr.f32.mxu0 %v951
    %1486 = vmatmul.mubr.f32.gmra.mrb[0].mxu0 %v950
    %v1487 = vpop.f32.mrb[0].mxu0
    %v1488 = vadd.f32 %v1417, %v1487
    %v1489 = vpop.f32.mrb[0].mxu0
    %v1490 = vadd.f32 %v1419, %v1489
    %1491 = vdwg.mxu0
    %s1492 = scalar_lea.vmem [#allocation8], 4
    %v1493 = vld [vmem:[%s1492] ss:$8 sm:$0xf]
    %v1495 = vlaneseq
    %v1496 = vshrl.u32 %v1495, 7
    %v1497 = vsub.s32 0, %v1496
    %v1498 = vrot.slane %v1493, %v1497
    %v1499 = vlaneseq
    %v1500 = vshrl.u32 %v1499, 7
    %v1501 = vsub.s32 1, %v1500
    %v1502 = vrot.slane %v1493, %v1501
    %v1503 = vlaneseq
    %v1504 = vshrl.u32 %v1503, 7
    %v1505 = vsub.s32 2, %v1504
    %v1506 = vrot.slane %v1493, %v1505
    %v1507 = vlaneseq
    %v1508 = vshrl.u32 %v1507, 7
    %v1509 = vsub.s32 3, %v1508
    %v1510 = vrot.slane %v1493, %v1509
    %v1515 = vmul.f32 %v1346, %v1498
    %v1516 = vmul.f32 %v1348, %v1502
    %v1517 = vmul.f32 %v1488, %v1506
    %v1518 = vmul.f32 %v1490, %v1510
    %s1519 = scalar_lea.vmem [#allocation8], 5
    %v1520 = vld [vmem:[%s1519] ss:$8 sm:$0xf]
    %v1522 = vlaneseq
    %v1523 = vshrl.u32 %v1522, 7
    %v1524 = vsub.s32 0, %v1523
    %v1525 = vrot.slane %v1520, %v1524
    %v1526 = vlaneseq
    %v1527 = vshrl.u32 %v1526, 7
    %v1528 = vsub.s32 1, %v1527
    %v1529 = vrot.slane %v1520, %v1528
    %v1530 = vlaneseq
    %v1531 = vshrl.u32 %v1530, 7
    %v1532 = vsub.s32 2, %v1531
    %v1533 = vrot.slane %v1520, %v1532
    %v1534 = vlaneseq
    %v1535 = vshrl.u32 %v1534, 7
    %v1536 = vsub.s32 3, %v1535
    %v1537 = vrot.slane %v1520, %v1536
    %v1542 = vadd.f32 %v1515, %v1525
    %v1543 = vadd.f32 %v1516, %v1529
    %v1544 = vadd.f32 %v1517, %v1533
    %v1545 = vadd.f32 %v1518, %v1537
    %v1546 = vmax.f32 %v1542, 0.0
    %v1547 = vmax.f32 %v1543, 0.0
    %v1548 = vmax.f32 %v1544, 0.0
    %v1549 = vmax.f32 %v1545, 0.0
    %v1550 = vld [vmem:[#allocation5 + $0x1000] sm:$0xff]
    %v1551 = vld [vmem:[#allocation5 + $0x1008] sm:$0xff]
    %v1552 = vld [vmem:[#allocation5 + $0x1010] sm:$0xff]
    %v1553 = vld [vmem:[#allocation5 + $0x1018] sm:$0xff]
    %v1554 = vld [vmem:[#allocation5 + $0x1020] sm:$0xff]
    %v1555 = vld [vmem:[#allocation5 + $0x1028] sm:$0xff]
    %v1556 = vld [vmem:[#allocation5 + $0x1030] sm:$0xff]
    %v1557 = vld [vmem:[#allocation5 + $0x1038] sm:$0xff]
    %v1558 = vld [vmem:[#allocation5 + $0x1040] sm:$0xff]
    %v1559 = vld [vmem:[#allocation5 + $0x1048] sm:$0xff]
    %v1560 = vld [vmem:[#allocation5 + $0x1050] sm:$0xff]
    %v1561 = vld [vmem:[#allocation5 + $0x1058] sm:$0xff]
    %v1562 = vld [vmem:[#allocation5 + $0x1060] sm:$0xff]
    %v1563 = vld [vmem:[#allocation5 + $0x1068] sm:$0xff]
    %v1564 = vld [vmem:[#allocation5 + $0x1070] sm:$0xff]
    %v1565 = vld [vmem:[#allocation5 + $0x1078] sm:$0xff]
    %v1566 = vld [vmem:[#allocation5 + $0x1080] sm:$0xff]
    %v1567 = vld [vmem:[#allocation5 + $0x1088] sm:$0xff]
    %v1568 = vld [vmem:[#allocation5 + $0x1090] sm:$0xff]
    %v1569 = vld [vmem:[#allocation5 + $0x1098] sm:$0xff]
    %v1570 = vld [vmem:[#allocation5 + $0x10a0] sm:$0xff]
    %v1571 = vld [vmem:[#allocation5 + $0x10a8] sm:$0xff]
    %v1572 = vld [vmem:[#allocation5 + $0x10b0] sm:$0xff]
    %v1573 = vld [vmem:[#allocation5 + $0x10b8] sm:$0xff]
    %v1574 = vld [vmem:[#allocation5 + $0x10c0] sm:$0xff]
    %v1575 = vld [vmem:[#allocation5 + $0x10c8] sm:$0xff]
    %v1576 = vld [vmem:[#allocation5 + $0x10d0] sm:$0xff]
    %v1577 = vld [vmem:[#allocation5 + $0x10d8] sm:$0xff]
    %v1578 = vld [vmem:[#allocation5 + $0x10e0] sm:$0xff]
    %v1579 = vld [vmem:[#allocation5 + $0x10e8] sm:$0xff]
    %v1580 = vld [vmem:[#allocation5 + $0x10f0] sm:$0xff]
    %v1581 = vld [vmem:[#allocation5 + $0x10f8] sm:$0xff]
    %v1582 = vld [vmem:[#allocation5 + $0x1100] sm:$0xff]
    %v1583 = vld [vmem:[#allocation5 + $0x1108] sm:$0xff]
    %v1584 = vld [vmem:[#allocation5 + $0x1110] sm:$0xff]
    %v1585 = vld [vmem:[#allocation5 + $0x1118] sm:$0xff]
    %v1586 = vld [vmem:[#allocation5 + $0x1120] sm:$0xff]
    %v1587 = vld [vmem:[#allocation5 + $0x1128] sm:$0xff]
    %v1588 = vld [vmem:[#allocation5 + $0x1130] sm:$0xff]
    %v1589 = vld [vmem:[#allocation5 + $0x1138] sm:$0xff]
    %v1590 = vld [vmem:[#allocation5 + $0x1140] sm:$0xff]
    %v1591 = vld [vmem:[#allocation5 + $0x1148] sm:$0xff]
    %v1592 = vld [vmem:[#allocation5 + $0x1150] sm:$0xff]
    %v1593 = vld [vmem:[#allocation5 + $0x1158] sm:$0xff]
    %v1594 = vld [vmem:[#allocation5 + $0x1160] sm:$0xff]
    %v1595 = vld [vmem:[#allocation5 + $0x1168] sm:$0xff]
    %v1596 = vld [vmem:[#allocation5 + $0x1170] sm:$0xff]
    %v1597 = vld [vmem:[#allocation5 + $0x1178] sm:$0xff]
    %v1598 = vld [vmem:[#allocation5 + $0x1180] sm:$0xff]
    %v1599 = vld [vmem:[#allocation5 + $0x1188] sm:$0xff]
    %v1600 = vld [vmem:[#allocation5 + $0x1190] sm:$0xff]
    %v1601 = vld [vmem:[#allocation5 + $0x1198] sm:$0xff]
    %v1602 = vld [vmem:[#allocation5 + $0x11a0] sm:$0xff]
    %v1603 = vld [vmem:[#allocation5 + $0x11a8] sm:$0xff]
    %v1604 = vld [vmem:[#allocation5 + $0x11b0] sm:$0xff]
    %v1605 = vld [vmem:[#allocation5 + $0x11b8] sm:$0xff]
    %v1606 = vld [vmem:[#allocation5 + $0x11c0] sm:$0xff]
    %v1607 = vld [vmem:[#allocation5 + $0x11c8] sm:$0xff]
    %v1608 = vld [vmem:[#allocation5 + $0x11d0] sm:$0xff]
    %v1609 = vld [vmem:[#allocation5 + $0x11d8] sm:$0xff]
    %v1610 = vld [vmem:[#allocation5 + $0x11e0] sm:$0xff]
    %v1611 = vld [vmem:[#allocation5 + $0x11e8] sm:$0xff]
    %v1612 = vld [vmem:[#allocation5 + $0x11f0] sm:$0xff]
    %v1613 = vld [vmem:[#allocation5 + $0x11f8] sm:$0xff]
    %v1614 = vld [vmem:[#allocation5 + $0x1200] sm:$0xff]
    %v1615 = vld [vmem:[#allocation5 + $0x1208] sm:$0xff]
    %v1616 = vld [vmem:[#allocation5 + $0x1210] sm:$0xff]
    %v1617 = vld [vmem:[#allocation5 + $0x1218] sm:$0xff]
    %v1618 = vld [vmem:[#allocation5 + $0x1220] sm:$0xff]
    %v1619 = vld [vmem:[#allocation5 + $0x1228] sm:$0xff]
    %v1620 = vld [vmem:[#allocation5 + $0x1230] sm:$0xff]
    %v1621 = vld [vmem:[#allocation5 + $0x1238] sm:$0xff]
    %v1622 = vld [vmem:[#allocation5 + $0x1240] sm:$0xff]
    %v1623 = vld [vmem:[#allocation5 + $0x1248] sm:$0xff]
    %v1624 = vld [vmem:[#allocation5 + $0x1250] sm:$0xff]
    %v1625 = vld [vmem:[#allocation5 + $0x1258] sm:$0xff]
    %v1626 = vld [vmem:[#allocation5 + $0x1260] sm:$0xff]
    %v1627 = vld [vmem:[#allocation5 + $0x1268] sm:$0xff]
    %v1628 = vld [vmem:[#allocation5 + $0x1270] sm:$0xff]
    %v1629 = vld [vmem:[#allocation5 + $0x1278] sm:$0xff]
    %v1630 = vld [vmem:[#allocation5 + $0x1280] sm:$0xff]
    %v1631 = vld [vmem:[#allocation5 + $0x1288] sm:$0xff]
    %v1632 = vld [vmem:[#allocation5 + $0x1290] sm:$0xff]
    %v1633 = vld [vmem:[#allocation5 + $0x1298] sm:$0xff]
    %v1634 = vld [vmem:[#allocation5 + $0x12a0] sm:$0xff]
    %v1635 = vld [vmem:[#allocation5 + $0x12a8] sm:$0xff]
    %v1636 = vld [vmem:[#allocation5 + $0x12b0] sm:$0xff]
    %v1637 = vld [vmem:[#allocation5 + $0x12b8] sm:$0xff]
    %v1638 = vld [vmem:[#allocation5 + $0x12c0] sm:$0xff]
    %v1639 = vld [vmem:[#allocation5 + $0x12c8] sm:$0xff]
    %v1640 = vld [vmem:[#allocation5 + $0x12d0] sm:$0xff]
    %v1641 = vld [vmem:[#allocation5 + $0x12d8] sm:$0xff]
    %v1642 = vld [vmem:[#allocation5 + $0x12e0] sm:$0xff]
    %v1643 = vld [vmem:[#allocation5 + $0x12e8] sm:$0xff]
    %v1644 = vld [vmem:[#allocation5 + $0x12f0] sm:$0xff]
    %v1645 = vld [vmem:[#allocation5 + $0x12f8] sm:$0xff]
    %v1646 = vld [vmem:[#allocation5 + $0x1300] sm:$0xff]
    %v1647 = vld [vmem:[#allocation5 + $0x1308] sm:$0xff]
    %v1648 = vld [vmem:[#allocation5 + $0x1310] sm:$0xff]
    %v1649 = vld [vmem:[#allocation5 + $0x1318] sm:$0xff]
    %v1650 = vld [vmem:[#allocation5 + $0x1320] sm:$0xff]
    %v1651 = vld [vmem:[#allocation5 + $0x1328] sm:$0xff]
    %v1652 = vld [vmem:[#allocation5 + $0x1330] sm:$0xff]
    %v1653 = vld [vmem:[#allocation5 + $0x1338] sm:$0xff]
    %v1654 = vld [vmem:[#allocation5 + $0x1340] sm:$0xff]
    %v1655 = vld [vmem:[#allocation5 + $0x1348] sm:$0xff]
    %v1656 = vld [vmem:[#allocation5 + $0x1350] sm:$0xff]
    %v1657 = vld [vmem:[#allocation5 + $0x1358] sm:$0xff]
    %v1658 = vld [vmem:[#allocation5 + $0x1360] sm:$0xff]
    %v1659 = vld [vmem:[#allocation5 + $0x1368] sm:$0xff]
    %v1660 = vld [vmem:[#allocation5 + $0x1370] sm:$0xff]
    %v1661 = vld [vmem:[#allocation5 + $0x1378] sm:$0xff]
    %v1662 = vld [vmem:[#allocation5 + $0x1380] sm:$0xff]
    %v1663 = vld [vmem:[#allocation5 + $0x1388] sm:$0xff]
    %v1664 = vld [vmem:[#allocation5 + $0x1390] sm:$0xff]
    %v1665 = vld [vmem:[#allocation5 + $0x1398] sm:$0xff]
    %v1666 = vld [vmem:[#allocation5 + $0x13a0] sm:$0xff]
    %v1667 = vld [vmem:[#allocation5 + $0x13a8] sm:$0xff]
    %v1668 = vld [vmem:[#allocation5 + $0x13b0] sm:$0xff]
    %v1669 = vld [vmem:[#allocation5 + $0x13b8] sm:$0xff]
    %v1670 = vld [vmem:[#allocation5 + $0x13c0] sm:$0xff]
    %v1671 = vld [vmem:[#allocation5 + $0x13c8] sm:$0xff]
    %v1672 = vld [vmem:[#allocation5 + $0x13d0] sm:$0xff]
    %v1673 = vld [vmem:[#allocation5 + $0x13d8] sm:$0xff]
    %v1674 = vld [vmem:[#allocation5 + $0x13e0] sm:$0xff]
    %v1675 = vld [vmem:[#allocation5 + $0x13e8] sm:$0xff]
    %v1676 = vld [vmem:[#allocation5 + $0x13f0] sm:$0xff]
    %v1677 = vld [vmem:[#allocation5 + $0x13f8] sm:$0xff]
    %v1678 = vld [vmem:[#allocation5 + $0x1400] sm:$0xff]
    %v1679 = vld [vmem:[#allocation5 + $0x1408] sm:$0xff]
    %v1680 = vld [vmem:[#allocation5 + $0x1410] sm:$0xff]
    %v1681 = vld [vmem:[#allocation5 + $0x1418] sm:$0xff]
    %v1682 = vld [vmem:[#allocation5 + $0x1420] sm:$0xff]
    %v1683 = vld [vmem:[#allocation5 + $0x1428] sm:$0xff]
    %v1684 = vld [vmem:[#allocation5 + $0x1430] sm:$0xff]
    %v1685 = vld [vmem:[#allocation5 + $0x1438] sm:$0xff]
    %v1686 = vld [vmem:[#allocation5 + $0x1440] sm:$0xff]
    %v1687 = vld [vmem:[#allocation5 + $0x1448] sm:$0xff]
    %v1688 = vld [vmem:[#allocation5 + $0x1450] sm:$0xff]
    %v1689 = vld [vmem:[#allocation5 + $0x1458] sm:$0xff]
    %v1690 = vld [vmem:[#allocation5 + $0x1460] sm:$0xff]
    %v1691 = vld [vmem:[#allocation5 + $0x1468] sm:$0xff]
    %v1692 = vld [vmem:[#allocation5 + $0x1470] sm:$0xff]
    %v1693 = vld [vmem:[#allocation5 + $0x1478] sm:$0xff]
    %v1694 = vld [vmem:[#allocation5 + $0x1480] sm:$0xff]
    %v1695 = vld [vmem:[#allocation5 + $0x1488] sm:$0xff]
    %v1696 = vld [vmem:[#allocation5 + $0x1490] sm:$0xff]
    %v1697 = vld [vmem:[#allocation5 + $0x1498] sm:$0xff]
    %v1698 = vld [vmem:[#allocation5 + $0x14a0] sm:$0xff]
    %v1699 = vld [vmem:[#allocation5 + $0x14a8] sm:$0xff]
    %v1700 = vld [vmem:[#allocation5 + $0x14b0] sm:$0xff]
    %v1701 = vld [vmem:[#allocation5 + $0x14b8] sm:$0xff]
    %v1702 = vld [vmem:[#allocation5 + $0x14c0] sm:$0xff]
    %v1703 = vld [vmem:[#allocation5 + $0x14c8] sm:$0xff]
    %v1704 = vld [vmem:[#allocation5 + $0x14d0] sm:$0xff]
    %v1705 = vld [vmem:[#allocation5 + $0x14d8] sm:$0xff]
    %v1706 = vld [vmem:[#allocation5 + $0x14e0] sm:$0xff]
    %v1707 = vld [vmem:[#allocation5 + $0x14e8] sm:$0xff]
    %v1708 = vld [vmem:[#allocation5 + $0x14f0] sm:$0xff]
    %v1709 = vld [vmem:[#allocation5 + $0x14f8] sm:$0xff]
    %v1710 = vld [vmem:[#allocation5 + $0x1500] sm:$0xff]
    %v1711 = vld [vmem:[#allocation5 + $0x1508] sm:$0xff]
    %v1712 = vld [vmem:[#allocation5 + $0x1510] sm:$0xff]
    %v1713 = vld [vmem:[#allocation5 + $0x1518] sm:$0xff]
    %v1714 = vld [vmem:[#allocation5 + $0x1520] sm:$0xff]
    %v1715 = vld [vmem:[#allocation5 + $0x1528] sm:$0xff]
    %v1716 = vld [vmem:[#allocation5 + $0x1530] sm:$0xff]
    %v1717 = vld [vmem:[#allocation5 + $0x1538] sm:$0xff]
    %v1718 = vld [vmem:[#allocation5 + $0x1540] sm:$0xff]
    %v1719 = vld [vmem:[#allocation5 + $0x1548] sm:$0xff]
    %v1720 = vld [vmem:[#allocation5 + $0x1550] sm:$0xff]
    %v1721 = vld [vmem:[#allocation5 + $0x1558] sm:$0xff]
    %v1722 = vld [vmem:[#allocation5 + $0x1560] sm:$0xff]
    %v1723 = vld [vmem:[#allocation5 + $0x1568] sm:$0xff]
    %v1724 = vld [vmem:[#allocation5 + $0x1570] sm:$0xff]
    %v1725 = vld [vmem:[#allocation5 + $0x1578] sm:$0xff]
    %v1726 = vld [vmem:[#allocation5 + $0x1580] sm:$0xff]
    %v1727 = vld [vmem:[#allocation5 + $0x1588] sm:$0xff]
    %v1728 = vld [vmem:[#allocation5 + $0x1590] sm:$0xff]
    %v1729 = vld [vmem:[#allocation5 + $0x1598] sm:$0xff]
    %v1730 = vld [vmem:[#allocation5 + $0x15a0] sm:$0xff]
    %v1731 = vld [vmem:[#allocation5 + $0x15a8] sm:$0xff]
    %v1732 = vld [vmem:[#allocation5 + $0x15b0] sm:$0xff]
    %v1733 = vld [vmem:[#allocation5 + $0x15b8] sm:$0xff]
    %v1734 = vld [vmem:[#allocation5 + $0x15c0] sm:$0xff]
    %v1735 = vld [vmem:[#allocation5 + $0x15c8] sm:$0xff]
    %v1736 = vld [vmem:[#allocation5 + $0x15d0] sm:$0xff]
    %v1737 = vld [vmem:[#allocation5 + $0x15d8] sm:$0xff]
    %v1738 = vld [vmem:[#allocation5 + $0x15e0] sm:$0xff]
    %v1739 = vld [vmem:[#allocation5 + $0x15e8] sm:$0xff]
    %v1740 = vld [vmem:[#allocation5 + $0x15f0] sm:$0xff]
    %v1741 = vld [vmem:[#allocation5 + $0x15f8] sm:$0xff]
    %v1742 = vld [vmem:[#allocation5 + $0x1600] sm:$0xff]
    %v1743 = vld [vmem:[#allocation5 + $0x1608] sm:$0xff]
    %v1744 = vld [vmem:[#allocation5 + $0x1610] sm:$0xff]
    %v1745 = vld [vmem:[#allocation5 + $0x1618] sm:$0xff]
    %v1746 = vld [vmem:[#allocation5 + $0x1620] sm:$0xff]
    %v1747 = vld [vmem:[#allocation5 + $0x1628] sm:$0xff]
    %v1748 = vld [vmem:[#allocation5 + $0x1630] sm:$0xff]
    %v1749 = vld [vmem:[#allocation5 + $0x1638] sm:$0xff]
    %v1750 = vld [vmem:[#allocation5 + $0x1640] sm:$0xff]
    %v1751 = vld [vmem:[#allocation5 + $0x1648] sm:$0xff]
    %v1752 = vld [vmem:[#allocation5 + $0x1650] sm:$0xff]
    %v1753 = vld [vmem:[#allocation5 + $0x1658] sm:$0xff]
    %v1754 = vld [vmem:[#allocation5 + $0x1660] sm:$0xff]
    %v1755 = vld [vmem:[#allocation5 + $0x1668] sm:$0xff]
    %v1756 = vld [vmem:[#allocation5 + $0x1670] sm:$0xff]
    %v1757 = vld [vmem:[#allocation5 + $0x1678] sm:$0xff]
    %v1758 = vld [vmem:[#allocation5 + $0x1680] sm:$0xff]
    %v1759 = vld [vmem:[#allocation5 + $0x1688] sm:$0xff]
    %v1760 = vld [vmem:[#allocation5 + $0x1690] sm:$0xff]
    %v1761 = vld [vmem:[#allocation5 + $0x1698] sm:$0xff]
    %v1762 = vld [vmem:[#allocation5 + $0x16a0] sm:$0xff]
    %v1763 = vld [vmem:[#allocation5 + $0x16a8] sm:$0xff]
    %v1764 = vld [vmem:[#allocation5 + $0x16b0] sm:$0xff]
    %v1765 = vld [vmem:[#allocation5 + $0x16b8] sm:$0xff]
    %v1766 = vld [vmem:[#allocation5 + $0x16c0] sm:$0xff]
    %v1767 = vld [vmem:[#allocation5 + $0x16c8] sm:$0xff]
    %v1768 = vld [vmem:[#allocation5 + $0x16d0] sm:$0xff]
    %v1769 = vld [vmem:[#allocation5 + $0x16d8] sm:$0xff]
    %v1770 = vld [vmem:[#allocation5 + $0x16e0] sm:$0xff]
    %v1771 = vld [vmem:[#allocation5 + $0x16e8] sm:$0xff]
    %v1772 = vld [vmem:[#allocation5 + $0x16f0] sm:$0xff]
    %v1773 = vld [vmem:[#allocation5 + $0x16f8] sm:$0xff]
    %v1774 = vld [vmem:[#allocation5 + $0x1700] sm:$0xff]
    %v1775 = vld [vmem:[#allocation5 + $0x1708] sm:$0xff]
    %v1776 = vld [vmem:[#allocation5 + $0x1710] sm:$0xff]
    %v1777 = vld [vmem:[#allocation5 + $0x1718] sm:$0xff]
    %v1778 = vld [vmem:[#allocation5 + $0x1720] sm:$0xff]
    %v1779 = vld [vmem:[#allocation5 + $0x1728] sm:$0xff]
    %v1780 = vld [vmem:[#allocation5 + $0x1730] sm:$0xff]
    %v1781 = vld [vmem:[#allocation5 + $0x1738] sm:$0xff]
    %v1782 = vld [vmem:[#allocation5 + $0x1740] sm:$0xff]
    %v1783 = vld [vmem:[#allocation5 + $0x1748] sm:$0xff]
    %v1784 = vld [vmem:[#allocation5 + $0x1750] sm:$0xff]
    %v1785 = vld [vmem:[#allocation5 + $0x1758] sm:$0xff]
    %v1786 = vld [vmem:[#allocation5 + $0x1760] sm:$0xff]
    %v1787 = vld [vmem:[#allocation5 + $0x1768] sm:$0xff]
    %v1788 = vld [vmem:[#allocation5 + $0x1770] sm:$0xff]
    %v1789 = vld [vmem:[#allocation5 + $0x1778] sm:$0xff]
    %v1790 = vld [vmem:[#allocation5 + $0x1780] sm:$0xff]
    %v1791 = vld [vmem:[#allocation5 + $0x1788] sm:$0xff]
    %v1792 = vld [vmem:[#allocation5 + $0x1790] sm:$0xff]
    %v1793 = vld [vmem:[#allocation5 + $0x1798] sm:$0xff]
    %v1794 = vld [vmem:[#allocation5 + $0x17a0] sm:$0xff]
    %v1795 = vld [vmem:[#allocation5 + $0x17a8] sm:$0xff]
    %v1796 = vld [vmem:[#allocation5 + $0x17b0] sm:$0xff]
    %v1797 = vld [vmem:[#allocation5 + $0x17b8] sm:$0xff]
    %v1798 = vld [vmem:[#allocation5 + $0x17c0] sm:$0xff]
    %v1799 = vld [vmem:[#allocation5 + $0x17c8] sm:$0xff]
    %v1800 = vld [vmem:[#allocation5 + $0x17d0] sm:$0xff]
    %v1801 = vld [vmem:[#allocation5 + $0x17d8] sm:$0xff]
    %v1802 = vld [vmem:[#allocation5 + $0x17e0] sm:$0xff]
    %v1803 = vld [vmem:[#allocation5 + $0x17e8] sm:$0xff]
    %v1804 = vld [vmem:[#allocation5 + $0x17f0] sm:$0xff]
    %v1805 = vld [vmem:[#allocation5 + $0x17f8] sm:$0xff]
    %1806 = vmatprep.subr.mxu0 %v1551
    %1807 = vmatpush1.msra.mxu0 %v1550
    %1808 = vmatprep.subr.mxu0 %v1555
    %1809 = vmatpush1.msra.mxu0 %v1554
    %1810 = vmatprep.subr.mxu0 %v1559
    %1811 = vmatpush1.msra.mxu0 %v1558
    %1812 = vmatprep.subr.mxu0 %v1563
    %1813 = vmatpush1.msra.mxu0 %v1562
    %1814 = vmatprep.subr.mxu0 %v1567
    %1815 = vmatpush1.msra.mxu0 %v1566
    %1816 = vmatprep.subr.mxu0 %v1571
    %1817 = vmatpush1.msra.mxu0 %v1570
    %1818 = vmatprep.subr.mxu0 %v1575
    %1819 = vmatpush1.msra.mxu0 %v1574
    %1820 = vmatprep.subr.mxu0 %v1579
    %1821 = vmatpush1.msra.mxu0 %v1578
    %1822 = vmatprep.subr.mxu0 %v1583
    %1823 = vmatpush1.msra.mxu0 %v1582
    %1824 = vmatprep.subr.mxu0 %v1587
    %1825 = vmatpush1.msra.mxu0 %v1586
    %1826 = vmatprep.subr.mxu0 %v1591
    %1827 = vmatpush1.msra.mxu0 %v1590
    %1828 = vmatprep.subr.mxu0 %v1595
    %1829 = vmatpush1.msra.mxu0 %v1594
    %1830 = vmatprep.subr.mxu0 %v1599
    %1831 = vmatpush1.msra.mxu0 %v1598
    %1832 = vmatprep.subr.mxu0 %v1603
    %1833 = vmatpush1.msra.mxu0 %v1602
    %1834 = vmatprep.subr.mxu0 %v1607
    %1835 = vmatpush1.msra.mxu0 %v1606
    %1836 = vmatprep.subr.mxu0 %v1611
    %1837 = vmatpush1.msra.mxu0 %v1610
    %1838 = vmatprep.subr.mxu0 %v1615
    %1839 = vmatpush1.msra.mxu0 %v1614
    %1840 = vmatprep.subr.mxu0 %v1619
    %1841 = vmatpush1.msra.mxu0 %v1618
    %1842 = vmatprep.subr.mxu0 %v1623
    %1843 = vmatpush1.msra.mxu0 %v1622
    %1844 = vmatprep.subr.mxu0 %v1627
    %1845 = vmatpush1.msra.mxu0 %v1626
    %1846 = vmatprep.subr.mxu0 %v1631
    %1847 = vmatpush1.msra.mxu0 %v1630
    %1848 = vmatprep.subr.mxu0 %v1635
    %1849 = vmatpush1.msra.mxu0 %v1634
    %1850 = vmatprep.subr.mxu0 %v1639
    %1851 = vmatpush1.msra.mxu0 %v1638
    %1852 = vmatprep.subr.mxu0 %v1643
    %1853 = vmatpush1.msra.mxu0 %v1642
    %1854 = vmatprep.subr.mxu0 %v1647
    %1855 = vmatpush1.msra.mxu0 %v1646
    %1856 = vmatprep.subr.mxu0 %v1651
    %1857 = vmatpush1.msra.mxu0 %v1650
    %1858 = vmatprep.subr.mxu0 %v1655
    %1859 = vmatpush1.msra.mxu0 %v1654
    %1860 = vmatprep.subr.mxu0 %v1659
    %1861 = vmatpush1.msra.mxu0 %v1658
    %1862 = vmatprep.subr.mxu0 %v1663
    %1863 = vmatpush1.msra.mxu0 %v1662
    %1864 = vmatprep.subr.mxu0 %v1667
    %1865 = vmatpush1.msra.mxu0 %v1666
    %1866 = vmatprep.subr.mxu0 %v1671
    %1867 = vmatpush1.msra.mxu0 %v1670
    %1868 = vmatprep.subr.mxu0 %v1675
    %1869 = vmatpush1.msra.mxu0 %v1674
    %1870 = vmatprep.mubr.f32.mxu0 %v1547
    %1871 = vmatmul.mubr.f32.gmra.mrb[0].mxu0 %v1546
    %v1872 = vpop.f32.mrb[0].mxu0
    %v1873 = vadd.f32 0.0, %v1872
    %v1874 = vpop.f32.mrb[0].mxu0
    %v1875 = vadd.f32 0.0, %v1874
    %1876 = vdwg.mxu0
    %1877 = vmatprep.subr.mxu0 %v1679
    %1878 = vmatpush1.msra.mxu0 %v1678
    %1879 = vmatprep.subr.mxu0 %v1683
    %1880 = vmatpush1.msra.mxu0 %v1682
    %1881 = vmatprep.subr.mxu0 %v1687
    %1882 = vmatpush1.msra.mxu0 %v1686
    %1883 = vmatprep.subr.mxu0 %v1691
    %1884 = vmatpush1.msra.mxu0 %v1690
    %1885 = vmatprep.subr.mxu0 %v1695
    %1886 = vmatpush1.msra.mxu0 %v1694
    %1887 = vmatprep.subr.mxu0 %v1699
    %1888 = vmatpush1.msra.mxu0 %v1698
    %1889 = vmatprep.subr.mxu0 %v1703
    %1890 = vmatpush1.msra.mxu0 %v1702
    %1891 = vmatprep.subr.mxu0 %v1707
    %1892 = vmatpush1.msra.mxu0 %v1706
    %1893 = vmatprep.subr.mxu0 %v1711
    %1894 = vmatpush1.msra.mxu0 %v1710
    %1895 = vmatprep.subr.mxu0 %v1715
    %1896 = vmatpush1.msra.mxu0 %v1714
    %1897 = vmatprep.subr.mxu0 %v1719
    %1898 = vmatpush1.msra.mxu0 %v1718
    %1899 = vmatprep.subr.mxu0 %v1723
    %1900 = vmatpush1.msra.mxu0 %v1722
    %1901 = vmatprep.subr.mxu0 %v1727
    %1902 = vmatpush1.msra.mxu0 %v1726
    %1903 = vmatprep.subr.mxu0 %v1731
    %1904 = vmatpush1.msra.mxu0 %v1730
    %1905 = vmatprep.subr.mxu0 %v1735
    %1906 = vmatpush1.msra.mxu0 %v1734
    %1907 = vmatprep.subr.mxu0 %v1739
    %1908 = vmatpush1.msra.mxu0 %v1738
    %1909 = vmatprep.subr.mxu0 %v1743
    %1910 = vmatpush1.msra.mxu0 %v1742
    %1911 = vmatprep.subr.mxu0 %v1747
    %1912 = vmatpush1.msra.mxu0 %v1746
    %1913 = vmatprep.subr.mxu0 %v1751
    %1914 = vmatpush1.msra.mxu0 %v1750
    %1915 = vmatprep.subr.mxu0 %v1755
    %1916 = vmatpush1.msra.mxu0 %v1754
    %1917 = vmatprep.subr.mxu0 %v1759
    %1918 = vmatpush1.msra.mxu0 %v1758
    %1919 = vmatprep.subr.mxu0 %v1763
    %1920 = vmatpush1.msra.mxu0 %v1762
    %1921 = vmatprep.subr.mxu0 %v1767
    %1922 = vmatpush1.msra.mxu0 %v1766
    %1923 = vmatprep.subr.mxu0 %v1771
    %1924 = vmatpush1.msra.mxu0 %v1770
    %1925 = vmatprep.subr.mxu0 %v1775
    %1926 = vmatpush1.msra.mxu0 %v1774
    %1927 = vmatprep.subr.mxu0 %v1779
    %1928 = vmatpush1.msra.mxu0 %v1778
    %1929 = vmatprep.subr.mxu0 %v1783
    %1930 = vmatpush1.msra.mxu0 %v1782
    %1931 = vmatprep.subr.mxu0 %v1787
    %1932 = vmatpush1.msra.mxu0 %v1786
    %1933 = vmatprep.subr.mxu0 %v1791
    %1934 = vmatpush1.msra.mxu0 %v1790
    %1935 = vmatprep.subr.mxu0 %v1795
    %1936 = vmatpush1.msra.mxu0 %v1794
    %1937 = vmatprep.subr.mxu0 %v1799
    %1938 = vmatpush1.msra.mxu0 %v1798
    %1939 = vmatprep.subr.mxu0 %v1803
    %1940 = vmatpush1.msra.mxu0 %v1802
    %1941 = vmatprep.mubr.f32.mxu0 %v1549
    %1942 = vmatmul.mubr.f32.gmra.mrb[0].mxu0 %v1548
    %v1943 = vpop.f32.mrb[0].mxu0
    %v1944 = vadd.f32 %v1873, %v1943
    %v1945 = vpop.f32.mrb[0].mxu0
    %v1946 = vadd.f32 %v1875, %v1945
    %1947 = vdwg.mxu0
    %1948 = vmatprep.subr.mxu0 %v1553
    %1949 = vmatpush1.msra.mxu0 %v1552
    %1950 = vmatprep.subr.mxu0 %v1557
    %1951 = vmatpush1.msra.mxu0 %v1556
    %1952 = vmatprep.subr.mxu0 %v1561
    %1953 = vmatpush1.msra.mxu0 %v1560
    %1954 = vmatprep.subr.mxu0 %v1565
    %1955 = vmatpush1.msra.mxu0 %v1564
    %1956 = vmatprep.subr.mxu0 %v1569
    %1957 = vmatpush1.msra.mxu0 %v1568
    %1958 = vmatprep.subr.mxu0 %v1573
    %1959 = vmatpush1.msra.mxu0 %v1572
    %1960 = vmatprep.subr.mxu0 %v1577
    %1961 = vmatpush1.msra.mxu0 %v1576
    %1962 = vmatprep.subr.mxu0 %v1581
    %1963 = vmatpush1.msra.mxu0 %v1580
    %1964 = vmatprep.subr.mxu0 %v1585
    %1965 = vmatpush1.msra.mxu0 %v1584
    %1966 = vmatprep.subr.mxu0 %v1589
    %1967 = vmatpush1.msra.mxu0 %v1588
    %1968 = vmatprep.subr.mxu0 %v1593
    %1969 = vmatpush1.msra.mxu0 %v1592
    %1970 = vmatprep.subr.mxu0 %v1597
    %1971 = vmatpush1.msra.mxu0 %v1596
    %1972 = vmatprep.subr.mxu0 %v1601
    %1973 = vmatpush1.msra.mxu0 %v1600
    %1974 = vmatprep.subr.mxu0 %v1605
    %1975 = vmatpush1.msra.mxu0 %v1604
    %1976 = vmatprep.subr.mxu0 %v1609
    %1977 = vmatpush1.msra.mxu0 %v1608
    %1978 = vmatprep.subr.mxu0 %v1613
    %1979 = vmatpush1.msra.mxu0 %v1612
    %1980 = vmatprep.subr.mxu0 %v1617
    %1981 = vmatpush1.msra.mxu0 %v1616
    %1982 = vmatprep.subr.mxu0 %v1621
    %1983 = vmatpush1.msra.mxu0 %v1620
    %1984 = vmatprep.subr.mxu0 %v1625
    %1985 = vmatpush1.msra.mxu0 %v1624
    %1986 = vmatprep.subr.mxu0 %v1629
    %1987 = vmatpush1.msra.mxu0 %v1628
    %1988 = vmatprep.subr.mxu0 %v1633
    %1989 = vmatpush1.msra.mxu0 %v1632
    %1990 = vmatprep.subr.mxu0 %v1637
    %1991 = vmatpush1.msra.mxu0 %v1636
    %1992 = vmatprep.subr.mxu0 %v1641
    %1993 = vmatpush1.msra.mxu0 %v1640
    %1994 = vmatprep.subr.mxu0 %v1645
    %1995 = vmatpush1.msra.mxu0 %v1644
    %1996 = vmatprep.subr.mxu0 %v1649
    %1997 = vmatpush1.msra.mxu0 %v1648
    %1998 = vmatprep.subr.mxu0 %v1653
    %1999 = vmatpush1.msra.mxu0 %v1652
    %2000 = vmatprep.subr.mxu0 %v1657
    %2001 = vmatpush1.msra.mxu0 %v1656
    %2002 = vmatprep.subr.mxu0 %v1661
    %2003 = vmatpush1.msra.mxu0 %v1660
    %2004 = vmatprep.subr.mxu0 %v1665
    %2005 = vmatpush1.msra.mxu0 %v1664
    %2006 = vmatprep.subr.mxu0 %v1669
    %2007 = vmatpush1.msra.mxu0 %v1668
    %2008 = vmatprep.subr.mxu0 %v1673
    %2009 = vmatpush1.msra.mxu0 %v1672
    %2010 = vmatprep.subr.mxu0 %v1677
    %2011 = vmatpush1.msra.mxu0 %v1676
    %2012 = vmatprep.mubr.f32.mxu0 %v1547
    %2013 = vmatmul.mubr.f32.gmra.mrb[0].mxu0 %v1546
    %v2014 = vpop.f32.mrb[0].mxu0
    %v2015 = vadd.f32 0.0, %v2014
    %v2016 = vpop.f32.mrb[0].mxu0
    %v2017 = vadd.f32 0.0, %v2016
    %2018 = vdwg.mxu0
    %2019 = vmatprep.subr.mxu0 %v1681
    %2020 = vmatpush1.msra.mxu0 %v1680
    %2021 = vmatprep.subr.mxu0 %v1685
    %2022 = vmatpush1.msra.mxu0 %v1684
    %2023 = vmatprep.subr.mxu0 %v1689
    %2024 = vmatpush1.msra.mxu0 %v1688
    %2025 = vmatprep.subr.mxu0 %v1693
    %2026 = vmatpush1.msra.mxu0 %v1692
    %2027 = vmatprep.subr.mxu0 %v1697
    %2028 = vmatpush1.msra.mxu0 %v1696
    %2029 = vmatprep.subr.mxu0 %v1701
    %2030 = vmatpush1.msra.mxu0 %v1700
    %2031 = vmatprep.subr.mxu0 %v1705
    %2032 = vmatpush1.msra.mxu0 %v1704
    %2033 = vmatprep.subr.mxu0 %v1709
    %2034 = vmatpush1.msra.mxu0 %v1708
    %2035 = vmatprep.subr.mxu0 %v1713
    %2036 = vmatpush1.msra.mxu0 %v1712
    %2037 = vmatprep.subr.mxu0 %v1717
    %2038 = vmatpush1.msra.mxu0 %v1716
    %2039 = vmatprep.subr.mxu0 %v1721
    %2040 = vmatpush1.msra.mxu0 %v1720
    %2041 = vmatprep.subr.mxu0 %v1725
    %2042 = vmatpush1.msra.mxu0 %v1724
    %2043 = vmatprep.subr.mxu0 %v1729
    %2044 = vmatpush1.msra.mxu0 %v1728
    %2045 = vmatprep.subr.mxu0 %v1733
    %2046 = vmatpush1.msra.mxu0 %v1732
    %2047 = vmatprep.subr.mxu0 %v1737
    %2048 = vmatpush1.msra.mxu0 %v1736
    %2049 = vmatprep.subr.mxu0 %v1741
    %2050 = vmatpush1.msra.mxu0 %v1740
    %2051 = vmatprep.subr.mxu0 %v1745
    %2052 = vmatpush1.msra.mxu0 %v1744
    %2053 = vmatprep.subr.mxu0 %v1749
    %2054 = vmatpush1.msra.mxu0 %v1748
    %2055 = vmatprep.subr.mxu0 %v1753
    %2056 = vmatpush1.msra.mxu0 %v1752
    %2057 = vmatprep.subr.mxu0 %v1757
    %2058 = vmatpush1.msra.mxu0 %v1756
    %2059 = vmatprep.subr.mxu0 %v1761
    %2060 = vmatpush1.msra.mxu0 %v1760
    %2061 = vmatprep.subr.mxu0 %v1765
    %2062 = vmatpush1.msra.mxu0 %v1764
    %2063 = vmatprep.subr.mxu0 %v1769
    %2064 = vmatpush1.msra.mxu0 %v1768
    %2065 = vmatprep.subr.mxu0 %v1773
    %2066 = vmatpush1.msra.mxu0 %v1772
    %2067 = vmatprep.subr.mxu0 %v1777
    %2068 = vmatpush1.msra.mxu0 %v1776
    %2069 = vmatprep.subr.mxu0 %v1781
    %2070 = vmatpush1.msra.mxu0 %v1780
    %2071 = vmatprep.subr.mxu0 %v1785
    %2072 = vmatpush1.msra.mxu0 %v1784
    %2073 = vmatprep.subr.mxu0 %v1789
    %2074 = vmatpush1.msra.mxu0 %v1788
    %2075 = vmatprep.subr.mxu0 %v1793
    %2076 = vmatpush1.msra.mxu0 %v1792
    %2077 = vmatprep.subr.mxu0 %v1797
    %2078 = vmatpush1.msra.mxu0 %v1796
    %2079 = vmatprep.subr.mxu0 %v1801
    %2080 = vmatpush1.msra.mxu0 %v1800
    %2081 = vmatprep.subr.mxu0 %v1805
    %2082 = vmatpush1.msra.mxu0 %v1804
    %2083 = vmatprep.mubr.f32.mxu0 %v1549
    %2084 = vmatmul.mubr.f32.gmra.mrb[0].mxu0 %v1548
    %v2085 = vpop.f32.mrb[0].mxu0
    %v2086 = vadd.f32 %v2015, %v2085
    %v2087 = vpop.f32.mrb[0].mxu0
    %v2088 = vadd.f32 %v2017, %v2087
    %2089 = vdwg.mxu0
    %s2090 = scalar_lea.vmem [#allocation8], 6
    %v2091 = vld [vmem:[%s2090] ss:$8 sm:$0xf]
    %v2093 = vlaneseq
    %v2094 = vshrl.u32 %v2093, 7
    %v2095 = vsub.s32 0, %v2094
    %v2096 = vrot.slane %v2091, %v2095
    %v2097 = vlaneseq
    %v2098 = vshrl.u32 %v2097, 7
    %v2099 = vsub.s32 1, %v2098
    %v2100 = vrot.slane %v2091, %v2099
    %v2101 = vlaneseq
    %v2102 = vshrl.u32 %v2101, 7
    %v2103 = vsub.s32 2, %v2102
    %v2104 = vrot.slane %v2091, %v2103
    %v2105 = vlaneseq
    %v2106 = vshrl.u32 %v2105, 7
    %v2107 = vsub.s32 3, %v2106
    %v2108 = vrot.slane %v2091, %v2107
    %v2113 = vmul.f32 %v1944, %v2096
    %v2114 = vmul.f32 %v1946, %v2100
    %v2115 = vmul.f32 %v2086, %v2104
    %v2116 = vmul.f32 %v2088, %v2108
    %s2117 = scalar_lea.vmem [#allocation8], 7
    %v2118 = vld [vmem:[%s2117] ss:$8 sm:$0xf]
    %v2120 = vlaneseq
    %v2121 = vshrl.u32 %v2120, 7
    %v2122 = vsub.s32 0, %v2121
    %v2123 = vrot.slane %v2118, %v2122
    %v2124 = vlaneseq
    %v2125 = vshrl.u32 %v2124, 7
    %v2126 = vsub.s32 1, %v2125
    %v2127 = vrot.slane %v2118, %v2126
    %v2128 = vlaneseq
    %v2129 = vshrl.u32 %v2128, 7
    %v2130 = vsub.s32 2, %v2129
    %v2131 = vrot.slane %v2118, %v2130
    %v2132 = vlaneseq
    %v2133 = vshrl.u32 %v2132, 7
    %v2134 = vsub.s32 3, %v2133
    %v2135 = vrot.slane %v2118, %v2134
    %v2140 = vadd.f32 %v2113, %v2123
    %v2141 = vadd.f32 %v2114, %v2127
    %v2142 = vadd.f32 %v2115, %v2131
    %v2143 = vadd.f32 %v2116, %v2135
    %v2144 = vmax.f32 %v2140, 0.0
    %v2145 = vmax.f32 %v2141, 0.0
    %v2146 = vmax.f32 %v2142, 0.0
    %v2147 = vmax.f32 %v2143, 0.0
    %v2148 = vld [vmem:[#allocation5 + $0x1800] sm:$0xff]
    %v2149 = vld [vmem:[#allocation5 + $0x1808] sm:$0xff]
    %v2150 = vld [vmem:[#allocation5 + $0x1810] sm:$0xff]
    %v2151 = vld [vmem:[#allocation5 + $0x1818] sm:$0xff]
    %v2152 = vld [vmem:[#allocation5 + $0x1820] sm:$0xff]
    %v2153 = vld [vmem:[#allocation5 + $0x1828] sm:$0xff]
    %v2154 = vld [vmem:[#allocation5 + $0x1830] sm:$0xff]
    %v2155 = vld [vmem:[#allocation5 + $0x1838] sm:$0xff]
    %v2156 = vld [vmem:[#allocation5 + $0x1840] sm:$0xff]
    %v2157 = vld [vmem:[#allocation5 + $0x1848] sm:$0xff]
    %v2158 = vld [vmem:[#allocation5 + $0x1850] sm:$0xff]
    %v2159 = vld [vmem:[#allocation5 + $0x1858] sm:$0xff]
    %v2160 = vld [vmem:[#allocation5 + $0x1860] sm:$0xff]
    %v2161 = vld [vmem:[#allocation5 + $0x1868] sm:$0xff]
    %v2162 = vld [vmem:[#allocation5 + $0x1870] sm:$0xff]
    %v2163 = vld [vmem:[#allocation5 + $0x1878] sm:$0xff]
    %v2164 = vld [vmem:[#allocation5 + $0x1880] sm:$0xff]
    %v2165 = vld [vmem:[#allocation5 + $0x1888] sm:$0xff]
    %v2166 = vld [vmem:[#allocation5 + $0x1890] sm:$0xff]
    %v2167 = vld [vmem:[#allocation5 + $0x1898] sm:$0xff]
    %v2168 = vld [vmem:[#allocation5 + $0x18a0] sm:$0xff]
    %v2169 = vld [vmem:[#allocation5 + $0x18a8] sm:$0xff]
    %v2170 = vld [vmem:[#allocation5 + $0x18b0] sm:$0xff]
    %v2171 = vld [vmem:[#allocation5 + $0x18b8] sm:$0xff]
    %v2172 = vld [vmem:[#allocation5 + $0x18c0] sm:$0xff]
    %v2173 = vld [vmem:[#allocation5 + $0x18c8] sm:$0xff]
    %v2174 = vld [vmem:[#allocation5 + $0x18d0] sm:$0xff]
    %v2175 = vld [vmem:[#allocation5 + $0x18d8] sm:$0xff]
    %v2176 = vld [vmem:[#allocation5 + $0x18e0] sm:$0xff]
    %v2177 = vld [vmem:[#allocation5 + $0x18e8] sm:$0xff]
    %v2178 = vld [vmem:[#allocation5 + $0x18f0] sm:$0xff]
    %v2179 = vld [vmem:[#allocation5 + $0x18f8] sm:$0xff]
    %v2180 = vld [vmem:[#allocation5 + $0x1900] sm:$0xff]
    %v2181 = vld [vmem:[#allocation5 + $0x1908] sm:$0xff]
    %v2182 = vld [vmem:[#allocation5 + $0x1910] sm:$0xff]
    %v2183 = vld [vmem:[#allocation5 + $0x1918] sm:$0xff]
    %v2184 = vld [vmem:[#allocation5 + $0x1920] sm:$0xff]
    %v2185 = vld [vmem:[#allocation5 + $0x1928] sm:$0xff]
    %v2186 = vld [vmem:[#allocation5 + $0x1930] sm:$0xff]
    %v2187 = vld [vmem:[#allocation5 + $0x1938] sm:$0xff]
    %v2188 = vld [vmem:[#allocation5 + $0x1940] sm:$0xff]
    %v2189 = vld [vmem:[#allocation5 + $0x1948] sm:$0xff]
    %v2190 = vld [vmem:[#allocation5 + $0x1950] sm:$0xff]
    %v2191 = vld [vmem:[#allocation5 + $0x1958] sm:$0xff]
    %v2192 = vld [vmem:[#allocation5 + $0x1960] sm:$0xff]
    %v2193 = vld [vmem:[#allocation5 + $0x1968] sm:$0xff]
    %v2194 = vld [vmem:[#allocation5 + $0x1970] sm:$0xff]
    %v2195 = vld [vmem:[#allocation5 + $0x1978] sm:$0xff]
    %v2196 = vld [vmem:[#allocation5 + $0x1980] sm:$0xff]
    %v2197 = vld [vmem:[#allocation5 + $0x1988] sm:$0xff]
    %v2198 = vld [vmem:[#allocation5 + $0x1990] sm:$0xff]
    %v2199 = vld [vmem:[#allocation5 + $0x1998] sm:$0xff]
    %v2200 = vld [vmem:[#allocation5 + $0x19a0] sm:$0xff]
    %v2201 = vld [vmem:[#allocation5 + $0x19a8] sm:$0xff]
    %v2202 = vld [vmem:[#allocation5 + $0x19b0] sm:$0xff]
    %v2203 = vld [vmem:[#allocation5 + $0x19b8] sm:$0xff]
    %v2204 = vld [vmem:[#allocation5 + $0x19c0] sm:$0xff]
    %v2205 = vld [vmem:[#allocation5 + $0x19c8] sm:$0xff]
    %v2206 = vld [vmem:[#allocation5 + $0x19d0] sm:$0xff]
    %v2207 = vld [vmem:[#allocation5 + $0x19d8] sm:$0xff]
    %v2208 = vld [vmem:[#allocation5 + $0x19e0] sm:$0xff]
    %v2209 = vld [vmem:[#allocation5 + $0x19e8] sm:$0xff]
    %v2210 = vld [vmem:[#allocation5 + $0x19f0] sm:$0xff]
    %v2211 = vld [vmem:[#allocation5 + $0x19f8] sm:$0xff]
    %v2212 = vld [vmem:[#allocation5 + $0x1a00] sm:$0xff]
    %v2213 = vld [vmem:[#allocation5 + $0x1a08] sm:$0xff]
    %v2214 = vld [vmem:[#allocation5 + $0x1a10] sm:$0xff]
    %v2215 = vld [vmem:[#allocation5 + $0x1a18] sm:$0xff]
    %v2216 = vld [vmem:[#allocation5 + $0x1a20] sm:$0xff]
    %v2217 = vld [vmem:[#allocation5 + $0x1a28] sm:$0xff]
    %v2218 = vld [vmem:[#allocation5 + $0x1a30] sm:$0xff]
    %v2219 = vld [vmem:[#allocation5 + $0x1a38] sm:$0xff]
    %v2220 = vld [vmem:[#allocation5 + $0x1a40] sm:$0xff]
    %v2221 = vld [vmem:[#allocation5 + $0x1a48] sm:$0xff]
    %v2222 = vld [vmem:[#allocation5 + $0x1a50] sm:$0xff]
    %v2223 = vld [vmem:[#allocation5 + $0x1a58] sm:$0xff]
    %v2224 = vld [vmem:[#allocation5 + $0x1a60] sm:$0xff]
    %v2225 = vld [vmem:[#allocation5 + $0x1a68] sm:$0xff]
    %v2226 = vld [vmem:[#allocation5 + $0x1a70] sm:$0xff]
    %v2227 = vld [vmem:[#allocation5 + $0x1a78] sm:$0xff]
    %v2228 = vld [vmem:[#allocation5 + $0x1a80] sm:$0xff]
    %v2229 = vld [vmem:[#allocation5 + $0x1a88] sm:$0xff]
    %v2230 = vld [vmem:[#allocation5 + $0x1a90] sm:$0xff]
    %v2231 = vld [vmem:[#allocation5 + $0x1a98] sm:$0xff]
    %v2232 = vld [vmem:[#allocation5 + $0x1aa0] sm:$0xff]
    %v2233 = vld [vmem:[#allocation5 + $0x1aa8] sm:$0xff]
    %v2234 = vld [vmem:[#allocation5 + $0x1ab0] sm:$0xff]
    %v2235 = vld [vmem:[#allocation5 + $0x1ab8] sm:$0xff]
    %v2236 = vld [vmem:[#allocation5 + $0x1ac0] sm:$0xff]
    %v2237 = vld [vmem:[#allocation5 + $0x1ac8] sm:$0xff]
    %v2238 = vld [vmem:[#allocation5 + $0x1ad0] sm:$0xff]
    %v2239 = vld [vmem:[#allocation5 + $0x1ad8] sm:$0xff]
    %v2240 = vld [vmem:[#allocation5 + $0x1ae0] sm:$0xff]
    %v2241 = vld [vmem:[#allocation5 + $0x1ae8] sm:$0xff]
    %v2242 = vld [vmem:[#allocation5 + $0x1af0] sm:$0xff]
    %v2243 = vld [vmem:[#allocation5 + $0x1af8] sm:$0xff]
    %v2244 = vld [vmem:[#allocation5 + $0x1b00] sm:$0xff]
    %v2245 = vld [vmem:[#allocation5 + $0x1b08] sm:$0xff]
    %v2246 = vld [vmem:[#allocation5 + $0x1b10] sm:$0xff]
    %v2247 = vld [vmem:[#allocation5 + $0x1b18] sm:$0xff]
    %v2248 = vld [vmem:[#allocation5 + $0x1b20] sm:$0xff]
    %v2249 = vld [vmem:[#allocation5 + $0x1b28] sm:$0xff]
    %v2250 = vld [vmem:[#allocation5 + $0x1b30] sm:$0xff]
    %v2251 = vld [vmem:[#allocation5 + $0x1b38] sm:$0xff]
    %v2252 = vld [vmem:[#allocation5 + $0x1b40] sm:$0xff]
    %v2253 = vld [vmem:[#allocation5 + $0x1b48] sm:$0xff]
    %v2254 = vld [vmem:[#allocation5 + $0x1b50] sm:$0xff]
    %v2255 = vld [vmem:[#allocation5 + $0x1b58] sm:$0xff]
    %v2256 = vld [vmem:[#allocation5 + $0x1b60] sm:$0xff]
    %v2257 = vld [vmem:[#allocation5 + $0x1b68] sm:$0xff]
    %v2258 = vld [vmem:[#allocation5 + $0x1b70] sm:$0xff]
    %v2259 = vld [vmem:[#allocation5 + $0x1b78] sm:$0xff]
    %v2260 = vld [vmem:[#allocation5 + $0x1b80] sm:$0xff]
    %v2261 = vld [vmem:[#allocation5 + $0x1b88] sm:$0xff]
    %v2262 = vld [vmem:[#allocation5 + $0x1b90] sm:$0xff]
    %v2263 = vld [vmem:[#allocation5 + $0x1b98] sm:$0xff]
    %v2264 = vld [vmem:[#allocation5 + $0x1ba0] sm:$0xff]
    %v2265 = vld [vmem:[#allocation5 + $0x1ba8] sm:$0xff]
    %v2266 = vld [vmem:[#allocation5 + $0x1bb0] sm:$0xff]
    %v2267 = vld [vmem:[#allocation5 + $0x1bb8] sm:$0xff]
    %v2268 = vld [vmem:[#allocation5 + $0x1bc0] sm:$0xff]
    %v2269 = vld [vmem:[#allocation5 + $0x1bc8] sm:$0xff]
    %v2270 = vld [vmem:[#allocation5 + $0x1bd0] sm:$0xff]
    %v2271 = vld [vmem:[#allocation5 + $0x1bd8] sm:$0xff]
    %v2272 = vld [vmem:[#allocation5 + $0x1be0] sm:$0xff]
    %v2273 = vld [vmem:[#allocation5 + $0x1be8] sm:$0xff]
    %v2274 = vld [vmem:[#allocation5 + $0x1bf0] sm:$0xff]
    %v2275 = vld [vmem:[#allocation5 + $0x1bf8] sm:$0xff]
    %v2276 = vld [vmem:[#allocation5 + $0x1c00] sm:$0xff]
    %v2277 = vld [vmem:[#allocation5 + $0x1c08] sm:$0xff]
    %v2278 = vld [vmem:[#allocation5 + $0x1c10] sm:$0xff]
    %v2279 = vld [vmem:[#allocation5 + $0x1c18] sm:$0xff]
    %v2280 = vld [vmem:[#allocation5 + $0x1c20] sm:$0xff]
    %v2281 = vld [vmem:[#allocation5 + $0x1c28] sm:$0xff]
    %v2282 = vld [vmem:[#allocation5 + $0x1c30] sm:$0xff]
    %v2283 = vld [vmem:[#allocation5 + $0x1c38] sm:$0xff]
    %v2284 = vld [vmem:[#allocation5 + $0x1c40] sm:$0xff]
    %v2285 = vld [vmem:[#allocation5 + $0x1c48] sm:$0xff]
    %v2286 = vld [vmem:[#allocation5 + $0x1c50] sm:$0xff]
    %v2287 = vld [vmem:[#allocation5 + $0x1c58] sm:$0xff]
    %v2288 = vld [vmem:[#allocation5 + $0x1c60] sm:$0xff]
    %v2289 = vld [vmem:[#allocation5 + $0x1c68] sm:$0xff]
    %v2290 = vld [vmem:[#allocation5 + $0x1c70] sm:$0xff]
    %v2291 = vld [vmem:[#allocation5 + $0x1c78] sm:$0xff]
    %v2292 = vld [vmem:[#allocation5 + $0x1c80] sm:$0xff]
    %v2293 = vld [vmem:[#allocation5 + $0x1c88] sm:$0xff]
    %v2294 = vld [vmem:[#allocation5 + $0x1c90] sm:$0xff]
    %v2295 = vld [vmem:[#allocation5 + $0x1c98] sm:$0xff]
    %v2296 = vld [vmem:[#allocation5 + $0x1ca0] sm:$0xff]
    %v2297 = vld [vmem:[#allocation5 + $0x1ca8] sm:$0xff]
    %v2298 = vld [vmem:[#allocation5 + $0x1cb0] sm:$0xff]
    %v2299 = vld [vmem:[#allocation5 + $0x1cb8] sm:$0xff]
    %v2300 = vld [vmem:[#allocation5 + $0x1cc0] sm:$0xff]
    %v2301 = vld [vmem:[#allocation5 + $0x1cc8] sm:$0xff]
    %v2302 = vld [vmem:[#allocation5 + $0x1cd0] sm:$0xff]
    %v2303 = vld [vmem:[#allocation5 + $0x1cd8] sm:$0xff]
    %v2304 = vld [vmem:[#allocation5 + $0x1ce0] sm:$0xff]
    %v2305 = vld [vmem:[#allocation5 + $0x1ce8] sm:$0xff]
    %v2306 = vld [vmem:[#allocation5 + $0x1cf0] sm:$0xff]
    %v2307 = vld [vmem:[#allocation5 + $0x1cf8] sm:$0xff]
    %v2308 = vld [vmem:[#allocation5 + $0x1d00] sm:$0xff]
    %v2309 = vld [vmem:[#allocation5 + $0x1d08] sm:$0xff]
    %v2310 = vld [vmem:[#allocation5 + $0x1d10] sm:$0xff]
    %v2311 = vld [vmem:[#allocation5 + $0x1d18] sm:$0xff]
    %v2312 = vld [vmem:[#allocation5 + $0x1d20] sm:$0xff]
    %v2313 = vld [vmem:[#allocation5 + $0x1d28] sm:$0xff]
    %v2314 = vld [vmem:[#allocation5 + $0x1d30] sm:$0xff]
    %v2315 = vld [vmem:[#allocation5 + $0x1d38] sm:$0xff]
    %v2316 = vld [vmem:[#allocation5 + $0x1d40] sm:$0xff]
    %v2317 = vld [vmem:[#allocation5 + $0x1d48] sm:$0xff]
    %v2318 = vld [vmem:[#allocation5 + $0x1d50] sm:$0xff]
    %v2319 = vld [vmem:[#allocation5 + $0x1d58] sm:$0xff]
    %v2320 = vld [vmem:[#allocation5 + $0x1d60] sm:$0xff]
    %v2321 = vld [vmem:[#allocation5 + $0x1d68] sm:$0xff]
    %v2322 = vld [vmem:[#allocation5 + $0x1d70] sm:$0xff]
    %v2323 = vld [vmem:[#allocation5 + $0x1d78] sm:$0xff]
    %v2324 = vld [vmem:[#allocation5 + $0x1d80] sm:$0xff]
    %v2325 = vld [vmem:[#allocation5 + $0x1d88] sm:$0xff]
    %v2326 = vld [vmem:[#allocation5 + $0x1d90] sm:$0xff]
    %v2327 = vld [vmem:[#allocation5 + $0x1d98] sm:$0xff]
    %v2328 = vld [vmem:[#allocation5 + $0x1da0] sm:$0xff]
    %v2329 = vld [vmem:[#allocation5 + $0x1da8] sm:$0xff]
    %v2330 = vld [vmem:[#allocation5 + $0x1db0] sm:$0xff]
    %v2331 = vld [vmem:[#allocation5 + $0x1db8] sm:$0xff]
    %v2332 = vld [vmem:[#allocation5 + $0x1dc0] sm:$0xff]
    %v2333 = vld [vmem:[#allocation5 + $0x1dc8] sm:$0xff]
    %v2334 = vld [vmem:[#allocation5 + $0x1dd0] sm:$0xff]
    %v2335 = vld [vmem:[#allocation5 + $0x1dd8] sm:$0xff]
    %v2336 = vld [vmem:[#allocation5 + $0x1de0] sm:$0xff]
    %v2337 = vld [vmem:[#allocation5 + $0x1de8] sm:$0xff]
    %v2338 = vld [vmem:[#allocation5 + $0x1df0] sm:$0xff]
    %v2339 = vld [vmem:[#allocation5 + $0x1df8] sm:$0xff]
    %v2340 = vld [vmem:[#allocation5 + $0x1e00] sm:$0xff]
    %v2341 = vld [vmem:[#allocation5 + $0x1e08] sm:$0xff]
    %v2342 = vld [vmem:[#allocation5 + $0x1e10] sm:$0xff]
    %v2343 = vld [vmem:[#allocation5 + $0x1e18] sm:$0xff]
    %v2344 = vld [vmem:[#allocation5 + $0x1e20] sm:$0xff]
    %v2345 = vld [vmem:[#allocation5 + $0x1e28] sm:$0xff]
    %v2346 = vld [vmem:[#allocation5 + $0x1e30] sm:$0xff]
    %v2347 = vld [vmem:[#allocation5 + $0x1e38] sm:$0xff]
    %v2348 = vld [vmem:[#allocation5 + $0x1e40] sm:$0xff]
    %v2349 = vld [vmem:[#allocation5 + $0x1e48] sm:$0xff]
    %v2350 = vld [vmem:[#allocation5 + $0x1e50] sm:$0xff]
    %v2351 = vld [vmem:[#allocation5 + $0x1e58] sm:$0xff]
    %v2352 = vld [vmem:[#allocation5 + $0x1e60] sm:$0xff]
    %v2353 = vld [vmem:[#allocation5 + $0x1e68] sm:$0xff]
    %v2354 = vld [vmem:[#allocation5 + $0x1e70] sm:$0xff]
    %v2355 = vld [vmem:[#allocation5 + $0x1e78] sm:$0xff]
    %v2356 = vld [vmem:[#allocation5 + $0x1e80] sm:$0xff]
    %v2357 = vld [vmem:[#allocation5 + $0x1e88] sm:$0xff]
    %v2358 = vld [vmem:[#allocation5 + $0x1e90] sm:$0xff]
    %v2359 = vld [vmem:[#allocation5 + $0x1e98] sm:$0xff]
    %v2360 = vld [vmem:[#allocation5 + $0x1ea0] sm:$0xff]
    %v2361 = vld [vmem:[#allocation5 + $0x1ea8] sm:$0xff]
    %v2362 = vld [vmem:[#allocation5 + $0x1eb0] sm:$0xff]
    %v2363 = vld [vmem:[#allocation5 + $0x1eb8] sm:$0xff]
    %v2364 = vld [vmem:[#allocation5 + $0x1ec0] sm:$0xff]
    %v2365 = vld [vmem:[#allocation5 + $0x1ec8] sm:$0xff]
    %v2366 = vld [vmem:[#allocation5 + $0x1ed0] sm:$0xff]
    %v2367 = vld [vmem:[#allocation5 + $0x1ed8] sm:$0xff]
    %v2368 = vld [vmem:[#allocation5 + $0x1ee0] sm:$0xff]
    %v2369 = vld [vmem:[#allocation5 + $0x1ee8] sm:$0xff]
    %v2370 = vld [vmem:[#allocation5 + $0x1ef0] sm:$0xff]
    %v2371 = vld [vmem:[#allocation5 + $0x1ef8] sm:$0xff]
    %v2372 = vld [vmem:[#allocation5 + $0x1f00] sm:$0xff]
    %v2373 = vld [vmem:[#allocation5 + $0x1f08] sm:$0xff]
    %v2374 = vld [vmem:[#allocation5 + $0x1f10] sm:$0xff]
    %v2375 = vld [vmem:[#allocation5 + $0x1f18] sm:$0xff]
    %v2376 = vld [vmem:[#allocation5 + $0x1f20] sm:$0xff]
    %v2377 = vld [vmem:[#allocation5 + $0x1f28] sm:$0xff]
    %v2378 = vld [vmem:[#allocation5 + $0x1f30] sm:$0xff]
    %v2379 = vld [vmem:[#allocation5 + $0x1f38] sm:$0xff]
    %v2380 = vld [vmem:[#allocation5 + $0x1f40] sm:$0xff]
    %v2381 = vld [vmem:[#allocation5 + $0x1f48] sm:$0xff]
    %v2382 = vld [vmem:[#allocation5 + $0x1f50] sm:$0xff]
    %v2383 = vld [vmem:[#allocation5 + $0x1f58] sm:$0xff]
    %v2384 = vld [vmem:[#allocation5 + $0x1f60] sm:$0xff]
    %v2385 = vld [vmem:[#allocation5 + $0x1f68] sm:$0xff]
    %v2386 = vld [vmem:[#allocation5 + $0x1f70] sm:$0xff]
    %v2387 = vld [vmem:[#allocation5 + $0x1f78] sm:$0xff]
    %v2388 = vld [vmem:[#allocation5 + $0x1f80] sm:$0xff]
    %v2389 = vld [vmem:[#allocation5 + $0x1f88] sm:$0xff]
    %v2390 = vld [vmem:[#allocation5 + $0x1f90] sm:$0xff]
    %v2391 = vld [vmem:[#allocation5 + $0x1f98] sm:$0xff]
    %v2392 = vld [vmem:[#allocation5 + $0x1fa0] sm:$0xff]
    %v2393 = vld [vmem:[#allocation5 + $0x1fa8] sm:$0xff]
    %v2394 = vld [vmem:[#allocation5 + $0x1fb0] sm:$0xff]
    %v2395 = vld [vmem:[#allocation5 + $0x1fb8] sm:$0xff]
    %v2396 = vld [vmem:[#allocation5 + $0x1fc0] sm:$0xff]
    %v2397 = vld [vmem:[#allocation5 + $0x1fc8] sm:$0xff]
    %v2398 = vld [vmem:[#allocation5 + $0x1fd0] sm:$0xff]
    %v2399 = vld [vmem:[#allocation5 + $0x1fd8] sm:$0xff]
    %v2400 = vld [vmem:[#allocation5 + $0x1fe0] sm:$0xff]
    %v2401 = vld [vmem:[#allocation5 + $0x1fe8] sm:$0xff]
    %v2402 = vld [vmem:[#allocation5 + $0x1ff0] sm:$0xff]
    %v2403 = vld [vmem:[#allocation5 + $0x1ff8] sm:$0xff]
    %2404 = vmatprep.subr.mxu0 %v2149
    %2405 = vmatpush1.msra.mxu0 %v2148
    %2406 = vmatprep.subr.mxu0 %v2153
    %2407 = vmatpush1.msra.mxu0 %v2152
    %2408 = vmatprep.subr.mxu0 %v2157
    %2409 = vmatpush1.msra.mxu0 %v2156
    %2410 = vmatprep.subr.mxu0 %v2161
    %2411 = vmatpush1.msra.mxu0 %v2160
    %2412 = vmatprep.subr.mxu0 %v2165
    %2413 = vmatpush1.msra.mxu0 %v2164
    %2414 = vmatprep.subr.mxu0 %v2169
    %2415 = vmatpush1.msra.mxu0 %v2168
    %2416 = vmatprep.subr.mxu0 %v2173
    %2417 = vmatpush1.msra.mxu0 %v2172
    %2418 = vmatprep.subr.mxu0 %v2177
    %2419 = vmatpush1.msra.mxu0 %v2176
    %2420 = vmatprep.subr.mxu0 %v2181
    %2421 = vmatpush1.msra.mxu0 %v2180
    %2422 = vmatprep.subr.mxu0 %v2185
    %2423 = vmatpush1.msra.mxu0 %v2184
    %2424 = vmatprep.subr.mxu0 %v2189
    %2425 = vmatpush1.msra.mxu0 %v2188
    %2426 = vmatprep.subr.mxu0 %v2193
    %2427 = vmatpush1.msra.mxu0 %v2192
    %2428 = vmatprep.subr.mxu0 %v2197
    %2429 = vmatpush1.msra.mxu0 %v2196
    %2430 = vmatprep.subr.mxu0 %v2201
    %2431 = vmatpush1.msra.mxu0 %v2200
    %2432 = vmatprep.subr.mxu0 %v2205
    %2433 = vmatpush1.msra.mxu0 %v2204
    %2434 = vmatprep.subr.mxu0 %v2209
    %2435 = vmatpush1.msra.mxu0 %v2208
    %2436 = vmatprep.subr.mxu0 %v2213
    %2437 = vmatpush1.msra.mxu0 %v2212
    %2438 = vmatprep.subr.mxu0 %v2217
    %2439 = vmatpush1.msra.mxu0 %v2216
    %2440 = vmatprep.subr.mxu0 %v2221
    %2441 = vmatpush1.msra.mxu0 %v2220
    %2442 = vmatprep.subr.mxu0 %v2225
    %2443 = vmatpush1.msra.mxu0 %v2224
    %2444 = vmatprep.subr.mxu0 %v2229
    %2445 = vmatpush1.msra.mxu0 %v2228
    %2446 = vmatprep.subr.mxu0 %v2233
    %2447 = vmatpush1.msra.mxu0 %v2232
    %2448 = vmatprep.subr.mxu0 %v2237
    %2449 = vmatpush1.msra.mxu0 %v2236
    %2450 = vmatprep.subr.mxu0 %v2241
    %2451 = vmatpush1.msra.mxu0 %v2240
    %2452 = vmatprep.subr.mxu0 %v2245
    %2453 = vmatpush1.msra.mxu0 %v2244
    %2454 = vmatprep.subr.mxu0 %v2249
    %2455 = vmatpush1.msra.mxu0 %v2248
    %2456 = vmatprep.subr.mxu0 %v2253
    %2457 = vmatpush1.msra.mxu0 %v2252
    %2458 = vmatprep.subr.mxu0 %v2257
    %2459 = vmatpush1.msra.mxu0 %v2256
    %2460 = vmatprep.subr.mxu0 %v2261
    %2461 = vmatpush1.msra.mxu0 %v2260
    %2462 = vmatprep.subr.mxu0 %v2265
    %2463 = vmatpush1.msra.mxu0 %v2264
    %2464 = vmatprep.subr.mxu0 %v2269
    %2465 = vmatpush1.msra.mxu0 %v2268
    %2466 = vmatprep.subr.mxu0 %v2273
    %2467 = vmatpush1.msra.mxu0 %v2272
    %2468 = vmatprep.mubr.f32.mxu0 %v2145
    %2469 = vmatmul.mubr.f32.gmra.mrb[0].mxu0 %v2144
    %v2470 = vpop.f32.mrb[0].mxu0
    %v2471 = vadd.f32 %v1346, %v2470
    %v2472 = vpop.f32.mrb[0].mxu0
    %v2473 = vadd.f32 %v1348, %v2472
    %2474 = vdwg.mxu0
    %2475 = vmatprep.subr.mxu0 %v2277
    %2476 = vmatpush1.msra.mxu0 %v2276
    %2477 = vmatprep.subr.mxu0 %v2281
    %2478 = vmatpush1.msra.mxu0 %v2280
    %2479 = vmatprep.subr.mxu0 %v2285
    %2480 = vmatpush1.msra.mxu0 %v2284
    %2481 = vmatprep.subr.mxu0 %v2289
    %2482 = vmatpush1.msra.mxu0 %v2288
    %2483 = vmatprep.subr.mxu0 %v2293
    %2484 = vmatpush1.msra.mxu0 %v2292
    %2485 = vmatprep.subr.mxu0 %v2297
    %2486 = vmatpush1.msra.mxu0 %v2296
    %2487 = vmatprep.subr.mxu0 %v2301
    %2488 = vmatpush1.msra.mxu0 %v2300
    %2489 = vmatprep.subr.mxu0 %v2305
    %2490 = vmatpush1.msra.mxu0 %v2304
    %2491 = vmatprep.subr.mxu0 %v2309
    %2492 = vmatpush1.msra.mxu0 %v2308
    %2493 = vmatprep.subr.mxu0 %v2313
    %2494 = vmatpush1.msra.mxu0 %v2312
    %2495 = vmatprep.subr.mxu0 %v2317
    %2496 = vmatpush1.msra.mxu0 %v2316
    %2497 = vmatprep.subr.mxu0 %v2321
    %2498 = vmatpush1.msra.mxu0 %v2320
    %2499 = vmatprep.subr.mxu0 %v2325
    %2500 = vmatpush1.msra.mxu0 %v2324
    %2501 = vmatprep.subr.mxu0 %v2329
    %2502 = vmatpush1.msra.mxu0 %v2328
    %2503 = vmatprep.subr.mxu0 %v2333
    %2504 = vmatpush1.msra.mxu0 %v2332
    %2505 = vmatprep.subr.mxu0 %v2337
    %2506 = vmatpush1.msra.mxu0 %v2336
    %2507 = vmatprep.subr.mxu0 %v2341
    %2508 = vmatpush1.msra.mxu0 %v2340
    %2509 = vmatprep.subr.mxu0 %v2345
    %2510 = vmatpush1.msra.mxu0 %v2344
    %2511 = vmatprep.subr.mxu0 %v2349
    %2512 = vmatpush1.msra.mxu0 %v2348
    %2513 = vmatprep.subr.mxu0 %v2353
    %2514 = vmatpush1.msra.mxu0 %v2352
    %2515 = vmatprep.subr.mxu0 %v2357
    %2516 = vmatpush1.msra.mxu0 %v2356
    %2517 = vmatprep.subr.mxu0 %v2361
    %2518 = vmatpush1.msra.mxu0 %v2360
    %2519 = vmatprep.subr.mxu0 %v2365
    %2520 = vmatpush1.msra.mxu0 %v2364
    %2521 = vmatprep.subr.mxu0 %v2369
    %2522 = vmatpush1.msra.mxu0 %v2368
    %2523 = vmatprep.subr.mxu0 %v2373
    %2524 = vmatpush1.msra.mxu0 %v2372
    %2525 = vmatprep.subr.mxu0 %v2377
    %2526 = vmatpush1.msra.mxu0 %v2376
    %2527 = vmatprep.subr.mxu0 %v2381
    %2528 = vmatpush1.msra.mxu0 %v2380
    %2529 = vmatprep.subr.mxu0 %v2385
    %2530 = vmatpush1.msra.mxu0 %v2384
    %2531 = vmatprep.subr.mxu0 %v2389
    %2532 = vmatpush1.msra.mxu0 %v2388
    %2533 = vmatprep.subr.mxu0 %v2393
    %2534 = vmatpush1.msra.mxu0 %v2392
    %2535 = vmatprep.subr.mxu0 %v2397
    %2536 = vmatpush1.msra.mxu0 %v2396
    %2537 = vmatprep.subr.mxu0 %v2401
    %2538 = vmatpush1.msra.mxu0 %v2400
    %2539 = vmatprep.mubr.f32.mxu0 %v2147
    %2540 = vmatmul.mubr.f32.gmra.mrb[0].mxu0 %v2146
    %v2541 = vpop.f32.mrb[0].mxu0
    %v2542 = vadd.f32 %v2471, %v2541
    %v2543 = vpop.f32.mrb[0].mxu0
    %v2544 = vadd.f32 %v2473, %v2543
    %2545 = vdwg.mxu0
    %2546 = vmatprep.subr.mxu0 %v2151
    %2547 = vmatpush1.msra.mxu0 %v2150
    %2548 = vmatprep.subr.mxu0 %v2155
    %2549 = vmatpush1.msra.mxu0 %v2154
    %2550 = vmatprep.subr.mxu0 %v2159
    %2551 = vmatpush1.msra.mxu0 %v2158
    %2552 = vmatprep.subr.mxu0 %v2163
    %2553 = vmatpush1.msra.mxu0 %v2162
    %2554 = vmatprep.subr.mxu0 %v2167
    %2555 = vmatpush1.msra.mxu0 %v2166
    %2556 = vmatprep.subr.mxu0 %v2171
    %2557 = vmatpush1.msra.mxu0 %v2170
    %2558 = vmatprep.subr.mxu0 %v2175
    %2559 = vmatpush1.msra.mxu0 %v2174
    %2560 = vmatprep.subr.mxu0 %v2179
    %2561 = vmatpush1.msra.mxu0 %v2178
    %2562 = vmatprep.subr.mxu0 %v2183
    %2563 = vmatpush1.msra.mxu0 %v2182
    %2564 = vmatprep.subr.mxu0 %v2187
    %2565 = vmatpush1.msra.mxu0 %v2186
    %2566 = vmatprep.subr.mxu0 %v2191
    %2567 = vmatpush1.msra.mxu0 %v2190
    %2568 = vmatprep.subr.mxu0 %v2195
    %2569 = vmatpush1.msra.mxu0 %v2194
    %2570 = vmatprep.subr.mxu0 %v2199
    %2571 = vmatpush1.msra.mxu0 %v2198
    %2572 = vmatprep.subr.mxu0 %v2203
    %2573 = vmatpush1.msra.mxu0 %v2202
    %2574 = vmatprep.subr.mxu0 %v2207
    %2575 = vmatpush1.msra.mxu0 %v2206
    %2576 = vmatprep.subr.mxu0 %v2211
    %2577 = vmatpush1.msra.mxu0 %v2210
    %2578 = vmatprep.subr.mxu0 %v2215
    %2579 = vmatpush1.msra.mxu0 %v2214
    %2580 = vmatprep.subr.mxu0 %v2219
    %2581 = vmatpush1.msra.mxu0 %v2218
    %2582 = vmatprep.subr.mxu0 %v2223
    %2583 = vmatpush1.msra.mxu0 %v2222
    %2584 = vmatprep.subr.mxu0 %v2227
    %2585 = vmatpush1.msra.mxu0 %v2226
    %2586 = vmatprep.subr.mxu0 %v2231
    %2587 = vmatpush1.msra.mxu0 %v2230
    %2588 = vmatprep.subr.mxu0 %v2235
    %2589 = vmatpush1.msra.mxu0 %v2234
    %2590 = vmatprep.subr.mxu0 %v2239
    %2591 = vmatpush1.msra.mxu0 %v2238
    %2592 = vmatprep.subr.mxu0 %v2243
    %2593 = vmatpush1.msra.mxu0 %v2242
    %2594 = vmatprep.subr.mxu0 %v2247
    %2595 = vmatpush1.msra.mxu0 %v2246
    %2596 = vmatprep.subr.mxu0 %v2251
    %2597 = vmatpush1.msra.mxu0 %v2250
    %2598 = vmatprep.subr.mxu0 %v2255
    %2599 = vmatpush1.msra.mxu0 %v2254
    %2600 = vmatprep.subr.mxu0 %v2259
    %2601 = vmatpush1.msra.mxu0 %v2258
    %2602 = vmatprep.subr.mxu0 %v2263
    %2603 = vmatpush1.msra.mxu0 %v2262
    %2604 = vmatprep.subr.mxu0 %v2267
    %2605 = vmatpush1.msra.mxu0 %v2266
    %2606 = vmatprep.subr.mxu0 %v2271
    %2607 = vmatpush1.msra.mxu0 %v2270
    %2608 = vmatprep.subr.mxu0 %v2275
    %2609 = vmatpush1.msra.mxu0 %v2274
    %2610 = vmatprep.mubr.f32.mxu0 %v2145
    %2611 = vmatmul.mubr.f32.gmra.mrb[0].mxu0 %v2144
    %v2612 = vpop.f32.mrb[0].mxu0
    %v2613 = vadd.f32 %v1488, %v2612
    %v2614 = vpop.f32.mrb[0].mxu0
    %v2615 = vadd.f32 %v1490, %v2614
    %2616 = vdwg.mxu0
    %2617 = vmatprep.subr.mxu0 %v2279
    %2618 = vmatpush1.msra.mxu0 %v2278
    %2619 = vmatprep.subr.mxu0 %v2283
    %2620 = vmatpush1.msra.mxu0 %v2282
    %2621 = vmatprep.subr.mxu0 %v2287
    %2622 = vmatpush1.msra.mxu0 %v2286
    %2623 = vmatprep.subr.mxu0 %v2291
    %2624 = vmatpush1.msra.mxu0 %v2290
    %2625 = vmatprep.subr.mxu0 %v2295
    %2626 = vmatpush1.msra.mxu0 %v2294
    %2627 = vmatprep.subr.mxu0 %v2299
    %2628 = vmatpush1.msra.mxu0 %v2298
    %2629 = vmatprep.subr.mxu0 %v2303
    %2630 = vmatpush1.msra.mxu0 %v2302
    %2631 = vmatprep.subr.mxu0 %v2307
    %2632 = vmatpush1.msra.mxu0 %v2306
    %2633 = vmatprep.subr.mxu0 %v2311
    %2634 = vmatpush1.msra.mxu0 %v2310
    %2635 = vmatprep.subr.mxu0 %v2315
    %2636 = vmatpush1.msra.mxu0 %v2314
    %2637 = vmatprep.subr.mxu0 %v2319
    %2638 = vmatpush1.msra.mxu0 %v2318
    %2639 = vmatprep.subr.mxu0 %v2323
    %2640 = vmatpush1.msra.mxu0 %v2322
    %2641 = vmatprep.subr.mxu0 %v2327
    %2642 = vmatpush1.msra.mxu0 %v2326
    %2643 = vmatprep.subr.mxu0 %v2331
    %2644 = vmatpush1.msra.mxu0 %v2330
    %2645 = vmatprep.subr.mxu0 %v2335
    %2646 = vmatpush1.msra.mxu0 %v2334
    %2647 = vmatprep.subr.mxu0 %v2339
    %2648 = vmatpush1.msra.mxu0 %v2338
    %2649 = vmatprep.subr.mxu0 %v2343
    %2650 = vmatpush1.msra.mxu0 %v2342
    %2651 = vmatprep.subr.mxu0 %v2347
    %2652 = vmatpush1.msra.mxu0 %v2346
    %2653 = vmatprep.subr.mxu0 %v2351
    %2654 = vmatpush1.msra.mxu0 %v2350
    %2655 = vmatprep.subr.mxu0 %v2355
    %2656 = vmatpush1.msra.mxu0 %v2354
    %2657 = vmatprep.subr.mxu0 %v2359
    %2658 = vmatpush1.msra.mxu0 %v2358
    %2659 = vmatprep.subr.mxu0 %v2363
    %2660 = vmatpush1.msra.mxu0 %v2362
    %2661 = vmatprep.subr.mxu0 %v2367
    %2662 = vmatpush1.msra.mxu0 %v2366
    %2663 = vmatprep.subr.mxu0 %v2371
    %2664 = vmatpush1.msra.mxu0 %v2370
    %2665 = vmatprep.subr.mxu0 %v2375
    %2666 = vmatpush1.msra.mxu0 %v2374
    %2667 = vmatprep.subr.mxu0 %v2379
    %2668 = vmatpush1.msra.mxu0 %v2378
    %2669 = vmatprep.subr.mxu0 %v2383
    %2670 = vmatpush1.msra.mxu0 %v2382
    %2671 = vmatprep.subr.mxu0 %v2387
    %2672 = vmatpush1.msra.mxu0 %v2386
    %2673 = vmatprep.subr.mxu0 %v2391
    %2674 = vmatpush1.msra.mxu0 %v2390
    %2675 = vmatprep.subr.mxu0 %v2395
    %2676 = vmatpush1.msra.mxu0 %v2394
    %2677 = vmatprep.subr.mxu0 %v2399
    %2678 = vmatpush1.msra.mxu0 %v2398
    %2679 = vmatprep.subr.mxu0 %v2403
    %2680 = vmatpush1.msra.mxu0 %v2402
    %2681 = vmatprep.mubr.f32.mxu0 %v2147
    %2682 = vmatmul.mubr.f32.gmra.mrb[0].mxu0 %v2146
    %v2683 = vpop.f32.mrb[0].mxu0
    %v2684 = vadd.f32 %v2613, %v2683
    %v2685 = vpop.f32.mrb[0].mxu0
    %v2686 = vadd.f32 %v2615, %v2685
    %2687 = vdwg.mxu0
    %s2688 = scalar_lea.vmem [#allocation8], 32
    %v2689 = vld [vmem:[%s2688] ss:$8 sm:$0xf]
    %v2691 = vlaneseq
    %v2692 = vshrl.u32 %v2691, 7
    %v2693 = vsub.s32 0, %v2692
    %v2694 = vrot.slane %v2689, %v2693
    %v2695 = vlaneseq
    %v2696 = vshrl.u32 %v2695, 7
    %v2697 = vsub.s32 1, %v2696
    %v2698 = vrot.slane %v2689, %v2697
    %v2699 = vlaneseq
    %v2700 = vshrl.u32 %v2699, 7
    %v2701 = vsub.s32 2, %v2700
    %v2702 = vrot.slane %v2689, %v2701
    %v2703 = vlaneseq
    %v2704 = vshrl.u32 %v2703, 7
    %v2705 = vsub.s32 3, %v2704
    %v2706 = vrot.slane %v2689, %v2705
    %v2711 = vmul.f32 %v2542, %v2694
    %v2712 = vmul.f32 %v2544, %v2698
    %v2713 = vmul.f32 %v2684, %v2702
    %v2714 = vmul.f32 %v2686, %v2706
    %s2715 = scalar_lea.vmem [#allocation8], 33
    %v2716 = vld [vmem:[%s2715] ss:$8 sm:$0xf]
    %v2718 = vlaneseq
    %v2719 = vshrl.u32 %v2718, 7
    %v2720 = vsub.s32 0, %v2719
    %v2721 = vrot.slane %v2716, %v2720
    %v2722 = vlaneseq
    %v2723 = vshrl.u32 %v2722, 7
    %v2724 = vsub.s32 1, %v2723
    %v2725 = vrot.slane %v2716, %v2724
    %v2726 = vlaneseq
    %v2727 = vshrl.u32 %v2726, 7
    %v2728 = vsub.s32 2, %v2727
    %v2729 = vrot.slane %v2716, %v2728
    %v2730 = vlaneseq
    %v2731 = vshrl.u32 %v2730, 7
    %v2732 = vsub.s32 3, %v2731
    %v2733 = vrot.slane %v2716, %v2732
    %v2738 = vadd.f32 %v2711, %v2721
    %v2739 = vadd.f32 %v2712, %v2725
    %v2740 = vadd.f32 %v2713, %v2729
    %v2741 = vadd.f32 %v2714, %v2733
    %v2742 = vmax.f32 %v2738, 0.0
    %v2743 = vmax.f32 %v2739, 0.0
    %v2744 = vmax.f32 %v2740, 0.0
    %v2745 = vmax.f32 %v2741, 0.0
    %v2746 = vld [vmem:[#allocation7] sm:$0xff]
    %v2747 = vld [vmem:[#allocation7 + $0x8] sm:$0xff]
    %v2748 = vld [vmem:[#allocation7 + $0x10] sm:$0xff]
    %v2749 = vld [vmem:[#allocation7 + $0x18] sm:$0xff]
    %v2750 = vld [vmem:[#allocation7 + $0x20] sm:$0xff]
    %v2751 = vld [vmem:[#allocation7 + $0x28] sm:$0xff]
    %v2752 = vld [vmem:[#allocation7 + $0x30] sm:$0xff]
    %v2753 = vld [vmem:[#allocation7 + $0x38] sm:$0xff]
    %v2754 = vld [vmem:[#allocation7 + $0x40] sm:$0xff]
    %v2755 = vld [vmem:[#allocation7 + $0x48] sm:$0xff]
    %v2756 = vld [vmem:[#allocation7 + $0x50] sm:$0xff]
    %v2757 = vld [vmem:[#allocation7 + $0x58] sm:$0xff]
    %v2758 = vld [vmem:[#allocation7 + $0x60] sm:$0xff]
    %v2759 = vld [vmem:[#allocation7 + $0x68] sm:$0xff]
    %v2760 = vld [vmem:[#allocation7 + $0x70] sm:$0xff]
    %v2761 = vld [vmem:[#allocation7 + $0x78] sm:$0xff]
    %v2762 = vld [vmem:[#allocation7 + $0x80] sm:$0xff]
    %v2763 = vld [vmem:[#allocation7 + $0x88] sm:$0xff]
    %v2764 = vld [vmem:[#allocation7 + $0x90] sm:$0xff]
    %v2765 = vld [vmem:[#allocation7 + $0x98] sm:$0xff]
    %v2766 = vld [vmem:[#allocation7 + $0xa0] sm:$0xff]
    %v2767 = vld [vmem:[#allocation7 + $0xa8] sm:$0xff]
    %v2768 = vld [vmem:[#allocation7 + $0xb0] sm:$0xff]
    %v2769 = vld [vmem:[#allocation7 + $0xb8] sm:$0xff]
    %v2770 = vld [vmem:[#allocation7 + $0xc0] sm:$0xff]
    %v2771 = vld [vmem:[#allocation7 + $0xc8] sm:$0xff]
    %v2772 = vld [vmem:[#allocation7 + $0xd0] sm:$0xff]
    %v2773 = vld [vmem:[#allocation7 + $0xd8] sm:$0xff]
    %v2774 = vld [vmem:[#allocation7 + $0xe0] sm:$0xff]
    %v2775 = vld [vmem:[#allocation7 + $0xe8] sm:$0xff]
    %v2776 = vld [vmem:[#allocation7 + $0xf0] sm:$0xff]
    %v2777 = vld [vmem:[#allocation7 + $0xf8] sm:$0xff]
    %v2778 = vld [vmem:[#allocation7 + $0x100] sm:$0xff]
    %v2779 = vld [vmem:[#allocation7 + $0x108] sm:$0xff]
    %v2780 = vld [vmem:[#allocation7 + $0x110] sm:$0xff]
    %v2781 = vld [vmem:[#allocation7 + $0x118] sm:$0xff]
    %v2782 = vld [vmem:[#allocation7 + $0x120] sm:$0xff]
    %v2783 = vld [vmem:[#allocation7 + $0x128] sm:$0xff]
    %v2784 = vld [vmem:[#allocation7 + $0x130] sm:$0xff]
    %v2785 = vld [vmem:[#allocation7 + $0x138] sm:$0xff]
    %v2786 = vld [vmem:[#allocation7 + $0x140] sm:$0xff]
    %v2787 = vld [vmem:[#allocation7 + $0x148] sm:$0xff]
    %v2788 = vld [vmem:[#allocation7 + $0x150] sm:$0xff]
    %v2789 = vld [vmem:[#allocation7 + $0x158] sm:$0xff]
    %v2790 = vld [vmem:[#allocation7 + $0x160] sm:$0xff]
    %v2791 = vld [vmem:[#allocation7 + $0x168] sm:$0xff]
    %v2792 = vld [vmem:[#allocation7 + $0x170] sm:$0xff]
    %v2793 = vld [vmem:[#allocation7 + $0x178] sm:$0xff]
    %v2794 = vld [vmem:[#allocation7 + $0x180] sm:$0xff]
    %v2795 = vld [vmem:[#allocation7 + $0x188] sm:$0xff]
    %v2796 = vld [vmem:[#allocation7 + $0x190] sm:$0xff]
    %v2797 = vld [vmem:[#allocation7 + $0x198] sm:$0xff]
    %v2798 = vld [vmem:[#allocation7 + $0x1a0] sm:$0xff]
    %v2799 = vld [vmem:[#allocation7 + $0x1a8] sm:$0xff]
    %v2800 = vld [vmem:[#allocation7 + $0x1b0] sm:$0xff]
    %v2801 = vld [vmem:[#allocation7 + $0x1b8] sm:$0xff]
    %v2802 = vld [vmem:[#allocation7 + $0x1c0] sm:$0xff]
    %v2803 = vld [vmem:[#allocation7 + $0x1c8] sm:$0xff]
    %v2804 = vld [vmem:[#allocation7 + $0x1d0] sm:$0xff]
    %v2805 = vld [vmem:[#allocation7 + $0x1d8] sm:$0xff]
    %v2806 = vld [vmem:[#allocation7 + $0x1e0] sm:$0xff]
    %v2807 = vld [vmem:[#allocation7 + $0x1e8] sm:$0xff]
    %v2808 = vld [vmem:[#allocation7 + $0x1f0] sm:$0xff]
    %v2809 = vld [vmem:[#allocation7 + $0x1f8] sm:$0xff]
    %v2810 = vld [vmem:[#allocation7 + $0x200] sm:$0xff]
    %v2811 = vld [vmem:[#allocation7 + $0x208] sm:$0xff]
    %v2812 = vld [vmem:[#allocation7 + $0x210] sm:$0xff]
    %v2813 = vld [vmem:[#allocation7 + $0x218] sm:$0xff]
    %v2814 = vld [vmem:[#allocation7 + $0x220] sm:$0xff]
    %v2815 = vld [vmem:[#allocation7 + $0x228] sm:$0xff]
    %v2816 = vld [vmem:[#allocation7 + $0x230] sm:$0xff]
    %v2817 = vld [vmem:[#allocation7 + $0x238] sm:$0xff]
    %v2818 = vld [vmem:[#allocation7 + $0x240] sm:$0xff]
    %v2819 = vld [vmem:[#allocation7 + $0x248] sm:$0xff]
    %v2820 = vld [vmem:[#allocation7 + $0x250] sm:$0xff]
    %v2821 = vld [vmem:[#allocation7 + $0x258] sm:$0xff]
    %v2822 = vld [vmem:[#allocation7 + $0x260] sm:$0xff]
    %v2823 = vld [vmem:[#allocation7 + $0x268] sm:$0xff]
    %v2824 = vld [vmem:[#allocation7 + $0x270] sm:$0xff]
    %v2825 = vld [vmem:[#allocation7 + $0x278] sm:$0xff]
    %v2826 = vld [vmem:[#allocation7 + $0x280] sm:$0xff]
    %v2827 = vld [vmem:[#allocation7 + $0x288] sm:$0xff]
    %v2828 = vld [vmem:[#allocation7 + $0x290] sm:$0xff]
    %v2829 = vld [vmem:[#allocation7 + $0x298] sm:$0xff]
    %v2830 = vld [vmem:[#allocation7 + $0x2a0] sm:$0xff]
    %v2831 = vld [vmem:[#allocation7 + $0x2a8] sm:$0xff]
    %v2832 = vld [vmem:[#allocation7 + $0x2b0] sm:$0xff]
    %v2833 = vld [vmem:[#allocation7 + $0x2b8] sm:$0xff]
    %v2834 = vld [vmem:[#allocation7 + $0x2c0] sm:$0xff]
    %v2835 = vld [vmem:[#allocation7 + $0x2c8] sm:$0xff]
    %v2836 = vld [vmem:[#allocation7 + $0x2d0] sm:$0xff]
    %v2837 = vld [vmem:[#allocation7 + $0x2d8] sm:$0xff]
    %v2838 = vld [vmem:[#allocation7 + $0x2e0] sm:$0xff]
    %v2839 = vld [vmem:[#allocation7 + $0x2e8] sm:$0xff]
    %v2840 = vld [vmem:[#allocation7 + $0x2f0] sm:$0xff]
    %v2841 = vld [vmem:[#allocation7 + $0x2f8] sm:$0xff]
    %v2842 = vld [vmem:[#allocation7 + $0x300] sm:$0xff]
    %v2843 = vld [vmem:[#allocation7 + $0x308] sm:$0xff]
    %v2844 = vld [vmem:[#allocation7 + $0x310] sm:$0xff]
    %v2845 = vld [vmem:[#allocation7 + $0x318] sm:$0xff]
    %v2846 = vld [vmem:[#allocation7 + $0x320] sm:$0xff]
    %v2847 = vld [vmem:[#allocation7 + $0x328] sm:$0xff]
    %v2848 = vld [vmem:[#allocation7 + $0x330] sm:$0xff]
    %v2849 = vld [vmem:[#allocation7 + $0x338] sm:$0xff]
    %v2850 = vld [vmem:[#allocation7 + $0x340] sm:$0xff]
    %v2851 = vld [vmem:[#allocation7 + $0x348] sm:$0xff]
    %v2852 = vld [vmem:[#allocation7 + $0x350] sm:$0xff]
    %v2853 = vld [vmem:[#allocation7 + $0x358] sm:$0xff]
    %v2854 = vld [vmem:[#allocation7 + $0x360] sm:$0xff]
    %v2855 = vld [vmem:[#allocation7 + $0x368] sm:$0xff]
    %v2856 = vld [vmem:[#allocation7 + $0x370] sm:$0xff]
    %v2857 = vld [vmem:[#allocation7 + $0x378] sm:$0xff]
    %v2858 = vld [vmem:[#allocation7 + $0x380] sm:$0xff]
    %v2859 = vld [vmem:[#allocation7 + $0x388] sm:$0xff]
    %v2860 = vld [vmem:[#allocation7 + $0x390] sm:$0xff]
    %v2861 = vld [vmem:[#allocation7 + $0x398] sm:$0xff]
    %v2862 = vld [vmem:[#allocation7 + $0x3a0] sm:$0xff]
    %v2863 = vld [vmem:[#allocation7 + $0x3a8] sm:$0xff]
    %v2864 = vld [vmem:[#allocation7 + $0x3b0] sm:$0xff]
    %v2865 = vld [vmem:[#allocation7 + $0x3b8] sm:$0xff]
    %v2866 = vld [vmem:[#allocation7 + $0x3c0] sm:$0xff]
    %v2867 = vld [vmem:[#allocation7 + $0x3c8] sm:$0xff]
    %v2868 = vld [vmem:[#allocation7 + $0x3d0] sm:$0xff]
    %v2869 = vld [vmem:[#allocation7 + $0x3d8] sm:$0xff]
    %v2870 = vld [vmem:[#allocation7 + $0x3e0] sm:$0xff]
    %v2871 = vld [vmem:[#allocation7 + $0x3e8] sm:$0xff]
    %v2872 = vld [vmem:[#allocation7 + $0x3f0] sm:$0xff]
    %v2873 = vld [vmem:[#allocation7 + $0x3f8] sm:$0xff]
    %2874 = vmatprep.subr.mxu0 %v2747
    %2875 = vmatpush1.msra.mxu0 %v2746
    %2876 = vmatprep.subr.mxu0 %v2749
    %2877 = vmatpush1.msra.mxu0 %v2748
    %2878 = vmatprep.subr.mxu0 %v2751
    %2879 = vmatpush1.msra.mxu0 %v2750
    %2880 = vmatprep.subr.mxu0 %v2753
    %2881 = vmatpush1.msra.mxu0 %v2752
    %2882 = vmatprep.subr.mxu0 %v2755
    %2883 = vmatpush1.msra.mxu0 %v2754
    %2884 = vmatprep.subr.mxu0 %v2757
    %2885 = vmatpush1.msra.mxu0 %v2756
    %2886 = vmatprep.subr.mxu0 %v2759
    %2887 = vmatpush1.msra.mxu0 %v2758
    %2888 = vmatprep.subr.mxu0 %v2761
    %2889 = vmatpush1.msra.mxu0 %v2760
    %2890 = vmatprep.subr.mxu0 %v2763
    %2891 = vmatpush1.msra.mxu0 %v2762
    %2892 = vmatprep.subr.mxu0 %v2765
    %2893 = vmatpush1.msra.mxu0 %v2764
    %2894 = vmatprep.subr.mxu0 %v2767
    %2895 = vmatpush1.msra.mxu0 %v2766
    %2896 = vmatprep.subr.mxu0 %v2769
    %2897 = vmatpush1.msra.mxu0 %v2768
    %2898 = vmatprep.subr.mxu0 %v2771
    %2899 = vmatpush1.msra.mxu0 %v2770
    %2900 = vmatprep.subr.mxu0 %v2773
    %2901 = vmatpush1.msra.mxu0 %v2772
    %2902 = vmatprep.subr.mxu0 %v2775
    %2903 = vmatpush1.msra.mxu0 %v2774
    %2904 = vmatprep.subr.mxu0 %v2777
    %2905 = vmatpush1.msra.mxu0 %v2776
    %2906 = vmatprep.subr.mxu0 %v2779
    %2907 = vmatpush1.msra.mxu0 %v2778
    %2908 = vmatprep.subr.mxu0 %v2781
    %2909 = vmatpush1.msra.mxu0 %v2780
    %2910 = vmatprep.subr.mxu0 %v2783
    %2911 = vmatpush1.msra.mxu0 %v2782
    %2912 = vmatprep.subr.mxu0 %v2785
    %2913 = vmatpush1.msra.mxu0 %v2784
    %2914 = vmatprep.subr.mxu0 %v2787
    %2915 = vmatpush1.msra.mxu0 %v2786
    %2916 = vmatprep.subr.mxu0 %v2789
    %2917 = vmatpush1.msra.mxu0 %v2788
    %2918 = vmatprep.subr.mxu0 %v2791
    %2919 = vmatpush1.msra.mxu0 %v2790
    %2920 = vmatprep.subr.mxu0 %v2793
    %2921 = vmatpush1.msra.mxu0 %v2792
    %2922 = vmatprep.subr.mxu0 %v2795
    %2923 = vmatpush1.msra.mxu0 %v2794
    %2924 = vmatprep.subr.mxu0 %v2797
    %2925 = vmatpush1.msra.mxu0 %v2796
    %2926 = vmatprep.subr.mxu0 %v2799
    %2927 = vmatpush1.msra.mxu0 %v2798
    %2928 = vmatprep.subr.mxu0 %v2801
    %2929 = vmatpush1.msra.mxu0 %v2800
    %2930 = vmatprep.subr.mxu0 %v2803
    %2931 = vmatpush1.msra.mxu0 %v2802
    %2932 = vmatprep.subr.mxu0 %v2805
    %2933 = vmatpush1.msra.mxu0 %v2804
    %2934 = vmatprep.subr.mxu0 %v2807
    %2935 = vmatpush1.msra.mxu0 %v2806
    %2936 = vmatprep.subr.mxu0 %v2809
    %2937 = vmatpush1.msra.mxu0 %v2808
    %2938 = vmatprep.mubr.f32.mxu0 %v2743
    %2939 = vmatmul.mubr.f32.gmra.mrb[0].mxu0 %v2742
    %v2940 = vpop.f32.mrb[0].mxu0
    %v2941 = vadd.f32 0.0, %v2940
    %v2942 = vpop.f32.mrb[0].mxu0
    %v2943 = vadd.f32 0.0, %v2942
    %2944 = vdwg.mxu0
    %2945 = vmatprep.subr.mxu0 %v2811
    %2946 = vmatpush1.msra.mxu0 %v2810
    %2947 = vmatprep.subr.mxu0 %v2813
    %2948 = vmatpush1.msra.mxu0 %v2812
    %2949 = vmatprep.subr.mxu0 %v2815
    %2950 = vmatpush1.msra.mxu0 %v2814
    %2951 = vmatprep.subr.mxu0 %v2817
    %2952 = vmatpush1.msra.mxu0 %v2816
    %2953 = vmatprep.subr.mxu0 %v2819
    %2954 = vmatpush1.msra.mxu0 %v2818
    %2955 = vmatprep.subr.mxu0 %v2821
    %2956 = vmatpush1.msra.mxu0 %v2820
    %2957 = vmatprep.subr.mxu0 %v2823
    %2958 = vmatpush1.msra.mxu0 %v2822
    %2959 = vmatprep.subr.mxu0 %v2825
    %2960 = vmatpush1.msra.mxu0 %v2824
    %2961 = vmatprep.subr.mxu0 %v2827
    %2962 = vmatpush1.msra.mxu0 %v2826
    %2963 = vmatprep.subr.mxu0 %v2829
    %2964 = vmatpush1.msra.mxu0 %v2828
    %2965 = vmatprep.subr.mxu0 %v2831
    %2966 = vmatpush1.msra.mxu0 %v2830
    %2967 = vmatprep.subr.mxu0 %v2833
    %2968 = vmatpush1.msra.mxu0 %v2832
    %2969 = vmatprep.subr.mxu0 %v2835
    %2970 = vmatpush1.msra.mxu0 %v2834
    %2971 = vmatprep.subr.mxu0 %v2837
    %2972 = vmatpush1.msra.mxu0 %v2836
    %2973 = vmatprep.subr.mxu0 %v2839
    %2974 = vmatpush1.msra.mxu0 %v2838
    %2975 = vmatprep.subr.mxu0 %v2841
    %2976 = vmatpush1.msra.mxu0 %v2840
    %2977 = vmatprep.subr.mxu0 %v2843
    %2978 = vmatpush1.msra.mxu0 %v2842
    %2979 = vmatprep.subr.mxu0 %v2845
    %2980 = vmatpush1.msra.mxu0 %v2844
    %2981 = vmatprep.subr.mxu0 %v2847
    %2982 = vmatpush1.msra.mxu0 %v2846
    %2983 = vmatprep.subr.mxu0 %v2849
    %2984 = vmatpush1.msra.mxu0 %v2848
    %2985 = vmatprep.subr.mxu0 %v2851
    %2986 = vmatpush1.msra.mxu0 %v2850
    %2987 = vmatprep.subr.mxu0 %v2853
    %2988 = vmatpush1.msra.mxu0 %v2852
    %2989 = vmatprep.subr.mxu0 %v2855
    %2990 = vmatpush1.msra.mxu0 %v2854
    %2991 = vmatprep.subr.mxu0 %v2857
    %2992 = vmatpush1.msra.mxu0 %v2856
    %2993 = vmatprep.subr.mxu0 %v2859
    %2994 = vmatpush1.msra.mxu0 %v2858
    %2995 = vmatprep.subr.mxu0 %v2861
    %2996 = vmatpush1.msra.mxu0 %v2860
    %2997 = vmatprep.subr.mxu0 %v2863
    %2998 = vmatpush1.msra.mxu0 %v2862
    %2999 = vmatprep.subr.mxu0 %v2865
    %3000 = vmatpush1.msra.mxu0 %v2864
    %3001 = vmatprep.subr.mxu0 %v2867
    %3002 = vmatpush1.msra.mxu0 %v2866
    %3003 = vmatprep.subr.mxu0 %v2869
    %3004 = vmatpush1.msra.mxu0 %v2868
    %3005 = vmatprep.subr.mxu0 %v2871
    %3006 = vmatpush1.msra.mxu0 %v2870
    %3007 = vmatprep.subr.mxu0 %v2873
    %3008 = vmatpush1.msra.mxu0 %v2872
    %3009 = vmatprep.mubr.f32.mxu0 %v2745
    %3010 = vmatmul.mubr.f32.gmra.mrb[0].mxu0 %v2744
    %v3011 = vpop.f32.mrb[0].mxu0
    %v3012 = vadd.f32 %v2941, %v3011
    %v3013 = vpop.f32.mrb[0].mxu0
    %v3014 = vadd.f32 %v2943, %v3013
    %3015 = vdwg.mxu0
    %s3016 = scalar_lea.vmem [#allocation8], 34
    %v3017 = vld [vmem:[%s3016] ss:$8 sm:$0x3]
    %v3019 = vlaneseq
    %v3020 = vshrl.u32 %v3019, 7
    %v3021 = vsub.s32 0, %v3020
    %v3022 = vrot.slane %v3017, %v3021
    %v3023 = vlaneseq
    %v3024 = vshrl.u32 %v3023, 7
    %v3025 = vsub.s32 1, %v3024
    %v3026 = vrot.slane %v3017, %v3025
    %v3029 = vmul.f32 %v3012, %v3022
    %v3030 = vmul.f32 %v3014, %v3026
    %s3031 = scalar_lea.vmem [#allocation8], 35
    %v3032 = vld [vmem:[%s3031] ss:$8 sm:$0x3]
    %v3034 = vlaneseq
    %v3035 = vshrl.u32 %v3034, 7
    %v3036 = vsub.s32 0, %v3035
    %v3037 = vrot.slane %v3032, %v3036
    %v3038 = vlaneseq
    %v3039 = vshrl.u32 %v3038, 7
    %v3040 = vsub.s32 1, %v3039
    %v3041 = vrot.slane %v3032, %v3040
    %v3044 = vadd.f32 %v3029, %v3037
    %v3045 = vadd.f32 %v3030, %v3041
    %v3046 = vmax.f32 %v3044, 0.0
    %v3047 = vmax.f32 %v3045, 0.0
    %v3048 = vld [vmem:[%s6] sm:$0xff]
    %v3049 = vld [vmem:[%s6 + $0x8] sm:$0xff]
    %v3050 = vld [vmem:[%s6 + $0x10] sm:$0xff]
    %v3051 = vld [vmem:[%s6 + $0x18] sm:$0xff]
    %v3052 = vld [vmem:[%s6 + $0x20] sm:$0xff]
    %v3053 = vld [vmem:[%s6 + $0x28] sm:$0xff]
    %v3054 = vld [vmem:[%s6 + $0x30] sm:$0xff]
    %v3055 = vld [vmem:[%s6 + $0x38] sm:$0xff]
    %v3056 = vld [vmem:[%s6 + $0x40] sm:$0xff]
    %v3057 = vld [vmem:[%s6 + $0x48] sm:$0xff]
    %v3058 = vld [vmem:[%s6 + $0x50] sm:$0xff]
    %v3059 = vld [vmem:[%s6 + $0x58] sm:$0xff]
    %v3060 = vld [vmem:[%s6 + $0x60] sm:$0xff]
    %v3061 = vld [vmem:[%s6 + $0x68] sm:$0xff]
    %v3062 = vld [vmem:[%s6 + $0x70] sm:$0xff]
    %v3063 = vld [vmem:[%s6 + $0x78] sm:$0xff]
    %v3064 = vld [vmem:[%s6 + $0x80] sm:$0xff]
    %v3065 = vld [vmem:[%s6 + $0x88] sm:$0xff]
    %v3066 = vld [vmem:[%s6 + $0x90] sm:$0xff]
    %v3067 = vld [vmem:[%s6 + $0x98] sm:$0xff]
    %v3068 = vld [vmem:[%s6 + $0xa0] sm:$0xff]
    %v3069 = vld [vmem:[%s6 + $0xa8] sm:$0xff]
    %v3070 = vld [vmem:[%s6 + $0xb0] sm:$0xff]
    %v3071 = vld [vmem:[%s6 + $0xb8] sm:$0xff]
    %v3072 = vld [vmem:[%s6 + $0xc0] sm:$0xff]
    %v3073 = vld [vmem:[%s6 + $0xc8] sm:$0xff]
    %v3074 = vld [vmem:[%s6 + $0xd0] sm:$0xff]
    %v3075 = vld [vmem:[%s6 + $0xd8] sm:$0xff]
    %v3076 = vld [vmem:[%s6 + $0xe0] sm:$0xff]
    %v3077 = vld [vmem:[%s6 + $0xe8] sm:$0xff]
    %v3078 = vld [vmem:[%s6 + $0xf0] sm:$0xff]
    %v3079 = vld [vmem:[%s6 + $0xf8] sm:$0xff]
    %3080 = vmatprep.subr.mxu0 0.0
    %3081 = vmatpush1.msra.mxu0 %v3048
    %3082 = vmatprep.subr.mxu0 0.0
    %3083 = vmatpush1.msra.mxu0 %v3049
    %3084 = vmatprep.subr.mxu0 0.0
    %3085 = vmatpush1.msra.mxu0 %v3050
    %3086 = vmatprep.subr.mxu0 0.0
    %3087 = vmatpush1.msra.mxu0 %v3051
    %3088 = vmatprep.subr.mxu0 0.0
    %3089 = vmatpush1.msra.mxu0 %v3052
    %3090 = vmatprep.subr.mxu0 0.0
    %3091 = vmatpush1.msra.mxu0 %v3053
    %3092 = vmatprep.subr.mxu0 0.0
    %3093 = vmatpush1.msra.mxu0 %v3054
    %3094 = vmatprep.subr.mxu0 0.0
    %3095 = vmatpush1.msra.mxu0 %v3055
    %3096 = vmatprep.subr.mxu0 0.0
    %3097 = vmatpush1.msra.mxu0 %v3056
    %3098 = vmatprep.subr.mxu0 0.0
    %3099 = vmatpush1.msra.mxu0 %v3057
    %3100 = vmatprep.subr.mxu0 0.0
    %3101 = vmatpush1.msra.mxu0 %v3058
    %3102 = vmatprep.subr.mxu0 0.0
    %3103 = vmatpush1.msra.mxu0 %v3059
    %3104 = vmatprep.subr.mxu0 0.0
    %3105 = vmatpush1.msra.mxu0 %v3060
    %3106 = vmatprep.subr.mxu0 0.0
    %3107 = vmatpush1.msra.mxu0 %v3061
    %3108 = vmatprep.subr.mxu0 0.0
    %3109 = vmatpush1.msra.mxu0 %v3062
    %3110 = vmatprep.subr.mxu0 0.0
    %3111 = vmatpush1.msra.mxu0 %v3063
    %3112 = vmatprep.subr.mxu0 0.0
    %3113 = vmatpush1.msra.mxu0 %v3064
    %3114 = vmatprep.subr.mxu0 0.0
    %3115 = vmatpush1.msra.mxu0 %v3065
    %3116 = vmatprep.subr.mxu0 0.0
    %3117 = vmatpush1.msra.mxu0 %v3066
    %3118 = vmatprep.subr.mxu0 0.0
    %3119 = vmatpush1.msra.mxu0 %v3067
    %3120 = vmatprep.subr.mxu0 0.0
    %3121 = vmatpush1.msra.mxu0 %v3068
    %3122 = vmatprep.subr.mxu0 0.0
    %3123 = vmatpush1.msra.mxu0 %v3069
    %3124 = vmatprep.subr.mxu0 0.0
    %3125 = vmatpush1.msra.mxu0 %v3070
    %3126 = vmatprep.subr.mxu0 0.0
    %3127 = vmatpush1.msra.mxu0 %v3071
    %3128 = vmatprep.subr.mxu0 0.0
    %3129 = vmatpush1.msra.mxu0 %v3072
    %3130 = vmatprep.subr.mxu0 0.0
    %3131 = vmatpush1.msra.mxu0 %v3073
    %3132 = vmatprep.subr.mxu0 0.0
    %3133 = vmatpush1.msra.mxu0 %v3074
    %3134 = vmatprep.subr.mxu0 0.0
    %3135 = vmatpush1.msra.mxu0 %v3075
    %3136 = vmatprep.subr.mxu0 0.0
    %3137 = vmatpush1.msra.mxu0 %v3076
    %3138 = vmatprep.subr.mxu0 0.0
    %3139 = vmatpush1.msra.mxu0 %v3077
    %3140 = vmatprep.subr.mxu0 0.0
    %3141 = vmatpush1.msra.mxu0 %v3078
    %3142 = vmatprep.subr.mxu0 0.0
    %3143 = vmatpush1.msra.mxu0 %v3079
    %3144 = vmatprep.mubr.f32.mxu0 %v3047
    %3145 = vmatmul.mubr.f32.gmra.mrb[0].mxu0 %v3046
    %v3146 = vpop.f32.mrb[0].mxu0
    %v3147 = vadd.f32 0.0, %v3146
    %v3148 = vpop.f32.mrb[0].mxu0
    %3149 = vdwg.mxu0
    %v3150 = vld [vmem:[#allocation11] sm:$0x1]
    %v3151 = vlaneseq
    %v3152 = vshrl.u32 %v3151, 7
    %v3153 = vsub.s32 0, %v3152
    %v3154 = vrot.slane %v3150, %v3153
    %3156 = vrot.lane.b32.xlu0 %v3154, 32
    %v3157 = vpop.permute.xlu0 %3156
    %v3159 = vmul.f32 %v3147, %v3157
    %v3160 = vld [vmem:[#allocation11 + $0x1] sm:$0x1]
    %v3161 = vlaneseq
    %v3162 = vshrl.u32 %v3161, 7
    %v3163 = vsub.s32 0, %v3162
    %v3164 = vrot.slane %v3160, %v3163
    %3166 = vrot.lane.b32.xlu0 %v3164, 32
    %v3167 = vpop.permute.xlu0 %3166
    %v3169 = vadd.f32 %v3159, %v3167
    %v3170 = vmax.f32 %v3169, 0.0
    %v3171 = vld [vmem:[%s1] sm:$0x3]
    %v3172 = vld [vmem:[%s7] sm:$0xff]
    %v3173 = vld [vmem:[%s7 + $0x8] sm:$0xff]
    %v3174 = vld [vmem:[%s7 + $0x10] sm:$0xff]
    %v3175 = vld [vmem:[%s7 + $0x18] sm:$0xff]
    %v3176 = vld [vmem:[%s7 + $0x20] sm:$0xff]
    %v3177 = vld [vmem:[%s7 + $0x28] sm:$0xff]
    %v3178 = vld [vmem:[%s7 + $0x30] sm:$0xff]
    %v3179 = vld [vmem:[%s7 + $0x38] sm:$0xff]
    %v3181 = vsel %vm151, %v3171, 0
    %3183 = vmatprep.subr.mxu0 0.0
    %3184 = vmatpush1.msra.mxu0 %v3172
    %3185 = vmatprep.subr.mxu0 0.0
    %3186 = vmatpush1.msra.mxu0 %v3173
    %3187 = vmatprep.subr.mxu0 0.0
    %3188 = vmatpush1.msra.mxu0 %v3174
    %3189 = vmatprep.subr.mxu0 0.0
    %3190 = vmatpush1.msra.mxu0 %v3175
    %3191 = vmatprep.subr.mxu0 0.0
    %3192 = vmatpush1.msra.mxu0 %v3176
    %3193 = vmatprep.subr.mxu0 0.0
    %3194 = vmatpush1.msra.mxu0 %v3177
    %3195 = vmatprep.subr.mxu0 0.0
    %3196 = vmatpush1.msra.mxu0 %v3178
    %3197 = vmatprep.subr.mxu0 0.0
    %3198 = vmatpush1.msra.mxu0 %v3179
    %3199 = vmatprep.subr.mxu0 0.0
    %3200 = vmatpush1.msra.mxu0 0.0
    %3201 = vmatprep.subr.mxu0 0.0
    %3202 = vmatpush1.msra.mxu0 0.0
    %3203 = vmatprep.subr.mxu0 0.0
    %3204 = vmatpush1.msra.mxu0 0.0
    %3205 = vmatprep.subr.mxu0 0.0
    %3206 = vmatpush1.msra.mxu0 0.0
    %3207 = vmatprep.subr.mxu0 0.0
    %3208 = vmatpush1.msra.mxu0 0.0
    %3209 = vmatprep.subr.mxu0 0.0
    %3210 = vmatpush1.msra.mxu0 0.0
    %3211 = vmatprep.subr.mxu0 0.0
    %3212 = vmatpush1.msra.mxu0 0.0
    %3213 = vmatprep.subr.mxu0 0.0
    %3214 = vmatpush1.msra.mxu0 0.0
    %3215 = vmatprep.subr.mxu0 0.0
    %3216 = vmatpush1.msra.mxu0 0.0
    %3217 = vmatprep.subr.mxu0 0.0
    %3218 = vmatpush1.msra.mxu0 0.0
    %3219 = vmatprep.subr.mxu0 0.0
    %3220 = vmatpush1.msra.mxu0 0.0
    %3221 = vmatprep.subr.mxu0 0.0
    %3222 = vmatpush1.msra.mxu0 0.0
    %3223 = vmatprep.subr.mxu0 0.0
    %3224 = vmatpush1.msra.mxu0 0.0
    %3225 = vmatprep.subr.mxu0 0.0
    %3226 = vmatpush1.msra.mxu0 0.0
    %3227 = vmatprep.subr.mxu0 0.0
    %3228 = vmatpush1.msra.mxu0 0.0
    %3229 = vmatprep.subr.mxu0 0.0
    %3230 = vmatpush1.msra.mxu0 0.0
    %3231 = vmatprep.subr.mxu0 0.0
    %3232 = vmatpush1.msra.mxu0 0.0
    %3233 = vmatprep.subr.mxu0 0.0
    %3234 = vmatpush1.msra.mxu0 0.0
    %3235 = vmatprep.subr.mxu0 0.0
    %3236 = vmatpush1.msra.mxu0 0.0
    %3237 = vmatprep.subr.mxu0 0.0
    %3238 = vmatpush1.msra.mxu0 0.0
    %3239 = vmatprep.subr.mxu0 0.0
    %3240 = vmatpush1.msra.mxu0 0.0
    %3241 = vmatprep.subr.mxu0 0.0
    %3242 = vmatpush1.msra.mxu0 0.0
    %3243 = vmatprep.subr.mxu0 0.0
    %3244 = vmatpush1.msra.mxu0 0.0
    %3245 = vmatprep.subr.mxu0 0.0
    %3246 = vmatpush1.msra.mxu0 0.0
    %3247 = vmatprep.mubr.f32.mxu0 0.0
    %3248 = vmatmul.mubr.f32.gmra.mrb[0].mxu0 %v3181
    %v3249 = vpop.f32.mrb[0].mxu0
    %v3250 = vadd.f32 0.0, %v3249
    %v3251 = vpop.f32.mrb[0].mxu0
    %3252 = vdwg.mxu0
    %v3253 = vadd.f32 %v3147, %v3250
    %v3254 = vld [vmem:[#allocation10] sm:$0xff]
    %v3255 = vld [vmem:[#allocation10 + $0x8] sm:$0xff]
    %v3257 = vrot.slane %v3170, 2
    %3258 = vrot.lane.b32.xlu0 %v3257, 96
    %v3259 = vpop.permute.xlu0 %3258
    %vm3260 = vcmask 130048
    %v3261 = vsel %vm3260, %v3259, 0
    %3263 = vmatprep.subr.mxu0 0.0
    %3264 = vmatpush1.msra.mxu0 %v3254
    %3265 = vmatprep.subr.mxu0 0.0
    %3266 = vmatpush1.msra.mxu0 %v3255
    %3267 = vmatprep.subr.mxu0 0.0
    %3268 = vmatpush1.msra.mxu0 0.0
    %3269 = vmatprep.subr.mxu0 0.0
    %3270 = vmatpush1.msra.mxu0 0.0
    %3271 = vmatprep.subr.mxu0 0.0
    %3272 = vmatpush1.msra.mxu0 0.0
    %3273 = vmatprep.subr.mxu0 0.0
    %3274 = vmatpush1.msra.mxu0 0.0
    %3275 = vmatprep.subr.mxu0 0.0
    %3276 = vmatpush1.msra.mxu0 0.0
    %3277 = vmatprep.subr.mxu0 0.0
    %3278 = vmatpush1.msra.mxu0 0.0
    %3279 = vmatprep.subr.mxu0 0.0
    %3280 = vmatpush1.msra.mxu0 0.0
    %3281 = vmatprep.subr.mxu0 0.0
    %3282 = vmatpush1.msra.mxu0 0.0
    %3283 = vmatprep.subr.mxu0 0.0
    %3284 = vmatpush1.msra.mxu0 0.0
    %3285 = vmatprep.subr.mxu0 0.0
    %3286 = vmatpush1.msra.mxu0 0.0
    %3287 = vmatprep.subr.mxu0 0.0
    %3288 = vmatpush1.msra.mxu0 0.0
    %3289 = vmatprep.subr.mxu0 0.0
    %3290 = vmatpush1.msra.mxu0 0.0
    %3291 = vmatprep.subr.mxu0 0.0
    %3292 = vmatpush1.msra.mxu0 0.0
    %3293 = vmatprep.subr.mxu0 0.0
    %3294 = vmatpush1.msra.mxu0 0.0
    %3295 = vmatprep.subr.mxu0 0.0
    %3296 = vmatpush1.msra.mxu0 0.0
    %3297 = vmatprep.subr.mxu0 0.0
    %3298 = vmatpush1.msra.mxu0 0.0
    %3299 = vmatprep.subr.mxu0 0.0
    %3300 = vmatpush1.msra.mxu0 0.0
    %3301 = vmatprep.subr.mxu0 0.0
    %3302 = vmatpush1.msra.mxu0 0.0
    %3303 = vmatprep.subr.mxu0 0.0
    %3304 = vmatpush1.msra.mxu0 0.0
    %3305 = vmatprep.subr.mxu0 0.0
    %3306 = vmatpush1.msra.mxu0 0.0
    %3307 = vmatprep.subr.mxu0 0.0
    %3308 = vmatpush1.msra.mxu0 0.0
    %3309 = vmatprep.subr.mxu0 0.0
    %3310 = vmatpush1.msra.mxu0 0.0
    %3311 = vmatprep.subr.mxu0 0.0
    %3312 = vmatpush1.msra.mxu0 0.0
    %3313 = vmatprep.subr.mxu0 0.0
    %3314 = vmatpush1.msra.mxu0 0.0
    %3315 = vmatprep.subr.mxu0 0.0
    %3316 = vmatpush1.msra.mxu0 0.0
    %3317 = vmatprep.subr.mxu0 0.0
    %3318 = vmatpush1.msra.mxu0 0.0
    %3319 = vmatprep.subr.mxu0 0.0
    %3320 = vmatpush1.msra.mxu0 0.0
    %3321 = vmatprep.subr.mxu0 0.0
    %3322 = vmatpush1.msra.mxu0 0.0
    %3323 = vmatprep.subr.mxu0 0.0
    %3324 = vmatpush1.msra.mxu0 0.0
    %3325 = vmatprep.subr.mxu0 0.0
    %3326 = vmatpush1.msra.mxu0 0.0
    %3327 = vmatprep.mubr.f32.mxu0 0.0
    %3328 = vmatmul.mubr.f32.gmra.mrb[0].mxu0 %v3261
    %v3329 = vpop.f32.mrb[0].mxu0
    %v3330 = vadd.f32 0.0, %v3329
    %v3331 = vpop.f32.mrb[0].mxu0
    %3332 = vdwg.mxu0
    %v3333 = vadd.f32 %v3253, %v3330
    %v3334 = vld [vmem:[#allocation11 + $0x2] sm:$0x1]
    %v3335 = vlaneseq
    %v3336 = vshrl.u32 %v3335, 7
    %v3337 = vsub.s32 0, %v3336
    %v3338 = vrot.slane %v3334, %v3337
    %v3339 = vadd.f32 %v3333, %v3338
    %v3340 = vxor.u32 %v3339, 2147483648
    %v3341 = vmul.f32 %v3340, 1.442695
    %v3342 = vpow.pop %v3341
    %v3343 = vadd.f32 %v3342, 1.0
    %v3344 = vrcp.pop %v3343
    %v3345 = vmul.f32 1.0, %v3344
    %vm3346 = vcmask 123904
    %3347 = vst.msk [vmem:[#allocation13] sm:$0x3] %vm3346, %v3345
    %v3348 = vld [vmem:[#allocation11 + $0x3] sm:$0x1]
    %v3349 = vlaneseq
    %v3350 = vshrl.u32 %v3349, 7
    %v3351 = vsub.s32 0, %v3350
    %v3352 = vrot.slane %v3348, %v3351
    %3354 = vrot.lane.b32.xlu0 %v3352, 16
    %v3355 = vpop.permute.xlu0 %3354
    %v3357 = vmul.f32 %v3339, %v3355
    %v3358 = vld [vmem:[#allocation11 + $0x4] sm:$0x1]
    %v3359 = vlaneseq
    %v3360 = vshrl.u32 %v3359, 7
    %v3361 = vsub.s32 0, %v3360
    %v3362 = vrot.slane %v3358, %v3361
    %3364 = vrot.lane.b32.xlu0 %v3362, 16
    %v3365 = vpop.permute.xlu0 %3364
    %v3367 = vadd.f32 %v3357, %v3365
    %v3368 = vmax.f32 %v3367, 0.0
    %v3369 = vld [vmem:[#allocation11 + $0x5] sm:$0x1]
    %v3370 = vlaneseq
    %v3371 = vshrl.u32 %v3370, 7
    %v3372 = vsub.s32 0, %v3371
    %v3373 = vrot.slane %v3369, %v3372
    %3375 = vrot.lane.b32.xlu0 %v3373, 16
    %v3376 = vpop.permute.xlu0 %3375
    %v3378 = vmul.f32 %v3368, %v3376
    %3380 = vrot.lane.b32.xlu0 %v3378, 112
    %v3381 = vpop.permute.xlu0 %3380
    %v3383 = vsel %vm3346, %v3381, 0.0
    %3384 = vadd.xlane.f32.xlu0 %v3383
    %v3385 = vpop.xlane.xlu0 %3384
    %v3386 = vld [vmem:[#allocation11 + $0x6] sm:$0x1]
    %v3387 = vlaneseq
    %v3388 = vshrl.u32 %v3387, 7
    %v3389 = vsub.s32 0, %v3388
    %v3390 = vrot.slane %v3386, %v3389
    %v3391 = vadd.f32 %v3385, %v3390
    %v3392 = vtanh.pop %v3391
    %vm3393 = vcmask 1024
    %3394 = vst.msk [vmem:[%s10] sm:$0x3] %vm3393, %v3392
    // Predicated region
    $region66: #{alpha_same_forward.1} parent=1 // pred_check
      _
    $region67: #{alpha_same_forward.1} parent=1 // pred_check_branch
      %3396 = sbr.rel (0) target = $region69
    $region68: #{alpha_same_forward.1} parent=1 // pred_region
      _
    $region69: #{alpha_same_forward.1} parent=1 // pred_fallthru
      _
    // Predicated region
    $region70: #{alpha_same_forward.1} parent=1 // pred_check
      _
    $region71: #{alpha_same_forward.1} parent=1 // pred_check_branch
      %3398 = sbr.rel (0) target = $region73
    $region72: #{alpha_same_forward.1} parent=1 // pred_region
      %s3400 = ssub.s32 32, 32
      %3401 = vsyncadd [#allocation4], %s3400
      %s3403 = sshll.u32 [#allocation13], 4
      %s3404 = int_to_ptr.vmem [resolvable:$true] %s3403
      %3406 = dma.vmem_to_hbm [thread:$0]  %s3404, 32, %s11, [#allocation4]
    $region73: #{alpha_same_forward.1} parent=1 // pred_fallthru
      _
    // Predicated region
    $region74: #{alpha_same_forward.1} parent=1 // pred_check
      _
    $region75: #{alpha_same_forward.1} parent=1 // pred_check_branch
      %3408 = sbr.rel (0) target = $region77
    $region76: #{alpha_same_forward.1} parent=1 // pred_region
      _
    $region77: #{alpha_same_forward.1} parent=1 // pred_fallthru
      _
    // Predicated region
    $region78: #{alpha_same_forward.1} parent=1 // pred_check
      _
    $region79: #{alpha_same_forward.1} parent=1 // pred_check_branch
      %3410 = sbr.rel (0) target = $region81
    $region80: #{alpha_same_forward.1} parent=1 // pred_region
      %3411 = dma.done [#allocation4], 32
    $region81: #{alpha_same_forward.1} parent=1 // pred_fallthru
      _
    %3412 = vsyncpa [#allocation3], 1
    %3413 = vsyncpa [#allocation6], 1
    %3414 = vsyncpa [#allocation9], 1
    %3415 = vsyncpa [#allocation12], 1
    %3416 = vsyncpa [#allocation4], 1

</llo_original>
